<compile_context>
chip_gen: v5e
topology: v5e:2x2
jax: 0.10.0
libtpu: 0.0.40
codegen_flags: <defaults>
</compile_context>

<pallas_src>
import jax
import jax.numpy as jnp
from jax import lax
from jax.experimental import pallas as pl
from jax.experimental.pallas import tpu as pltpu


def _mlp_kernel(x_ref, w1_ref, b1_ref, w2_ref, b2_ref, o_ref,
                h_ref, w1b_ref, w2b_ref):
    """One batch tile: out = relu(x @ W1 + b1) @ W2 + b2 (bf16 MXU, f32 acc)."""
    tm = x_ref.shape[0]
    chunk = h_ref.shape[1]
    n_chunks = tm // chunk

    # bf16 copies of the resident f32 weights, staged into VMEM scratch.
    # Done every grid step (NOT gated on program_id == 0) so it remains correct
    # when the "parallel" axis is sharded across TensorCores; the cost hides
    # under the x-tile DMA on this memory-bound kernel.
    w1b_ref[...] = w1_ref[...].astype(jnp.bfloat16)
    w2b_ref[...] = w2_ref[...].astype(jnp.bfloat16)

    # Hoist bias loads out of the chunk loop (JAX does not CSE these).
    b1 = b1_ref[...]                      # (1, D)   f32
    b2 = b2_ref[...]                      # (1, out) f32

    def body(c, carry):
        r0 = pl.multiple_of(c * chunk, chunk)
        slot = c & 1                      # double-buffered hidden staging
        # Layer 1: cast x rows to bf16 on the VPU, MXU matmul, f32 bias + ReLU.
        xb = x_ref[pl.ds(r0, chunk), :].astype(jnp.bfloat16)
        h = jnp.dot(xb, w1b_ref[...], preferred_element_type=jnp.float32)
        h = jnp.maximum(h + b1, 0.0)
        # Stage hidden activation (bf16) in VMEM scratch (bounds vreg pressure);
        # two slots avoid the WAR hazard between consecutive chunks.
        h_ref[slot] = h.astype(h_ref.dtype)
        # Layer 2: bf16 MXU matmul, f32 bias add.
        y = jnp.dot(h_ref[slot], w2b_ref[...], preferred_element_type=jnp.float32)
        o_ref[pl.ds(r0, chunk), :] = (y + b2).astype(o_ref.dtype)
        return carry

    lax.fori_loop(0, n_chunks, body, 0, unroll=True)


def _round_up(a, b):
    return ((a + b - 1) // b) * b


def projection_mlp_forward(x, w1, b1, w2, b2, *, tm=256, rows_per_chunk=256):
    """x: (M, D); w1: (D, D); b1: (D,); w2: (D, out); b2: (out,). f32 in/out."""
    M, D = x.shape
    out_dim = w2.shape[1]
    assert D % 128 == 0 and out_dim % 128 == 0, "feature dims must be lane-aligned"

    # Batch tiling: clamp the tile for small batches (sublane-aligned 8), use a
    # cdiv grid so any ragged tail is clipped by Pallas instead of paying a
    # jnp.pad copy (an extra HBM pass over x).
    tm = _round_up(max(8, min(tm, _round_up(M, 8))), 8)
    chunk = _round_up(max(8, min(rows_per_chunk, tm)), 8)
    if tm % chunk != 0:
        chunk = tm
    grid = (pl.cdiv(M, tm),)

    # All operands stay f32 in HBM; the kernel casts to bf16 in VMEM/vregs.
    x = x.astype(jnp.float32)
    w1 = w1.astype(jnp.float32)
    w2 = w2.astype(jnp.float32)
    b1_2d = b1.reshape(1, D).astype(jnp.float32)
    b2_2d = b2.reshape(1, out_dim).astype(jnp.float32)

    flops = 2 * M * D * (D + out_dim)
    bytes_accessed = (x.size + w1.size + w2.size
                      + b1_2d.size + b2_2d.size + M * out_dim) * 4

    # VMEM working set (double-buffered pipeline blocks + scratch) with headroom.
    vmem_need = (2 * tm * D * 4                      # x tiles (f32)
                 + 2 * (D * D + D * out_dim) * 4     # resident f32 weights
                 + 2 * tm * out_dim * 4              # output tiles
                 + 2 * chunk * D * 2                 # hidden staging (2 slots)
                 + (D * D + D * out_dim) * 2         # bf16 weight scratch
                 + 2 * (D + out_dim) * 4)            # biases
    vmem_limit = int(min(max(2 * vmem_need, 16 << 20), 40 << 20))

    out = pl.pallas_call(
        _mlp_kernel,
        out_shape=jax.ShapeDtypeStruct((M, out_dim), x.dtype),
        grid_spec=pltpu.PrefetchScalarGridSpec(
            num_scalar_prefetch=0,
            grid=grid,
            in_specs=[
                pl.BlockSpec((tm, D), lambda i: (i, 0)),        # x tile (f32)
                pl.BlockSpec((D, D), lambda i: (0, 0)),         # W1 (resident f32)
                pl.BlockSpec((1, D), lambda i: (0, 0)),         # b1
                pl.BlockSpec((D, out_dim), lambda i: (0, 0)),   # W2 (resident f32)
                pl.BlockSpec((1, out_dim), lambda i: (0, 0)),   # b2
            ],
            out_specs=pl.BlockSpec((tm, out_dim), lambda i: (i, 0)),
            scratch_shapes=[
                pltpu.VMEM((2, chunk, D), jnp.bfloat16),        # hidden staging
                pltpu.VMEM((D, D), jnp.bfloat16),               # W1 bf16 copy
                pltpu.VMEM((D, out_dim), jnp.bfloat16),         # W2 bf16 copy
            ],
        ),
        compiler_params=pltpu.CompilerParams(
            dimension_semantics=("parallel",),      # megacore shard on v7x
            vmem_limit_bytes=vmem_limit),
        cost_estimate=pl.CostEstimate(
            flops=flops, transcendentals=0, bytes_accessed=bytes_accessed),
    )(x, w1, b1_2d, w2, b2_2d)

    return out


def init_params(key, n_channels=512, out_dim=128, dtype=jnp.float32):
    """Deterministic synthetic init mirroring nn.Linear parameter shapes.

    PyTorch stores Linear weight as (out, in); we store the transpose (in, out)
    so the kernel can use it directly in x @ W.
    """
    k1, k2, k3, k4 = jax.random.split(key, 4)
    bound1 = 1.0 / jnp.sqrt(n_channels)
    w1 = jax.random.uniform(k1, (n_channels, n_channels), dtype,
                            minval=-bound1, maxval=bound1)
    b1 = jax.random.uniform(k2, (n_channels,), dtype,
                            minval=-bound1, maxval=bound1)
    w2 = jax.random.uniform(k3, (n_channels, out_dim), dtype,
                            minval=-bound1, maxval=bound1)
    b2 = jax.random.uniform(k4, (out_dim,), dtype,
                            minval=-bound1, maxval=bound1)
    return w1, b1, w2, b2


if __name__ == "__main__":
    # resnet18/34 encoder -> n_channels = 512; projection output = 128.
    # batch=512 with tm=256 gives a 2-step grid (both v7x TensorCores busy).
    n_channels, out_dim, batch = 512, 128, 512

    key = jax.random.PRNGKey(0)
    kx, kp = jax.random.split(key)
    x = jax.random.normal(kx, (batch, n_channels), jnp.float32)
    w1, b1, w2, b2 = init_params(kp, n_channels, out_dim)

    y = projection_mlp_forward(x, w1, b1, w2, b2)
    y = jax.block_until_ready(y)

    # Pure-JAX f32 reference (same math as the PyTorch module forward).
    # bf16 MXU inputs / bf16 hidden staging => loosened tolerance.
    h_ref = jnp.maximum(x @ w1 + b1, 0.0)
    y_ref = h_ref @ w2 + b2
    assert y.shape == (batch, out_dim)
    assert jnp.allclose(y, y_ref, atol=2e-2, rtol=2e-2)

    print("KERNEL_OK")
</pallas_src>

<mosaic_0001>
module attributes {stable_mosaic.version = 11 : i64} {
  func.func @_mlp_kernel(%arg0: i32, %arg1: memref<256x512xf32, #tpu.memory_space<vmem>>, %arg2: memref<512x512xf32, #tpu.memory_space<vmem>>, %arg3: memref<1x512xf32, #tpu.memory_space<vmem>>, %arg4: memref<512x128xf32, #tpu.memory_space<vmem>>, %arg5: memref<1x128xf32, #tpu.memory_space<vmem>>, %arg6: memref<256x128xf32, #tpu.memory_space<vmem>>, %arg7: memref<2x256x512xbf16, #tpu.memory_space<vmem>>, %arg8: memref<512x512xbf16, #tpu.memory_space<vmem>>, %arg9: memref<512x128xbf16, #tpu.memory_space<vmem>>) attributes {dimension_semantics = [#tpu.dimension_semantics<parallel>], iteration_bounds = array<i64: 2>, scalar_prefetch = 0 : i64, scratch_operands = 3 : i64, tpu.core_type = #tpu.core_type<tc>, window_params = [{transform_indices = @transform_0, window_bounds = array<i64: 256, 512>}, {pipeline_mode = #tpu.pipeline_mode<synchronous>, transform_indices = @transform_1, window_bounds = array<i64: 512, 512>}, {pipeline_mode = #tpu.pipeline_mode<synchronous>, transform_indices = @transform_2, window_bounds = array<i64: 1, 512>}, {pipeline_mode = #tpu.pipeline_mode<synchronous>, transform_indices = @transform_3, window_bounds = array<i64: 512, 128>}, {pipeline_mode = #tpu.pipeline_mode<synchronous>, transform_indices = @transform_4, window_bounds = array<i64: 1, 128>}, {transform_indices = @transform_5, window_bounds = array<i64: 256, 128>}]} {
    %c0 = arith.constant 0 : index
    %c0_0 = arith.constant 0 : index
    %0 = vector.load %arg2[%c0, %c0_0] : memref<512x512xf32, #tpu.memory_space<vmem>>, vector<512x512xf32>
    %1 = arith.truncf %0 : vector<512x512xf32> to vector<512x512xbf16>
    %c0_1 = arith.constant 0 : index
    %c0_2 = arith.constant 0 : index
    %2 = vector.load %arg8[%c0_1, %c0_2] : memref<512x512xbf16, #tpu.memory_space<vmem>>, vector<512x512xbf16>
    tpu.vector_store %arg8[%c0_1, %c0_2], %1 {strides = array<i32>} : memref<512x512xbf16, #tpu.memory_space<vmem>>, vector<512x512xbf16>,
    %c0_3 = arith.constant 0 : index
    %c0_4 = arith.constant 0 : index
    %3 = vector.load %arg4[%c0_3, %c0_4] : memref<512x128xf32, #tpu.memory_space<vmem>>, vector<512x128xf32>
    %4 = arith.truncf %3 : vector<512x128xf32> to vector<512x128xbf16>
    %c0_5 = arith.constant 0 : index
    %c0_6 = arith.constant 0 : index
    %5 = vector.load %arg9[%c0_5, %c0_6] : memref<512x128xbf16, #tpu.memory_space<vmem>>, vector<512x128xbf16>
    tpu.vector_store %arg9[%c0_5, %c0_6], %4 {strides = array<i32>} : memref<512x128xbf16, #tpu.memory_space<vmem>>, vector<512x128xbf16>,
    %c0_7 = arith.constant 0 : index
    %c0_8 = arith.constant 0 : index
    %6 = vector.load %arg3[%c0_7, %c0_8] : memref<1x512xf32, #tpu.memory_space<vmem>>, vector<1x512xf32>
    %c0_9 = arith.constant 0 : index
    %c0_10 = arith.constant 0 : index
    %7 = vector.load %arg5[%c0_9, %c0_10] : memref<1x128xf32, #tpu.memory_space<vmem>>, vector<1x128xf32>
    %c0_i32 = arith.constant 0 : i32
    %c256_i32 = arith.constant 256 : i32
    %8 = arith.muli %c0_i32, %c256_i32 : i32
    %9 = tpu.assume_multiple %8, 256 : i32
    %c1_i32 = arith.constant 1 : i32
    %10 = arith.andi %c0_i32, %c1_i32 : i32
    %11 = arith.index_cast %9 : i32 to index
    %c0_11 = arith.constant 0 : index
    %12 = vector.load %arg1[%11, %c0_11] : memref<256x512xf32, #tpu.memory_space<vmem>>, vector<256x512xf32>
    %13 = arith.truncf %12 : vector<256x512xf32> to vector<256x512xbf16>
    %c0_12 = arith.constant 0 : index
    %c0_13 = arith.constant 0 : index
    %14 = vector.load %arg8[%c0_12, %c0_13] : memref<512x512xbf16, #tpu.memory_space<vmem>>, vector<512x512xbf16>
    %cst = arith.constant dense<0.000000e+00> : vector<256x512xf32>
    %15 = tpu.matmul %13, %14, %cst {dimension_numbers = #tpu.dot_dimension_numbers<[1], [0], [0], [1], [0, 0, 1, 1], [], []>} : vector<256x512xbf16>, vector<512x512xbf16>, vector<256x512xf32> -> vector<256x512xf32>
    %16 = vector.broadcast %6 : vector<1x512xf32> to vector<256x512xf32>
    %17 = arith.addf %15, %16 : vector<256x512xf32>
    %cst_14 = arith.constant 0.000000e+00 : f32
    %18 = vector.broadcast %cst_14 : f32 to vector<256x512xf32>
    %19 = arith.maximumf %17, %18 : vector<256x512xf32>
    %20 = arith.truncf %19 : vector<256x512xf32> to vector<256x512xbf16>
    %21 = arith.index_cast %10 : i32 to index
    %c0_15 = arith.constant 0 : index
    %c0_16 = arith.constant 0 : index
    %22 = vector.load %arg7[%21, %c0_15, %c0_16] : memref<2x256x512xbf16, #tpu.memory_space<vmem>>, vector<1x256x512xbf16>
    %23 = vector.shape_cast %22 : vector<1x256x512xbf16> to vector<256x512xbf16>
    %24 = vector.shape_cast %20 : vector<256x512xbf16> to vector<1x256x512xbf16>
    tpu.vector_store %arg7[%21, %c0_15, %c0_16], %24 {strides = array<i32>} : memref<2x256x512xbf16, #tpu.memory_space<vmem>>, vector<1x256x512xbf16>,
    %25 = arith.index_cast %10 : i32 to index
    %c0_17 = arith.constant 0 : index
    %c0_18 = arith.constant 0 : index
    %26 = vector.load %arg7[%25, %c0_17, %c0_18] : memref<2x256x512xbf16, #tpu.memory_space<vmem>>, vector<1x256x512xbf16>
    %27 = vector.shape_cast %26 : vector<1x256x512xbf16> to vector<256x512xbf16>
    %c0_19 = arith.constant 0 : index
    %c0_20 = arith.constant 0 : index
    %28 = vector.load %arg9[%c0_19, %c0_20] : memref<512x128xbf16, #tpu.memory_space<vmem>>, vector<512x128xbf16>
    %cst_21 = arith.constant dense<0.000000e+00> : vector<256x128xf32>
    %29 = tpu.matmul %27, %28, %cst_21 {dimension_numbers = #tpu.dot_dimension_numbers<[1], [0], [0], [1], [0, 0, 1, 1], [], []>} : vector<256x512xbf16>, vector<512x128xbf16>, vector<256x128xf32> -> vector<256x128xf32>
    %30 = vector.broadcast %7 : vector<1x128xf32> to vector<256x128xf32>
    %31 = arith.addf %29, %30 : vector<256x128xf32>
    %32 = arith.index_cast %9 : i32 to index
    %c0_22 = arith.constant 0 : index
    %33 = vector.load %arg6[%32, %c0_22] : memref<256x128xf32, #tpu.memory_space<vmem>>, vector<256x128xf32>
    tpu.vector_store %arg6[%32, %c0_22], %31 {strides = array<i32>} : memref<256x128xf32, #tpu.memory_space<vmem>>, vector<256x128xf32>,
    %c1_i32_23 = arith.constant 1 : i32
    return
  }
  func.func @transform_0(%arg0: i32) -> (i32, i32) {
    %c0_i32 = arith.constant 0 : i32
    %c0_i32_0 = arith.constant 0 : i32
    return %arg0, %c0_i32 : i32, i32
  }
  func.func @transform_1(%arg0: i32) -> (i32, i32) {
    %c0_i32 = arith.constant 0 : i32
    %c0_i32_0 = arith.constant 0 : i32
    %c0_i32_1 = arith.constant 0 : i32
    return %c0_i32, %c0_i32_0 : i32, i32
  }
  func.func @transform_2(%arg0: i32) -> (i32, i32) {
    %c0_i32 = arith.constant 0 : i32
    %c0_i32_0 = arith.constant 0 : i32
    %c0_i32_1 = arith.constant 0 : i32
    return %c0_i32, %c0_i32_0 : i32, i32
  }
  func.func @transform_3(%arg0: i32) -> (i32, i32) {
    %c0_i32 = arith.constant 0 : i32
    %c0_i32_0 = arith.constant 0 : i32
    %c0_i32_1 = arith.constant 0 : i32
    return %c0_i32, %c0_i32_0 : i32, i32
  }
  func.func @transform_4(%arg0: i32) -> (i32, i32) {
    %c0_i32 = arith.constant 0 : i32
    %c0_i32_0 = arith.constant 0 : i32
    %c0_i32_1 = arith.constant 0 : i32
    return %c0_i32, %c0_i32_0 : i32, i32
  }
  func.func @transform_5(%arg0: i32) -> (i32, i32) {
    %c0_i32 = arith.constant 0 : i32
    %c0_i32_0 = arith.constant 0 : i32
    return %arg0, %c0_i32 : i32, i32
  }
}

</mosaic_0001>

<llo_original>
// kernel: tpu_custom_call.1
$region0: #{tpu_custom_call.1}
  #allocation0 [shape = 'u32[]', space=smem, size = 0x4, offset = 0x4, fixed_abs, tag = 'smem constant byte address 0x4 - core index']
  #allocation1 [shape = 'u32[72,128]{1,0:T(1,128)}', space=vmem, size = 0x9000, scoped, tag = 'internal scratch']
  #allocation2 [shape = 'bf16[2,256,512]{2,1,0:T(8,128)(2,1)}', space=vmem, size = 0x80000, scoped, tag = 'scratch operand']
  #allocation3 [shape = 'bf16[512,512]{1,0:T(8,128)(2,1)}', space=vmem, size = 0x80000, scoped, tag = 'scratch operand']
  #allocation4 [shape = 'bf16[512,128]{1,0:T(8,128)(2,1)}', space=vmem, size = 0x20000, scoped, tag = 'scratch operand']
  %s0 = inlined_call_operand.hbm [shape: f32[512,512], index: 0, kind: input, shape index: {}]
  %s1 = inlined_call_operand.hbm [shape: f32[512,512], index: 1, kind: input, shape index: {}]
  %s2 = inlined_call_operand.hbm [shape: f32[1,512], index: 2, kind: input, shape index: {}]
  %s3 = inlined_call_operand.hbm [shape: f32[512,128], index: 3, kind: input, shape index: {}]
  %s4 = inlined_call_operand.vmem [shape: f32[1,128], index: 4, kind: input, shape index: {}]
  %s5 = inlined_call_operand.hbm [shape: f32[512,128], index: 5, kind: output, shape index: {}]
  %s6 = sld [smem:[#allocation0]]
  $region69: #{tpu_custom_call.1} parent=0
    _
  %s8 = ssub.s32 1, %s6
  %s9 = scalar_select 0, %s8, %s6
  $region1: #{tpu_custom_call.1} parent=0
    #allocation5 [shape = 'u8[1048576]{0}', space=vmem, size = 0x100000, scoped, tag = 'input window, operand 0']
    #allocation6 [shape = 's32[2]{0}', space=sflag, size = 0x8, scoped, tag = 'scoped memory for tpu_custom_call.1']
    #allocation7 [shape = 's32[2]{0}', space=sflag, size = 0x8, scoped, tag = 'scoped memory for tpu_custom_call.1']
    #allocation8 [shape = 'u8[1048576]{0}', space=vmem, size = 0x100000, scoped, tag = 'input window, operand 1, single buffered']
    #allocation9 [shape = 's32[1]{0}', space=sflag, size = 0x4, scoped, tag = 'scoped memory for tpu_custom_call.1']
    #allocation10 [shape = 'u8[2048]{0}', space=vmem, size = 0x800, scoped, tag = 'input window, operand 2, single buffered']
    #allocation11 [shape = 'u8[262144]{0}', space=vmem, size = 0x40000, scoped, tag = 'input window, operand 3, single buffered']
    #allocation12 [shape = 's32[1]{0}', space=sflag, size = 0x4, scoped, tag = 'scoped memory for tpu_custom_call.1']
    #allocation13 [shape = 'u8[262144]{0}', space=vmem, size = 0x40000, scoped, tag = 'output window, operand 0']
    %10 = vsyncpa [#allocation6], 0
    %s11 = scalar_lea.sflag [#allocation6], 1
    %12 = vsyncpa %s11, 0
    %13 = vsyncpa [#allocation9], 0
    %14 = vsyncpa [#allocation12], 0
    %15 = vsyncpa [#allocation7], 0
    %s16 = scalar_lea.sflag [#allocation7], 1
    %17 = vsyncpa %s16, 0
    loop: start=0, step=1, limit=4
    $region2: #{tpu_custom_call.1} parent=1 // loop_pre_header
      _
    $region3: #{tpu_custom_call.1} parent=1 // loop_header
      %s19 = sphi 0, %s23
      %p20 = scmp.ge.s32.totalorder %s19, 4
      %s29 = sphi 0, %s31
      %s32 = sphi 0, %s29
      %s33 = sphi 0, %s32
      %s49 = sphi 0, %s33
      %s53 = sphi 0, %s53
      %s55 = sphi 0, %s53
      %s56 = sphi 0, %s55
      %s70 = sphi 0, %s56
      %s74 = sphi 0, %s74
      %s76 = sphi 0, %s74
      %s77 = sphi 0, %s76
      %s91 = sphi 0, %s77
      %s95 = sphi 0, %s95
      %s97 = sphi 0, %s95
      %s98 = sphi 0, %s97
      %s112 = sphi 0, %s98
      %s116 = sphi 0, %s116
      %s118 = sphi 0, %s116
      %s119 = sphi 0, %s118
      %s133 = sphi 0, %s119
      %s139 = sphi 0, %s141
      %s142 = sphi 0, %s139
      %s143 = sphi 0, %s142
      %s159 = sphi 0, %s143
    $region4: #{tpu_custom_call.1} parent=1 // loop_header_branch
      %22 = sbr.rel (%p20) target = $region8
    $region5: #{tpu_custom_call.1} parent=1 // loop_body
      %s24 = ssub.s32 %s19, 1
      %s25 = ssub.s32 %s19, 2
      %s26 = sadd.s32 %s19, 1
      %s27 = ssub.s32 %s19, %s26
      %p28 = scmp.eq.s32.totalorder %s27, 0
      %s30 = sadd.s32 %s29, 1
      %s31 = scalar_select %p28, %s29, %s30
      %p34 = pneg %p28
      %p35 = scmp.eq.s32.totalorder %s19, 1
      %p36 = por %p34, %p35
      %p37 = scmp.ne.s32.totalorder %s29, %s32
      %p38 = scmp.eq.s32.totalorder %s19, 0
      %p39 = por %p37, %p38
      %p40 = scmp.ne.s32.totalorder %s29, %s32
      %p41 = scmp.eq.s32.totalorder %s24, 1
      %p42 = por %p40, %p41
      %p43 = scmp.ne.s32.totalorder %s32, %s33
      %p44 = scmp.eq.s32.totalorder %s24, 0
      %p45 = por %p43, %p44
      %p46 = scmp.ne.s32.totalorder %s32, %s33
      %p47 = scmp.eq.s32.totalorder %s25, 1
      %p48 = por %p46, %p47
      %p50 = scmp.ne.s32.totalorder %s33, %s49
      %p51 = scmp.eq.s32.totalorder %s25, 0
      %p52 = por %p50, %p51
      %s54 = sadd.s32 %s53, 1
      %p57 = scmp.eq.s32.totalorder %s19, 1
      %p58 = scmp.ne.s32.totalorder %s53, %s55
      %p59 = scmp.eq.s32.totalorder %s19, 0
      %p60 = por %p58, %p59
      %p61 = scmp.ne.s32.totalorder %s53, %s55
      %p62 = scmp.eq.s32.totalorder %s24, 1
      %p63 = por %p61, %p62
      %p64 = scmp.ne.s32.totalorder %s55, %s56
      %p65 = scmp.eq.s32.totalorder %s24, 0
      %p66 = por %p64, %p65
      %p67 = scmp.ne.s32.totalorder %s55, %s56
      %p68 = scmp.eq.s32.totalorder %s25, 1
      %p69 = por %p67, %p68
      %p71 = scmp.ne.s32.totalorder %s56, %s70
      %p72 = scmp.eq.s32.totalorder %s25, 0
      %p73 = por %p71, %p72
      %s75 = sadd.s32 %s74, 1
      %p78 = scmp.eq.s32.totalorder %s19, 1
      %p79 = scmp.ne.s32.totalorder %s74, %s76
      %p80 = scmp.eq.s32.totalorder %s19, 0
      %p81 = por %p79, %p80
      %p82 = scmp.ne.s32.totalorder %s74, %s76
      %p83 = scmp.eq.s32.totalorder %s24, 1
      %p84 = por %p82, %p83
      %p85 = scmp.ne.s32.totalorder %s76, %s77
      %p86 = scmp.eq.s32.totalorder %s24, 0
      %p87 = por %p85, %p86
      %p88 = scmp.ne.s32.totalorder %s76, %s77
      %p89 = scmp.eq.s32.totalorder %s25, 1
      %p90 = por %p88, %p89
      %p92 = scmp.ne.s32.totalorder %s77, %s91
      %p93 = scmp.eq.s32.totalorder %s25, 0
      %p94 = por %p92, %p93
      %s96 = sadd.s32 %s95, 1
      %p99 = scmp.eq.s32.totalorder %s19, 1
      %p100 = scmp.ne.s32.totalorder %s95, %s97
      %p101 = scmp.eq.s32.totalorder %s19, 0
      %p102 = por %p100, %p101
      %p103 = scmp.ne.s32.totalorder %s95, %s97
      %p104 = scmp.eq.s32.totalorder %s24, 1
      %p105 = por %p103, %p104
      %p106 = scmp.ne.s32.totalorder %s97, %s98
      %p107 = scmp.eq.s32.totalorder %s24, 0
      %p108 = por %p106, %p107
      %p109 = scmp.ne.s32.totalorder %s97, %s98
      %p110 = scmp.eq.s32.totalorder %s25, 1
      %p111 = por %p109, %p110
      %p113 = scmp.ne.s32.totalorder %s98, %s112
      %p114 = scmp.eq.s32.totalorder %s25, 0
      %p115 = por %p113, %p114
      %s117 = sadd.s32 %s116, 1
      %p120 = scmp.eq.s32.totalorder %s19, 1
      %p121 = scmp.ne.s32.totalorder %s116, %s118
      %p122 = scmp.eq.s32.totalorder %s19, 0
      %p123 = por %p121, %p122
      %p124 = scmp.ne.s32.totalorder %s116, %s118
      %p125 = scmp.eq.s32.totalorder %s24, 1
      %p126 = por %p124, %p125
      %p127 = scmp.ne.s32.totalorder %s118, %s119
      %p128 = scmp.eq.s32.totalorder %s24, 0
      %p129 = por %p127, %p128
      %p130 = scmp.ne.s32.totalorder %s118, %s119
      %p131 = scmp.eq.s32.totalorder %s25, 1
      %p132 = por %p130, %p131
      %p134 = scmp.ne.s32.totalorder %s119, %s133
      %p135 = scmp.eq.s32.totalorder %s25, 0
      %p136 = por %p134, %p135
      %s137 = ssub.s32 %s19, %s26
      %p138 = scmp.eq.s32.totalorder %s137, 0
      %s140 = sadd.s32 %s139, 1
      %s141 = scalar_select %p138, %s139, %s140
      %p144 = pneg %p138
      %p145 = scmp.eq.s32.totalorder %s19, 1
      %p146 = por %p144, %p145
      %p147 = scmp.ne.s32.totalorder %s139, %s142
      %p148 = scmp.eq.s32.totalorder %s19, 0
      %p149 = por %p147, %p148
      %p150 = scmp.ne.s32.totalorder %s139, %s142
      %p151 = scmp.eq.s32.totalorder %s24, 1
      %p152 = por %p150, %p151
      %p153 = scmp.ne.s32.totalorder %s142, %s143
      %p154 = scmp.eq.s32.totalorder %s24, 0
      %p155 = por %p153, %p154
      %p156 = scmp.ne.s32.totalorder %s142, %s143
      %p157 = scmp.eq.s32.totalorder %s25, 1
      %p158 = por %p156, %p157
      %p160 = scmp.ne.s32.totalorder %s143, %s159
      %p161 = scmp.eq.s32.totalorder %s25, 0
      %p162 = por %p160, %p161
      %p163 = scmp.le.s32.totalorder 1, %s19
      %p164 = scmp.lt.s32.totalorder %s19, 3
      %p165 = pnand %p163, %p164
      %p166 = pneg %p165
      // Predicated region
      $region9: #{tpu_custom_call.1} parent=5 // pred_check
        _
      $region10: #{tpu_custom_call.1} parent=5 // pred_check_branch
        %168 = sbr.rel (%p165) target = $region12
      $region11: #{tpu_custom_call.1} parent=5 // pred_region
        %s169 = ssub.s32 %s19, 1
        // Predicated region
        $region13: #{tpu_custom_call.1} parent=11 // pred_check
          %p170 = pneg %p66
        $region14: #{tpu_custom_call.1} parent=11 // pred_check_branch
          %172 = sbr.rel (%p170) target = $region16
        $region15: #{tpu_custom_call.1} parent=11 // pred_region
          %174 = vsyncadd [#allocation9], 0
          %s175 = sshll.u32 %s1, 4
          %s176 = int_to_ptr.hbm [resolvable:$true] %s175
          %s177 = sshll.u32 [#allocation8], 4
          %s178 = int_to_ptr.vmem [resolvable:$true] %s177
          %183 = dma.hbm_to_vmem [thread:$0]  %s176, 32768, %s178, [#allocation9], 512, 512, 32
        $region16: #{tpu_custom_call.1} parent=11 // pred_fallthru
          _
        // Predicated region
        $region17: #{tpu_custom_call.1} parent=11 // pred_check
          %p184 = pneg %p87
        $region18: #{tpu_custom_call.1} parent=11 // pred_check_branch
          %186 = sbr.rel (%p184) target = $region20
        $region19: #{tpu_custom_call.1} parent=11 // pred_region
          %188 = vsyncadd [#allocation9], 0
          %s190 = sshll.u32 %s2, 4
          %s191 = int_to_ptr.hbm [resolvable:$true] %s190
          %s192 = sshll.u32 [#allocation10], 4
          %s193 = int_to_ptr.vmem [resolvable:$true] %s192
          %195 = dma.hbm_to_vmem [thread:$0]  %s191, 64, %s193, [#allocation9]
        $region20: #{tpu_custom_call.1} parent=11 // pred_fallthru
          _
        // Predicated region
        $region21: #{tpu_custom_call.1} parent=11 // pred_check
          %p196 = pneg %p108
        $region22: #{tpu_custom_call.1} parent=11 // pred_check_branch
          %198 = sbr.rel (%p196) target = $region24
        $region23: #{tpu_custom_call.1} parent=11 // pred_region
          %200 = vsyncadd [#allocation12], 0
          %s201 = sshll.u32 %s3, 4
          %s202 = int_to_ptr.hbm [resolvable:$true] %s201
          %s203 = sshll.u32 [#allocation11], 4
          %s204 = int_to_ptr.vmem [resolvable:$true] %s203
          %209 = dma.hbm_to_vmem [thread:$0]  %s202, 8192, %s204, [#allocation12], 128, 128, 8
        $region24: #{tpu_custom_call.1} parent=11 // pred_fallthru
          _
        // Predicated region
        $region25: #{tpu_custom_call.1} parent=11 // pred_check
          %p210 = pneg %p129
        $region26: #{tpu_custom_call.1} parent=11 // pred_check_branch
          %212 = sbr.rel (%p210) target = $region28
        $region27: #{tpu_custom_call.1} parent=11 // pred_region
          _
        $region28: #{tpu_custom_call.1} parent=11 // pred_fallthru
          _
      $region12: #{tpu_custom_call.1} parent=5 // pred_fallthru
        _
      %p213 = scmp.lt.s32.totalorder %s19, 2
      // Predicated region
      $region29: #{tpu_custom_call.1} parent=5 // pred_check
        %p214 = pneg %p213
      $region30: #{tpu_custom_call.1} parent=5 // pred_check_branch
        %216 = sbr.rel (%p214) target = $region32
      $region31: #{tpu_custom_call.1} parent=5 // pred_region
        // Predicated region
        $region33: #{tpu_custom_call.1} parent=31 // pred_check
          %p217 = pneg %p39
        $region34: #{tpu_custom_call.1} parent=31 // pred_check_branch
          %219 = sbr.rel (%p217) target = $region36
        $region35: #{tpu_custom_call.1} parent=31 // pred_region
          %s220 = sand.u32 %s29, 1
          %s221 = scalar_lea.sflag [#allocation6], %s220
          %s222 = sand.u32 %s29, 1
          %s223 = smul.addr %s222, 1024
          %s224 = scalar_lea.vmem [#allocation5], %s223
          %s225 = smul.u32 32, %s19
          %227 = vsyncadd %s221, 0
          %s228 = smul.addr %s225, 4
          %s229 = smul.addr %s228, 8
          %s230 = scalar_lea.hbm %s0, %s229
          %s231 = sshll.u32 %s230, 4
          %s232 = int_to_ptr.hbm [resolvable:$true] %s231
          %s233 = sshll.u32 %s224, 4
          %s234 = int_to_ptr.vmem [resolvable:$true] %s233
          %239 = dma.hbm_to_vmem [thread:$0]  %s232, 16384, %s234, %s221, 512, 512, 32
        $region36: #{tpu_custom_call.1} parent=31 // pred_fallthru
          _
      $region32: #{tpu_custom_call.1} parent=5 // pred_fallthru
        _
      %p240 = scmp.le.s32.totalorder 1, %s19
      %p241 = scmp.lt.s32.totalorder %s19, 3
      %p242 = pnand %p240, %p241
      %p243 = pneg %p242
      // Predicated region
      $region37: #{tpu_custom_call.1} parent=5 // pred_check
        _
      $region38: #{tpu_custom_call.1} parent=5 // pred_check_branch
        %245 = sbr.rel (%p242) target = $region40
      $region39: #{tpu_custom_call.1} parent=5 // pred_region
        %s246 = ssub.s32 %s19, 1
        %s247 = sand.u32 %s32, 1
        %s248 = scalar_lea.sflag [#allocation6], %s247
        %s249 = sand.u32 %s32, 1
        %s250 = smul.addr %s249, 1024
        %s251 = scalar_lea.vmem [#allocation5], %s250
        // Predicated region
        $region41: #{tpu_custom_call.1} parent=39 // pred_check
          %p252 = pneg %p45
        $region42: #{tpu_custom_call.1} parent=39 // pred_check_branch
          %254 = sbr.rel (%p252) target = $region44
        $region43: #{tpu_custom_call.1} parent=39 // pred_region
          %256 = dma.done %s248, 16384
        $region44: #{tpu_custom_call.1} parent=39 // pred_fallthru
          _
        // Predicated region
        $region45: #{tpu_custom_call.1} parent=39 // pred_check
          %p257 = pneg %p66
        $region46: #{tpu_custom_call.1} parent=39 // pred_check_branch
          %259 = sbr.rel (%p257) target = $region48
        $region47: #{tpu_custom_call.1} parent=39 // pred_region
          %261 = dma.done [#allocation9], 32768
        $region48: #{tpu_custom_call.1} parent=39 // pred_fallthru
          _
        // Predicated region
        $region49: #{tpu_custom_call.1} parent=39 // pred_check
          %p262 = pneg %p87
        $region50: #{tpu_custom_call.1} parent=39 // pred_check_branch
          %264 = sbr.rel (%p262) target = $region52
        $region51: #{tpu_custom_call.1} parent=39 // pred_region
          %266 = dma.done [#allocation9], 64
        $region52: #{tpu_custom_call.1} parent=39 // pred_fallthru
          _
        // Predicated region
        $region53: #{tpu_custom_call.1} parent=39 // pred_check
          %p267 = pneg %p108
        $region54: #{tpu_custom_call.1} parent=39 // pred_check_branch
          %269 = sbr.rel (%p267) target = $region56
        $region55: #{tpu_custom_call.1} parent=39 // pred_region
          %271 = dma.done [#allocation12], 8192
        $region56: #{tpu_custom_call.1} parent=39 // pred_fallthru
          _
        %s272 = sand.u32 %s32, 1
        %s273 = scalar_lea.sflag [#allocation6], %s272
        %s274 = sand.u32 %s32, 1
        %s275 = smul.addr %s274, 1024
        %s276 = scalar_lea.vmem [#allocation5], %s275
        %p277 = pneg %p45
        %p278 = pneg %p42
        %p279 = pneg %p66
        %p280 = pneg %p63
        %p281 = pneg %p87
        %p282 = pneg %p84
        %p283 = pneg %p108
        %p284 = pneg %p105
        %p285 = pneg %p129
        %p286 = pneg %p126
        %p287 = pneg %p155
        %p288 = pneg %p152
        %s289 = sand.u32 %s142, 1
        %s290 = scalar_lea.sflag [#allocation7], %s289
        %s291 = sand.u32 %s142, 1
        %s292 = smul.addr %s291, 256
        %s293 = scalar_lea.vmem [#allocation13], %s292
        %s294 = smul.u32 32, %s24
        %s295 = smul.u32 32, %s24
        %v296 = vld [vmem:[#allocation8] sm:$0xff]
        %v297 = vld [vmem:[#allocation8 + $0x8] sm:$0xff]
        %v298 = vld [vmem:[#allocation8 + $0x10] sm:$0xff]
        %v299 = vld [vmem:[#allocation8 + $0x18] sm:$0xff]
        %v300 = vld [vmem:[#allocation8 + $0x20] sm:$0xff]
        %v301 = vld [vmem:[#allocation8 + $0x28] sm:$0xff]
        %v302 = vld [vmem:[#allocation8 + $0x30] sm:$0xff]
        %v303 = vld [vmem:[#allocation8 + $0x38] sm:$0xff]
        %v304 = vld [vmem:[#allocation8 + $0x40] sm:$0xff]
        %v305 = vld [vmem:[#allocation8 + $0x48] sm:$0xff]
        %v306 = vld [vmem:[#allocation8 + $0x50] sm:$0xff]
        %v307 = vld [vmem:[#allocation8 + $0x58] sm:$0xff]
        %v308 = vld [vmem:[#allocation8 + $0x60] sm:$0xff]
        %v309 = vld [vmem:[#allocation8 + $0x68] sm:$0xff]
        %v310 = vld [vmem:[#allocation8 + $0x70] sm:$0xff]
        %v311 = vld [vmem:[#allocation8 + $0x78] sm:$0xff]
        %v312 = vld [vmem:[#allocation8 + $0x80] sm:$0xff]
        %v313 = vld [vmem:[#allocation8 + $0x88] sm:$0xff]
        %v314 = vld [vmem:[#allocation8 + $0x90] sm:$0xff]
        %v315 = vld [vmem:[#allocation8 + $0x98] sm:$0xff]
        %v316 = vld [vmem:[#allocation8 + $0xa0] sm:$0xff]
        %v317 = vld [vmem:[#allocation8 + $0xa8] sm:$0xff]
        %v318 = vld [vmem:[#allocation8 + $0xb0] sm:$0xff]
        %v319 = vld [vmem:[#allocation8 + $0xb8] sm:$0xff]
        %v320 = vld [vmem:[#allocation8 + $0xc0] sm:$0xff]
        %v321 = vld [vmem:[#allocation8 + $0xc8] sm:$0xff]
        %v322 = vld [vmem:[#allocation8 + $0xd0] sm:$0xff]
        %v323 = vld [vmem:[#allocation8 + $0xd8] sm:$0xff]
        %v324 = vld [vmem:[#allocation8 + $0xe0] sm:$0xff]
        %v325 = vld [vmem:[#allocation8 + $0xe8] sm:$0xff]
        %v326 = vld [vmem:[#allocation8 + $0xf0] sm:$0xff]
        %v327 = vld [vmem:[#allocation8 + $0xf8] sm:$0xff]
        %v328 = vld [vmem:[#allocation8 + $0x100] sm:$0xff]
        %v329 = vld [vmem:[#allocation8 + $0x108] sm:$0xff]
        %v330 = vld [vmem:[#allocation8 + $0x110] sm:$0xff]
        %v331 = vld [vmem:[#allocation8 + $0x118] sm:$0xff]
        %v332 = vld [vmem:[#allocation8 + $0x120] sm:$0xff]
        %v333 = vld [vmem:[#allocation8 + $0x128] sm:$0xff]
        %v334 = vld [vmem:[#allocation8 + $0x130] sm:$0xff]
        %v335 = vld [vmem:[#allocation8 + $0x138] sm:$0xff]
        %v336 = vld [vmem:[#allocation8 + $0x140] sm:$0xff]
        %v337 = vld [vmem:[#allocation8 + $0x148] sm:$0xff]
        %v338 = vld [vmem:[#allocation8 + $0x150] sm:$0xff]
        %v339 = vld [vmem:[#allocation8 + $0x158] sm:$0xff]
        %v340 = vld [vmem:[#allocation8 + $0x160] sm:$0xff]
        %v341 = vld [vmem:[#allocation8 + $0x168] sm:$0xff]
        %v342 = vld [vmem:[#allocation8 + $0x170] sm:$0xff]
        %v343 = vld [vmem:[#allocation8 + $0x178] sm:$0xff]
        %v344 = vld [vmem:[#allocation8 + $0x180] sm:$0xff]
        %v345 = vld [vmem:[#allocation8 + $0x188] sm:$0xff]
        %v346 = vld [vmem:[#allocation8 + $0x190] sm:$0xff]
        %v347 = vld [vmem:[#allocation8 + $0x198] sm:$0xff]
        %v348 = vld [vmem:[#allocation8 + $0x1a0] sm:$0xff]
        %v349 = vld [vmem:[#allocation8 + $0x1a8] sm:$0xff]
        %v350 = vld [vmem:[#allocation8 + $0x1b0] sm:$0xff]
        %v351 = vld [vmem:[#allocation8 + $0x1b8] sm:$0xff]
        %v352 = vld [vmem:[#allocation8 + $0x1c0] sm:$0xff]
        %v353 = vld [vmem:[#allocation8 + $0x1c8] sm:$0xff]
        %v354 = vld [vmem:[#allocation8 + $0x1d0] sm:$0xff]
        %v355 = vld [vmem:[#allocation8 + $0x1d8] sm:$0xff]
        %v356 = vld [vmem:[#allocation8 + $0x1e0] sm:$0xff]
        %v357 = vld [vmem:[#allocation8 + $0x1e8] sm:$0xff]
        %v358 = vld [vmem:[#allocation8 + $0x1f0] sm:$0xff]
        %v359 = vld [vmem:[#allocation8 + $0x1f8] sm:$0xff]
        %v360 = vld [vmem:[#allocation8 + $0x200] sm:$0xff]
        %v361 = vld [vmem:[#allocation8 + $0x208] sm:$0xff]
        %v362 = vld [vmem:[#allocation8 + $0x210] sm:$0xff]
        %v363 = vld [vmem:[#allocation8 + $0x218] sm:$0xff]
        %v364 = vld [vmem:[#allocation8 + $0x220] sm:$0xff]
        %v365 = vld [vmem:[#allocation8 + $0x228] sm:$0xff]
        %v366 = vld [vmem:[#allocation8 + $0x230] sm:$0xff]
        %v367 = vld [vmem:[#allocation8 + $0x238] sm:$0xff]
        %v368 = vld [vmem:[#allocation8 + $0x240] sm:$0xff]
        %v369 = vld [vmem:[#allocation8 + $0x248] sm:$0xff]
        %v370 = vld [vmem:[#allocation8 + $0x250] sm:$0xff]
        %v371 = vld [vmem:[#allocation8 + $0x258] sm:$0xff]
        %v372 = vld [vmem:[#allocation8 + $0x260] sm:$0xff]
        %v373 = vld [vmem:[#allocation8 + $0x268] sm:$0xff]
        %v374 = vld [vmem:[#allocation8 + $0x270] sm:$0xff]
        %v375 = vld [vmem:[#allocation8 + $0x278] sm:$0xff]
        %v376 = vld [vmem:[#allocation8 + $0x280] sm:$0xff]
        %v377 = vld [vmem:[#allocation8 + $0x288] sm:$0xff]
        %v378 = vld [vmem:[#allocation8 + $0x290] sm:$0xff]
        %v379 = vld [vmem:[#allocation8 + $0x298] sm:$0xff]
        %v380 = vld [vmem:[#allocation8 + $0x2a0] sm:$0xff]
        %v381 = vld [vmem:[#allocation8 + $0x2a8] sm:$0xff]
        %v382 = vld [vmem:[#allocation8 + $0x2b0] sm:$0xff]
        %v383 = vld [vmem:[#allocation8 + $0x2b8] sm:$0xff]
        %v384 = vld [vmem:[#allocation8 + $0x2c0] sm:$0xff]
        %v385 = vld [vmem:[#allocation8 + $0x2c8] sm:$0xff]
        %v386 = vld [vmem:[#allocation8 + $0x2d0] sm:$0xff]
        %v387 = vld [vmem:[#allocation8 + $0x2d8] sm:$0xff]
        %v388 = vld [vmem:[#allocation8 + $0x2e0] sm:$0xff]
        %v389 = vld [vmem:[#allocation8 + $0x2e8] sm:$0xff]
        %v390 = vld [vmem:[#allocation8 + $0x2f0] sm:$0xff]
        %v391 = vld [vmem:[#allocation8 + $0x2f8] sm:$0xff]
        %v392 = vld [vmem:[#allocation8 + $0x300] sm:$0xff]
        %v393 = vld [vmem:[#allocation8 + $0x308] sm:$0xff]
        %v394 = vld [vmem:[#allocation8 + $0x310] sm:$0xff]
        %v395 = vld [vmem:[#allocation8 + $0x318] sm:$0xff]
        %v396 = vld [vmem:[#allocation8 + $0x320] sm:$0xff]
        %v397 = vld [vmem:[#allocation8 + $0x328] sm:$0xff]
        %v398 = vld [vmem:[#allocation8 + $0x330] sm:$0xff]
        %v399 = vld [vmem:[#allocation8 + $0x338] sm:$0xff]
        %v400 = vld [vmem:[#allocation8 + $0x340] sm:$0xff]
        %v401 = vld [vmem:[#allocation8 + $0x348] sm:$0xff]
        %v402 = vld [vmem:[#allocation8 + $0x350] sm:$0xff]
        %v403 = vld [vmem:[#allocation8 + $0x358] sm:$0xff]
        %v404 = vld [vmem:[#allocation8 + $0x360] sm:$0xff]
        %v405 = vld [vmem:[#allocation8 + $0x368] sm:$0xff]
        %v406 = vld [vmem:[#allocation8 + $0x370] sm:$0xff]
        %v407 = vld [vmem:[#allocation8 + $0x378] sm:$0xff]
        %v408 = vld [vmem:[#allocation8 + $0x380] sm:$0xff]
        %v409 = vld [vmem:[#allocation8 + $0x388] sm:$0xff]
        %v410 = vld [vmem:[#allocation8 + $0x390] sm:$0xff]
        %v411 = vld [vmem:[#allocation8 + $0x398] sm:$0xff]
        %v412 = vld [vmem:[#allocation8 + $0x3a0] sm:$0xff]
        %v413 = vld [vmem:[#allocation8 + $0x3a8] sm:$0xff]
        %v414 = vld [vmem:[#allocation8 + $0x3b0] sm:$0xff]
        %v415 = vld [vmem:[#allocation8 + $0x3b8] sm:$0xff]
        %v416 = vld [vmem:[#allocation8 + $0x3c0] sm:$0xff]
        %v417 = vld [vmem:[#allocation8 + $0x3c8] sm:$0xff]
        %v418 = vld [vmem:[#allocation8 + $0x3d0] sm:$0xff]
        %v419 = vld [vmem:[#allocation8 + $0x3d8] sm:$0xff]
        %v420 = vld [vmem:[#allocation8 + $0x3e0] sm:$0xff]
        %v421 = vld [vmem:[#allocation8 + $0x3e8] sm:$0xff]
        %v422 = vld [vmem:[#allocation8 + $0x3f0] sm:$0xff]
        %v423 = vld [vmem:[#allocation8 + $0x3f8] sm:$0xff]
        %v424 = vld [vmem:[#allocation8 + $0x400] sm:$0xff]
        %v425 = vld [vmem:[#allocation8 + $0x408] sm:$0xff]
        %v426 = vld [vmem:[#allocation8 + $0x410] sm:$0xff]
        %v427 = vld [vmem:[#allocation8 + $0x418] sm:$0xff]
        %v428 = vld [vmem:[#allocation8 + $0x420] sm:$0xff]
        %v429 = vld [vmem:[#allocation8 + $0x428] sm:$0xff]
        %v430 = vld [vmem:[#allocation8 + $0x430] sm:$0xff]
        %v431 = vld [vmem:[#allocation8 + $0x438] sm:$0xff]
        %v432 = vld [vmem:[#allocation8 + $0x440] sm:$0xff]
        %v433 = vld [vmem:[#allocation8 + $0x448] sm:$0xff]
        %v434 = vld [vmem:[#allocation8 + $0x450] sm:$0xff]
        %v435 = vld [vmem:[#allocation8 + $0x458] sm:$0xff]
        %v436 = vld [vmem:[#allocation8 + $0x460] sm:$0xff]
        %v437 = vld [vmem:[#allocation8 + $0x468] sm:$0xff]
        %v438 = vld [vmem:[#allocation8 + $0x470] sm:$0xff]
        %v439 = vld [vmem:[#allocation8 + $0x478] sm:$0xff]
        %v440 = vld [vmem:[#allocation8 + $0x480] sm:$0xff]
        %v441 = vld [vmem:[#allocation8 + $0x488] sm:$0xff]
        %v442 = vld [vmem:[#allocation8 + $0x490] sm:$0xff]
        %v443 = vld [vmem:[#allocation8 + $0x498] sm:$0xff]
        %v444 = vld [vmem:[#allocation8 + $0x4a0] sm:$0xff]
        %v445 = vld [vmem:[#allocation8 + $0x4a8] sm:$0xff]
        %v446 = vld [vmem:[#allocation8 + $0x4b0] sm:$0xff]
        %v447 = vld [vmem:[#allocation8 + $0x4b8] sm:$0xff]
        %v448 = vld [vmem:[#allocation8 + $0x4c0] sm:$0xff]
        %v449 = vld [vmem:[#allocation8 + $0x4c8] sm:$0xff]
        %v450 = vld [vmem:[#allocation8 + $0x4d0] sm:$0xff]
        %v451 = vld [vmem:[#allocation8 + $0x4d8] sm:$0xff]
        %v452 = vld [vmem:[#allocation8 + $0x4e0] sm:$0xff]
        %v453 = vld [vmem:[#allocation8 + $0x4e8] sm:$0xff]
        %v454 = vld [vmem:[#allocation8 + $0x4f0] sm:$0xff]
        %v455 = vld [vmem:[#allocation8 + $0x4f8] sm:$0xff]
        %v456 = vld [vmem:[#allocation8 + $0x500] sm:$0xff]
        %v457 = vld [vmem:[#allocation8 + $0x508] sm:$0xff]
        %v458 = vld [vmem:[#allocation8 + $0x510] sm:$0xff]
        %v459 = vld [vmem:[#allocation8 + $0x518] sm:$0xff]
        %v460 = vld [vmem:[#allocation8 + $0x520] sm:$0xff]
        %v461 = vld [vmem:[#allocation8 + $0x528] sm:$0xff]
        %v462 = vld [vmem:[#allocation8 + $0x530] sm:$0xff]
        %v463 = vld [vmem:[#allocation8 + $0x538] sm:$0xff]
        %v464 = vld [vmem:[#allocation8 + $0x540] sm:$0xff]
        %v465 = vld [vmem:[#allocation8 + $0x548] sm:$0xff]
        %v466 = vld [vmem:[#allocation8 + $0x550] sm:$0xff]
        %v467 = vld [vmem:[#allocation8 + $0x558] sm:$0xff]
        %v468 = vld [vmem:[#allocation8 + $0x560] sm:$0xff]
        %v469 = vld [vmem:[#allocation8 + $0x568] sm:$0xff]
        %v470 = vld [vmem:[#allocation8 + $0x570] sm:$0xff]
        %v471 = vld [vmem:[#allocation8 + $0x578] sm:$0xff]
        %v472 = vld [vmem:[#allocation8 + $0x580] sm:$0xff]
        %v473 = vld [vmem:[#allocation8 + $0x588] sm:$0xff]
        %v474 = vld [vmem:[#allocation8 + $0x590] sm:$0xff]
        %v475 = vld [vmem:[#allocation8 + $0x598] sm:$0xff]
        %v476 = vld [vmem:[#allocation8 + $0x5a0] sm:$0xff]
        %v477 = vld [vmem:[#allocation8 + $0x5a8] sm:$0xff]
        %v478 = vld [vmem:[#allocation8 + $0x5b0] sm:$0xff]
        %v479 = vld [vmem:[#allocation8 + $0x5b8] sm:$0xff]
        %v480 = vld [vmem:[#allocation8 + $0x5c0] sm:$0xff]
        %v481 = vld [vmem:[#allocation8 + $0x5c8] sm:$0xff]
        %v482 = vld [vmem:[#allocation8 + $0x5d0] sm:$0xff]
        %v483 = vld [vmem:[#allocation8 + $0x5d8] sm:$0xff]
        %v484 = vld [vmem:[#allocation8 + $0x5e0] sm:$0xff]
        %v485 = vld [vmem:[#allocation8 + $0x5e8] sm:$0xff]
        %v486 = vld [vmem:[#allocation8 + $0x5f0] sm:$0xff]
        %v487 = vld [vmem:[#allocation8 + $0x5f8] sm:$0xff]
        %v488 = vld [vmem:[#allocation8 + $0x600] sm:$0xff]
        %v489 = vld [vmem:[#allocation8 + $0x608] sm:$0xff]
        %v490 = vld [vmem:[#allocation8 + $0x610] sm:$0xff]
        %v491 = vld [vmem:[#allocation8 + $0x618] sm:$0xff]
        %v492 = vld [vmem:[#allocation8 + $0x620] sm:$0xff]
        %v493 = vld [vmem:[#allocation8 + $0x628] sm:$0xff]
        %v494 = vld [vmem:[#allocation8 + $0x630] sm:$0xff]
        %v495 = vld [vmem:[#allocation8 + $0x638] sm:$0xff]
        %v496 = vld [vmem:[#allocation8 + $0x640] sm:$0xff]
        %v497 = vld [vmem:[#allocation8 + $0x648] sm:$0xff]
        %v498 = vld [vmem:[#allocation8 + $0x650] sm:$0xff]
        %v499 = vld [vmem:[#allocation8 + $0x658] sm:$0xff]
        %v500 = vld [vmem:[#allocation8 + $0x660] sm:$0xff]
        %v501 = vld [vmem:[#allocation8 + $0x668] sm:$0xff]
        %v502 = vld [vmem:[#allocation8 + $0x670] sm:$0xff]
        %v503 = vld [vmem:[#allocation8 + $0x678] sm:$0xff]
        %v504 = vld [vmem:[#allocation8 + $0x680] sm:$0xff]
        %v505 = vld [vmem:[#allocation8 + $0x688] sm:$0xff]
        %v506 = vld [vmem:[#allocation8 + $0x690] sm:$0xff]
        %v507 = vld [vmem:[#allocation8 + $0x698] sm:$0xff]
        %v508 = vld [vmem:[#allocation8 + $0x6a0] sm:$0xff]
        %v509 = vld [vmem:[#allocation8 + $0x6a8] sm:$0xff]
        %v510 = vld [vmem:[#allocation8 + $0x6b0] sm:$0xff]
        %v511 = vld [vmem:[#allocation8 + $0x6b8] sm:$0xff]
        %v512 = vld [vmem:[#allocation8 + $0x6c0] sm:$0xff]
        %v513 = vld [vmem:[#allocation8 + $0x6c8] sm:$0xff]
        %v514 = vld [vmem:[#allocation8 + $0x6d0] sm:$0xff]
        %v515 = vld [vmem:[#allocation8 + $0x6d8] sm:$0xff]
        %v516 = vld [vmem:[#allocation8 + $0x6e0] sm:$0xff]
        %v517 = vld [vmem:[#allocation8 + $0x6e8] sm:$0xff]
        %v518 = vld [vmem:[#allocation8 + $0x6f0] sm:$0xff]
        %v519 = vld [vmem:[#allocation8 + $0x6f8] sm:$0xff]
        %v520 = vld [vmem:[#allocation8 + $0x700] sm:$0xff]
        %v521 = vld [vmem:[#allocation8 + $0x708] sm:$0xff]
        %v522 = vld [vmem:[#allocation8 + $0x710] sm:$0xff]
        %v523 = vld [vmem:[#allocation8 + $0x718] sm:$0xff]
        %v524 = vld [vmem:[#allocation8 + $0x720] sm:$0xff]
        %v525 = vld [vmem:[#allocation8 + $0x728] sm:$0xff]
        %v526 = vld [vmem:[#allocation8 + $0x730] sm:$0xff]
        %v527 = vld [vmem:[#allocation8 + $0x738] sm:$0xff]
        %v528 = vld [vmem:[#allocation8 + $0x740] sm:$0xff]
        %v529 = vld [vmem:[#allocation8 + $0x748] sm:$0xff]
        %v530 = vld [vmem:[#allocation8 + $0x750] sm:$0xff]
        %v531 = vld [vmem:[#allocation8 + $0x758] sm:$0xff]
        %v532 = vld [vmem:[#allocation8 + $0x760] sm:$0xff]
        %v533 = vld [vmem:[#allocation8 + $0x768] sm:$0xff]
        %v534 = vld [vmem:[#allocation8 + $0x770] sm:$0xff]
        %v535 = vld [vmem:[#allocation8 + $0x778] sm:$0xff]
        %v536 = vld [vmem:[#allocation8 + $0x780] sm:$0xff]
        %v537 = vld [vmem:[#allocation8 + $0x788] sm:$0xff]
        %v538 = vld [vmem:[#allocation8 + $0x790] sm:$0xff]
        %v539 = vld [vmem:[#allocation8 + $0x798] sm:$0xff]
        %v540 = vld [vmem:[#allocation8 + $0x7a0] sm:$0xff]
        %v541 = vld [vmem:[#allocation8 + $0x7a8] sm:$0xff]
        %v542 = vld [vmem:[#allocation8 + $0x7b0] sm:$0xff]
        %v543 = vld [vmem:[#allocation8 + $0x7b8] sm:$0xff]
        %v544 = vld [vmem:[#allocation8 + $0x7c0] sm:$0xff]
        %v545 = vld [vmem:[#allocation8 + $0x7c8] sm:$0xff]
        %v546 = vld [vmem:[#allocation8 + $0x7d0] sm:$0xff]
        %v547 = vld [vmem:[#allocation8 + $0x7d8] sm:$0xff]
        %v548 = vld [vmem:[#allocation8 + $0x7e0] sm:$0xff]
        %v549 = vld [vmem:[#allocation8 + $0x7e8] sm:$0xff]
        %v550 = vld [vmem:[#allocation8 + $0x7f0] sm:$0xff]
        %v551 = vld [vmem:[#allocation8 + $0x7f8] sm:$0xff]
        %v552 = vpack.c.bf16 %v297, %v296
        %v553 = vpack.c.bf16 %v299, %v298
        %v554 = vpack.c.bf16 %v301, %v300
        %v555 = vpack.c.bf16 %v303, %v302
        %v556 = vpack.c.bf16 %v305, %v304
        %v557 = vpack.c.bf16 %v307, %v306
        %v558 = vpack.c.bf16 %v309, %v308
        %v559 = vpack.c.bf16 %v311, %v310
        %v560 = vpack.c.bf16 %v313, %v312
        %v561 = vpack.c.bf16 %v315, %v314
        %v562 = vpack.c.bf16 %v317, %v316
        %v563 = vpack.c.bf16 %v319, %v318
        %v564 = vpack.c.bf16 %v321, %v320
        %v565 = vpack.c.bf16 %v323, %v322
        %v566 = vpack.c.bf16 %v325, %v324
        %v567 = vpack.c.bf16 %v327, %v326
        %v568 = vpack.c.bf16 %v329, %v328
        %v569 = vpack.c.bf16 %v331, %v330
        %v570 = vpack.c.bf16 %v333, %v332
        %v571 = vpack.c.bf16 %v335, %v334
        %v572 = vpack.c.bf16 %v337, %v336
        %v573 = vpack.c.bf16 %v339, %v338
        %v574 = vpack.c.bf16 %v341, %v340
        %v575 = vpack.c.bf16 %v343, %v342
        %v576 = vpack.c.bf16 %v345, %v344
        %v577 = vpack.c.bf16 %v347, %v346
        %v578 = vpack.c.bf16 %v349, %v348
        %v579 = vpack.c.bf16 %v351, %v350
        %v580 = vpack.c.bf16 %v353, %v352
        %v581 = vpack.c.bf16 %v355, %v354
        %v582 = vpack.c.bf16 %v357, %v356
        %v583 = vpack.c.bf16 %v359, %v358
        %v584 = vpack.c.bf16 %v361, %v360
        %v585 = vpack.c.bf16 %v363, %v362
        %v586 = vpack.c.bf16 %v365, %v364
        %v587 = vpack.c.bf16 %v367, %v366
        %v588 = vpack.c.bf16 %v369, %v368
        %v589 = vpack.c.bf16 %v371, %v370
        %v590 = vpack.c.bf16 %v373, %v372
        %v591 = vpack.c.bf16 %v375, %v374
        %v592 = vpack.c.bf16 %v377, %v376
        %v593 = vpack.c.bf16 %v379, %v378
        %v594 = vpack.c.bf16 %v381, %v380
        %v595 = vpack.c.bf16 %v383, %v382
        %v596 = vpack.c.bf16 %v385, %v384
        %v597 = vpack.c.bf16 %v387, %v386
        %v598 = vpack.c.bf16 %v389, %v388
        %v599 = vpack.c.bf16 %v391, %v390
        %v600 = vpack.c.bf16 %v393, %v392
        %v601 = vpack.c.bf16 %v395, %v394
        %v602 = vpack.c.bf16 %v397, %v396
        %v603 = vpack.c.bf16 %v399, %v398
        %v604 = vpack.c.bf16 %v401, %v400
        %v605 = vpack.c.bf16 %v403, %v402
        %v606 = vpack.c.bf16 %v405, %v404
        %v607 = vpack.c.bf16 %v407, %v406
        %v608 = vpack.c.bf16 %v409, %v408
        %v609 = vpack.c.bf16 %v411, %v410
        %v610 = vpack.c.bf16 %v413, %v412
        %v611 = vpack.c.bf16 %v415, %v414
        %v612 = vpack.c.bf16 %v417, %v416
        %v613 = vpack.c.bf16 %v419, %v418
        %v614 = vpack.c.bf16 %v421, %v420
        %v615 = vpack.c.bf16 %v423, %v422
        %v616 = vpack.c.bf16 %v425, %v424
        %v617 = vpack.c.bf16 %v427, %v426
        %v618 = vpack.c.bf16 %v429, %v428
        %v619 = vpack.c.bf16 %v431, %v430
        %v620 = vpack.c.bf16 %v433, %v432
        %v621 = vpack.c.bf16 %v435, %v434
        %v622 = vpack.c.bf16 %v437, %v436
        %v623 = vpack.c.bf16 %v439, %v438
        %v624 = vpack.c.bf16 %v441, %v440
        %v625 = vpack.c.bf16 %v443, %v442
        %v626 = vpack.c.bf16 %v445, %v444
        %v627 = vpack.c.bf16 %v447, %v446
        %v628 = vpack.c.bf16 %v449, %v448
        %v629 = vpack.c.bf16 %v451, %v450
        %v630 = vpack.c.bf16 %v453, %v452
        %v631 = vpack.c.bf16 %v455, %v454
        %v632 = vpack.c.bf16 %v457, %v456
        %v633 = vpack.c.bf16 %v459, %v458
        %v634 = vpack.c.bf16 %v461, %v460
        %v635 = vpack.c.bf16 %v463, %v462
        %v636 = vpack.c.bf16 %v465, %v464
        %v637 = vpack.c.bf16 %v467, %v466
        %v638 = vpack.c.bf16 %v469, %v468
        %v639 = vpack.c.bf16 %v471, %v470
        %v640 = vpack.c.bf16 %v473, %v472
        %v641 = vpack.c.bf16 %v475, %v474
        %v642 = vpack.c.bf16 %v477, %v476
        %v643 = vpack.c.bf16 %v479, %v478
        %v644 = vpack.c.bf16 %v481, %v480
        %v645 = vpack.c.bf16 %v483, %v482
        %v646 = vpack.c.bf16 %v485, %v484
        %v647 = vpack.c.bf16 %v487, %v486
        %v648 = vpack.c.bf16 %v489, %v488
        %v649 = vpack.c.bf16 %v491, %v490
        %v650 = vpack.c.bf16 %v493, %v492
        %v651 = vpack.c.bf16 %v495, %v494
        %v652 = vpack.c.bf16 %v497, %v496
        %v653 = vpack.c.bf16 %v499, %v498
        %v654 = vpack.c.bf16 %v501, %v500
        %v655 = vpack.c.bf16 %v503, %v502
        %v656 = vpack.c.bf16 %v505, %v504
        %v657 = vpack.c.bf16 %v507, %v506
        %v658 = vpack.c.bf16 %v509, %v508
        %v659 = vpack.c.bf16 %v511, %v510
        %v660 = vpack.c.bf16 %v513, %v512
        %v661 = vpack.c.bf16 %v515, %v514
        %v662 = vpack.c.bf16 %v517, %v516
        %v663 = vpack.c.bf16 %v519, %v518
        %v664 = vpack.c.bf16 %v521, %v520
        %v665 = vpack.c.bf16 %v523, %v522
        %v666 = vpack.c.bf16 %v525, %v524
        %v667 = vpack.c.bf16 %v527, %v526
        %v668 = vpack.c.bf16 %v529, %v528
        %v669 = vpack.c.bf16 %v531, %v530
        %v670 = vpack.c.bf16 %v533, %v532
        %v671 = vpack.c.bf16 %v535, %v534
        %v672 = vpack.c.bf16 %v537, %v536
        %v673 = vpack.c.bf16 %v539, %v538
        %v674 = vpack.c.bf16 %v541, %v540
        %v675 = vpack.c.bf16 %v543, %v542
        %v676 = vpack.c.bf16 %v545, %v544
        %v677 = vpack.c.bf16 %v547, %v546
        %v678 = vpack.c.bf16 %v549, %v548
        %v679 = vpack.c.bf16 %v551, %v550
        %680 = vst [vmem:[#allocation3] sm:$0xff] %v552
        %681 = vst [vmem:[#allocation3 + $0x8] sm:$0xff] %v553
        %682 = vst [vmem:[#allocation3 + $0x10] sm:$0xff] %v554
        %683 = vst [vmem:[#allocation3 + $0x18] sm:$0xff] %v555
        %684 = vst [vmem:[#allocation3 + $0x20] sm:$0xff] %v556
        %685 = vst [vmem:[#allocation3 + $0x28] sm:$0xff] %v557
        %686 = vst [vmem:[#allocation3 + $0x30] sm:$0xff] %v558
        %687 = vst [vmem:[#allocation3 + $0x38] sm:$0xff] %v559
        %688 = vst [vmem:[#allocation3 + $0x40] sm:$0xff] %v560
        %689 = vst [vmem:[#allocation3 + $0x48] sm:$0xff] %v561
        %690 = vst [vmem:[#allocation3 + $0x50] sm:$0xff] %v562
        %691 = vst [vmem:[#allocation3 + $0x58] sm:$0xff] %v563
        %692 = vst [vmem:[#allocation3 + $0x60] sm:$0xff] %v564
        %693 = vst [vmem:[#allocation3 + $0x68] sm:$0xff] %v565
        %694 = vst [vmem:[#allocation3 + $0x70] sm:$0xff] %v566
        %695 = vst [vmem:[#allocation3 + $0x78] sm:$0xff] %v567
        %696 = vst [vmem:[#allocation3 + $0x80] sm:$0xff] %v568
        %697 = vst [vmem:[#allocation3 + $0x88] sm:$0xff] %v569
        %698 = vst [vmem:[#allocation3 + $0x90] sm:$0xff] %v570
        %699 = vst [vmem:[#allocation3 + $0x98] sm:$0xff] %v571
        %700 = vst [vmem:[#allocation3 + $0xa0] sm:$0xff] %v572
        %701 = vst [vmem:[#allocation3 + $0xa8] sm:$0xff] %v573
        %702 = vst [vmem:[#allocation3 + $0xb0] sm:$0xff] %v574
        %703 = vst [vmem:[#allocation3 + $0xb8] sm:$0xff] %v575
        %704 = vst [vmem:[#allocation3 + $0xc0] sm:$0xff] %v576
        %705 = vst [vmem:[#allocation3 + $0xc8] sm:$0xff] %v577
        %706 = vst [vmem:[#allocation3 + $0xd0] sm:$0xff] %v578
        %707 = vst [vmem:[#allocation3 + $0xd8] sm:$0xff] %v579
        %708 = vst [vmem:[#allocation3 + $0xe0] sm:$0xff] %v580
        %709 = vst [vmem:[#allocation3 + $0xe8] sm:$0xff] %v581
        %710 = vst [vmem:[#allocation3 + $0xf0] sm:$0xff] %v582
        %711 = vst [vmem:[#allocation3 + $0xf8] sm:$0xff] %v583
        %712 = vst [vmem:[#allocation3 + $0x100] sm:$0xff] %v584
        %713 = vst [vmem:[#allocation3 + $0x108] sm:$0xff] %v585
        %714 = vst [vmem:[#allocation3 + $0x110] sm:$0xff] %v586
        %715 = vst [vmem:[#allocation3 + $0x118] sm:$0xff] %v587
        %716 = vst [vmem:[#allocation3 + $0x120] sm:$0xff] %v588
        %717 = vst [vmem:[#allocation3 + $0x128] sm:$0xff] %v589
        %718 = vst [vmem:[#allocation3 + $0x130] sm:$0xff] %v590
        %719 = vst [vmem:[#allocation3 + $0x138] sm:$0xff] %v591
        %720 = vst [vmem:[#allocation3 + $0x140] sm:$0xff] %v592
        %721 = vst [vmem:[#allocation3 + $0x148] sm:$0xff] %v593
        %722 = vst [vmem:[#allocation3 + $0x150] sm:$0xff] %v594
        %723 = vst [vmem:[#allocation3 + $0x158] sm:$0xff] %v595
        %724 = vst [vmem:[#allocation3 + $0x160] sm:$0xff] %v596
        %725 = vst [vmem:[#allocation3 + $0x168] sm:$0xff] %v597
        %726 = vst [vmem:[#allocation3 + $0x170] sm:$0xff] %v598
        %727 = vst [vmem:[#allocation3 + $0x178] sm:$0xff] %v599
        %728 = vst [vmem:[#allocation3 + $0x180] sm:$0xff] %v600
        %729 = vst [vmem:[#allocation3 + $0x188] sm:$0xff] %v601
        %730 = vst [vmem:[#allocation3 + $0x190] sm:$0xff] %v602
        %731 = vst [vmem:[#allocation3 + $0x198] sm:$0xff] %v603
        %732 = vst [vmem:[#allocation3 + $0x1a0] sm:$0xff] %v604
        %733 = vst [vmem:[#allocation3 + $0x1a8] sm:$0xff] %v605
        %734 = vst [vmem:[#allocation3 + $0x1b0] sm:$0xff] %v606
        %735 = vst [vmem:[#allocation3 + $0x1b8] sm:$0xff] %v607
        %736 = vst [vmem:[#allocation3 + $0x1c0] sm:$0xff] %v608
        %737 = vst [vmem:[#allocation3 + $0x1c8] sm:$0xff] %v609
        %738 = vst [vmem:[#allocation3 + $0x1d0] sm:$0xff] %v610
        %739 = vst [vmem:[#allocation3 + $0x1d8] sm:$0xff] %v611
        %740 = vst [vmem:[#allocation3 + $0x1e0] sm:$0xff] %v612
        %741 = vst [vmem:[#allocation3 + $0x1e8] sm:$0xff] %v613
        %742 = vst [vmem:[#allocation3 + $0x1f0] sm:$0xff] %v614
        %743 = vst [vmem:[#allocation3 + $0x1f8] sm:$0xff] %v615
        %744 = vst [vmem:[#allocation3 + $0x200] sm:$0xff] %v616
        %745 = vst [vmem:[#allocation3 + $0x208] sm:$0xff] %v617
        %746 = vst [vmem:[#allocation3 + $0x210] sm:$0xff] %v618
        %747 = vst [vmem:[#allocation3 + $0x218] sm:$0xff] %v619
        %748 = vst [vmem:[#allocation3 + $0x220] sm:$0xff] %v620
        %749 = vst [vmem:[#allocation3 + $0x228] sm:$0xff] %v621
        %750 = vst [vmem:[#allocation3 + $0x230] sm:$0xff] %v622
        %751 = vst [vmem:[#allocation3 + $0x238] sm:$0xff] %v623
        %752 = vst [vmem:[#allocation3 + $0x240] sm:$0xff] %v624
        %753 = vst [vmem:[#allocation3 + $0x248] sm:$0xff] %v625
        %754 = vst [vmem:[#allocation3 + $0x250] sm:$0xff] %v626
        %755 = vst [vmem:[#allocation3 + $0x258] sm:$0xff] %v627
        %756 = vst [vmem:[#allocation3 + $0x260] sm:$0xff] %v628
        %757 = vst [vmem:[#allocation3 + $0x268] sm:$0xff] %v629
        %758 = vst [vmem:[#allocation3 + $0x270] sm:$0xff] %v630
        %759 = vst [vmem:[#allocation3 + $0x278] sm:$0xff] %v631
        %760 = vst [vmem:[#allocation3 + $0x280] sm:$0xff] %v632
        %761 = vst [vmem:[#allocation3 + $0x288] sm:$0xff] %v633
        %762 = vst [vmem:[#allocation3 + $0x290] sm:$0xff] %v634
        %763 = vst [vmem:[#allocation3 + $0x298] sm:$0xff] %v635
        %764 = vst [vmem:[#allocation3 + $0x2a0] sm:$0xff] %v636
        %765 = vst [vmem:[#allocation3 + $0x2a8] sm:$0xff] %v637
        %766 = vst [vmem:[#allocation3 + $0x2b0] sm:$0xff] %v638
        %767 = vst [vmem:[#allocation3 + $0x2b8] sm:$0xff] %v639
        %768 = vst [vmem:[#allocation3 + $0x2c0] sm:$0xff] %v640
        %769 = vst [vmem:[#allocation3 + $0x2c8] sm:$0xff] %v641
        %770 = vst [vmem:[#allocation3 + $0x2d0] sm:$0xff] %v642
        %771 = vst [vmem:[#allocation3 + $0x2d8] sm:$0xff] %v643
        %772 = vst [vmem:[#allocation3 + $0x2e0] sm:$0xff] %v644
        %773 = vst [vmem:[#allocation3 + $0x2e8] sm:$0xff] %v645
        %774 = vst [vmem:[#allocation3 + $0x2f0] sm:$0xff] %v646
        %775 = vst [vmem:[#allocation3 + $0x2f8] sm:$0xff] %v647
        %776 = vst [vmem:[#allocation3 + $0x300] sm:$0xff] %v648
        %777 = vst [vmem:[#allocation3 + $0x308] sm:$0xff] %v649
        %778 = vst [vmem:[#allocation3 + $0x310] sm:$0xff] %v650
        %779 = vst [vmem:[#allocation3 + $0x318] sm:$0xff] %v651
        %780 = vst [vmem:[#allocation3 + $0x320] sm:$0xff] %v652
        %781 = vst [vmem:[#allocation3 + $0x328] sm:$0xff] %v653
        %782 = vst [vmem:[#allocation3 + $0x330] sm:$0xff] %v654
        %783 = vst [vmem:[#allocation3 + $0x338] sm:$0xff] %v655
        %784 = vst [vmem:[#allocation3 + $0x340] sm:$0xff] %v656
        %785 = vst [vmem:[#allocation3 + $0x348] sm:$0xff] %v657
        %786 = vst [vmem:[#allocation3 + $0x350] sm:$0xff] %v658
        %787 = vst [vmem:[#allocation3 + $0x358] sm:$0xff] %v659
        %788 = vst [vmem:[#allocation3 + $0x360] sm:$0xff] %v660
        %789 = vst [vmem:[#allocation3 + $0x368] sm:$0xff] %v661
        %790 = vst [vmem:[#allocation3 + $0x370] sm:$0xff] %v662
        %791 = vst [vmem:[#allocation3 + $0x378] sm:$0xff] %v663
        %792 = vst [vmem:[#allocation3 + $0x380] sm:$0xff] %v664
        %793 = vst [vmem:[#allocation3 + $0x388] sm:$0xff] %v665
        %794 = vst [vmem:[#allocation3 + $0x390] sm:$0xff] %v666
        %795 = vst [vmem:[#allocation3 + $0x398] sm:$0xff] %v667
        %796 = vst [vmem:[#allocation3 + $0x3a0] sm:$0xff] %v668
        %797 = vst [vmem:[#allocation3 + $0x3a8] sm:$0xff] %v669
        %798 = vst [vmem:[#allocation3 + $0x3b0] sm:$0xff] %v670
        %799 = vst [vmem:[#allocation3 + $0x3b8] sm:$0xff] %v671
        %800 = vst [vmem:[#allocation3 + $0x3c0] sm:$0xff] %v672
        %801 = vst [vmem:[#allocation3 + $0x3c8] sm:$0xff] %v673
        %802 = vst [vmem:[#allocation3 + $0x3d0] sm:$0xff] %v674
        %803 = vst [vmem:[#allocation3 + $0x3d8] sm:$0xff] %v675
        %804 = vst [vmem:[#allocation3 + $0x3e0] sm:$0xff] %v676
        %805 = vst [vmem:[#allocation3 + $0x3e8] sm:$0xff] %v677
        %806 = vst [vmem:[#allocation3 + $0x3f0] sm:$0xff] %v678
        %807 = vst [vmem:[#allocation3 + $0x3f8] sm:$0xff] %v679
        %v808 = vld [vmem:[#allocation11] sm:$0xff]
        %v809 = vld [vmem:[#allocation11 + $0x8] sm:$0xff]
        %v810 = vld [vmem:[#allocation11 + $0x10] sm:$0xff]
        %v811 = vld [vmem:[#allocation11 + $0x18] sm:$0xff]
        %v812 = vld [vmem:[#allocation11 + $0x20] sm:$0xff]
        %v813 = vld [vmem:[#allocation11 + $0x28] sm:$0xff]
        %v814 = vld [vmem:[#allocation11 + $0x30] sm:$0xff]
        %v815 = vld [vmem:[#allocation11 + $0x38] sm:$0xff]
        %v816 = vld [vmem:[#allocation11 + $0x40] sm:$0xff]
        %v817 = vld [vmem:[#allocation11 + $0x48] sm:$0xff]
        %v818 = vld [vmem:[#allocation11 + $0x50] sm:$0xff]
        %v819 = vld [vmem:[#allocation11 + $0x58] sm:$0xff]
        %v820 = vld [vmem:[#allocation11 + $0x60] sm:$0xff]
        %v821 = vld [vmem:[#allocation11 + $0x68] sm:$0xff]
        %v822 = vld [vmem:[#allocation11 + $0x70] sm:$0xff]
        %v823 = vld [vmem:[#allocation11 + $0x78] sm:$0xff]
        %v824 = vld [vmem:[#allocation11 + $0x80] sm:$0xff]
        %v825 = vld [vmem:[#allocation11 + $0x88] sm:$0xff]
        %v826 = vld [vmem:[#allocation11 + $0x90] sm:$0xff]
        %v827 = vld [vmem:[#allocation11 + $0x98] sm:$0xff]
        %v828 = vld [vmem:[#allocation11 + $0xa0] sm:$0xff]
        %v829 = vld [vmem:[#allocation11 + $0xa8] sm:$0xff]
        %v830 = vld [vmem:[#allocation11 + $0xb0] sm:$0xff]
        %v831 = vld [vmem:[#allocation11 + $0xb8] sm:$0xff]
        %v832 = vld [vmem:[#allocation11 + $0xc0] sm:$0xff]
        %v833 = vld [vmem:[#allocation11 + $0xc8] sm:$0xff]
        %v834 = vld [vmem:[#allocation11 + $0xd0] sm:$0xff]
        %v835 = vld [vmem:[#allocation11 + $0xd8] sm:$0xff]
        %v836 = vld [vmem:[#allocation11 + $0xe0] sm:$0xff]
        %v837 = vld [vmem:[#allocation11 + $0xe8] sm:$0xff]
        %v838 = vld [vmem:[#allocation11 + $0xf0] sm:$0xff]
        %v839 = vld [vmem:[#allocation11 + $0xf8] sm:$0xff]
        %v840 = vld [vmem:[#allocation11 + $0x100] sm:$0xff]
        %v841 = vld [vmem:[#allocation11 + $0x108] sm:$0xff]
        %v842 = vld [vmem:[#allocation11 + $0x110] sm:$0xff]
        %v843 = vld [vmem:[#allocation11 + $0x118] sm:$0xff]
        %v844 = vld [vmem:[#allocation11 + $0x120] sm:$0xff]
        %v845 = vld [vmem:[#allocation11 + $0x128] sm:$0xff]
        %v846 = vld [vmem:[#allocation11 + $0x130] sm:$0xff]
        %v847 = vld [vmem:[#allocation11 + $0x138] sm:$0xff]
        %v848 = vld [vmem:[#allocation11 + $0x140] sm:$0xff]
        %v849 = vld [vmem:[#allocation11 + $0x148] sm:$0xff]
        %v850 = vld [vmem:[#allocation11 + $0x150] sm:$0xff]
        %v851 = vld [vmem:[#allocation11 + $0x158] sm:$0xff]
        %v852 = vld [vmem:[#allocation11 + $0x160] sm:$0xff]
        %v853 = vld [vmem:[#allocation11 + $0x168] sm:$0xff]
        %v854 = vld [vmem:[#allocation11 + $0x170] sm:$0xff]
        %v855 = vld [vmem:[#allocation11 + $0x178] sm:$0xff]
        %v856 = vld [vmem:[#allocation11 + $0x180] sm:$0xff]
        %v857 = vld [vmem:[#allocation11 + $0x188] sm:$0xff]
        %v858 = vld [vmem:[#allocation11 + $0x190] sm:$0xff]
        %v859 = vld [vmem:[#allocation11 + $0x198] sm:$0xff]
        %v860 = vld [vmem:[#allocation11 + $0x1a0] sm:$0xff]
        %v861 = vld [vmem:[#allocation11 + $0x1a8] sm:$0xff]
        %v862 = vld [vmem:[#allocation11 + $0x1b0] sm:$0xff]
        %v863 = vld [vmem:[#allocation11 + $0x1b8] sm:$0xff]
        %v864 = vld [vmem:[#allocation11 + $0x1c0] sm:$0xff]
        %v865 = vld [vmem:[#allocation11 + $0x1c8] sm:$0xff]
        %v866 = vld [vmem:[#allocation11 + $0x1d0] sm:$0xff]
        %v867 = vld [vmem:[#allocation11 + $0x1d8] sm:$0xff]
        %v868 = vld [vmem:[#allocation11 + $0x1e0] sm:$0xff]
        %v869 = vld [vmem:[#allocation11 + $0x1e8] sm:$0xff]
        %v870 = vld [vmem:[#allocation11 + $0x1f0] sm:$0xff]
        %v871 = vld [vmem:[#allocation11 + $0x1f8] sm:$0xff]
        %v872 = vpack.c.bf16 %v808, %v808
        %v873 = vpack.c.bf16 %v809, %v809
        %v874 = vpack.c.bf16 %v810, %v810
        %v875 = vpack.c.bf16 %v811, %v811
        %v876 = vpack.c.bf16 %v812, %v812
        %v877 = vpack.c.bf16 %v813, %v813
        %v878 = vpack.c.bf16 %v814, %v814
        %v879 = vpack.c.bf16 %v815, %v815
        %v880 = vpack.c.bf16 %v816, %v816
        %v881 = vpack.c.bf16 %v817, %v817
        %v882 = vpack.c.bf16 %v818, %v818
        %v883 = vpack.c.bf16 %v819, %v819
        %v884 = vpack.c.bf16 %v820, %v820
        %v885 = vpack.c.bf16 %v821, %v821
        %v886 = vpack.c.bf16 %v822, %v822
        %v887 = vpack.c.bf16 %v823, %v823
        %v888 = vpack.c.bf16 %v824, %v824
        %v889 = vpack.c.bf16 %v825, %v825
        %v890 = vpack.c.bf16 %v826, %v826
        %v891 = vpack.c.bf16 %v827, %v827
        %v892 = vpack.c.bf16 %v828, %v828
        %v893 = vpack.c.bf16 %v829, %v829
        %v894 = vpack.c.bf16 %v830, %v830
        %v895 = vpack.c.bf16 %v831, %v831
        %v896 = vpack.c.bf16 %v832, %v832
        %v897 = vpack.c.bf16 %v833, %v833
        %v898 = vpack.c.bf16 %v834, %v834
        %v899 = vpack.c.bf16 %v835, %v835
        %v900 = vpack.c.bf16 %v836, %v836
        %v901 = vpack.c.bf16 %v837, %v837
        %v902 = vpack.c.bf16 %v838, %v838
        %v903 = vpack.c.bf16 %v839, %v839
        %v904 = vpack.c.bf16 %v840, %v840
        %v905 = vpack.c.bf16 %v841, %v841
        %v906 = vpack.c.bf16 %v842, %v842
        %v907 = vpack.c.bf16 %v843, %v843
        %v908 = vpack.c.bf16 %v844, %v844
        %v909 = vpack.c.bf16 %v845, %v845
        %v910 = vpack.c.bf16 %v846, %v846
        %v911 = vpack.c.bf16 %v847, %v847
        %v912 = vpack.c.bf16 %v848, %v848
        %v913 = vpack.c.bf16 %v849, %v849
        %v914 = vpack.c.bf16 %v850, %v850
        %v915 = vpack.c.bf16 %v851, %v851
        %v916 = vpack.c.bf16 %v852, %v852
        %v917 = vpack.c.bf16 %v853, %v853
        %v918 = vpack.c.bf16 %v854, %v854
        %v919 = vpack.c.bf16 %v855, %v855
        %v920 = vpack.c.bf16 %v856, %v856
        %v921 = vpack.c.bf16 %v857, %v857
        %v922 = vpack.c.bf16 %v858, %v858
        %v923 = vpack.c.bf16 %v859, %v859
        %v924 = vpack.c.bf16 %v860, %v860
        %v925 = vpack.c.bf16 %v861, %v861
        %v926 = vpack.c.bf16 %v862, %v862
        %v927 = vpack.c.bf16 %v863, %v863
        %v928 = vpack.c.bf16 %v864, %v864
        %v929 = vpack.c.bf16 %v865, %v865
        %v930 = vpack.c.bf16 %v866, %v866
        %v931 = vpack.c.bf16 %v867, %v867
        %v932 = vpack.c.bf16 %v868, %v868
        %v933 = vpack.c.bf16 %v869, %v869
        %v934 = vpack.c.bf16 %v870, %v870
        %v935 = vpack.c.bf16 %v871, %v871
        %936 = vst [vmem:[#allocation4] sm:$0xf] %v872
        %937 = vst [vmem:[#allocation4 + $0x4] sm:$0xf] %v873
        %938 = vst [vmem:[#allocation4 + $0x8] sm:$0xf] %v874
        %939 = vst [vmem:[#allocation4 + $0xc] sm:$0xf] %v875
        %940 = vst [vmem:[#allocation4 + $0x10] sm:$0xf] %v876
        %941 = vst [vmem:[#allocation4 + $0x14] sm:$0xf] %v877
        %942 = vst [vmem:[#allocation4 + $0x18] sm:$0xf] %v878
        %943 = vst [vmem:[#allocation4 + $0x1c] sm:$0xf] %v879
        %944 = vst [vmem:[#allocation4 + $0x20] sm:$0xf] %v880
        %945 = vst [vmem:[#allocation4 + $0x24] sm:$0xf] %v881
        %946 = vst [vmem:[#allocation4 + $0x28] sm:$0xf] %v882
        %947 = vst [vmem:[#allocation4 + $0x2c] sm:$0xf] %v883
        %948 = vst [vmem:[#allocation4 + $0x30] sm:$0xf] %v884
        %949 = vst [vmem:[#allocation4 + $0x34] sm:$0xf] %v885
        %950 = vst [vmem:[#allocation4 + $0x38] sm:$0xf] %v886
        %951 = vst [vmem:[#allocation4 + $0x3c] sm:$0xf] %v887
        %952 = vst [vmem:[#allocation4 + $0x40] sm:$0xf] %v888
        %953 = vst [vmem:[#allocation4 + $0x44] sm:$0xf] %v889
        %954 = vst [vmem:[#allocation4 + $0x48] sm:$0xf] %v890
        %955 = vst [vmem:[#allocation4 + $0x4c] sm:$0xf] %v891
        %956 = vst [vmem:[#allocation4 + $0x50] sm:$0xf] %v892
        %957 = vst [vmem:[#allocation4 + $0x54] sm:$0xf] %v893
        %958 = vst [vmem:[#allocation4 + $0x58] sm:$0xf] %v894
        %959 = vst [vmem:[#allocation4 + $0x5c] sm:$0xf] %v895
        %960 = vst [vmem:[#allocation4 + $0x60] sm:$0xf] %v896
        %961 = vst [vmem:[#allocation4 + $0x64] sm:$0xf] %v897
        %962 = vst [vmem:[#allocation4 + $0x68] sm:$0xf] %v898
        %963 = vst [vmem:[#allocation4 + $0x6c] sm:$0xf] %v899
        %964 = vst [vmem:[#allocation4 + $0x70] sm:$0xf] %v900
        %965 = vst [vmem:[#allocation4 + $0x74] sm:$0xf] %v901
        %966 = vst [vmem:[#allocation4 + $0x78] sm:$0xf] %v902
        %967 = vst [vmem:[#allocation4 + $0x7c] sm:$0xf] %v903
        %968 = vst [vmem:[#allocation4 + $0x80] sm:$0xf] %v904
        %969 = vst [vmem:[#allocation4 + $0x84] sm:$0xf] %v905
        %970 = vst [vmem:[#allocation4 + $0x88] sm:$0xf] %v906
        %971 = vst [vmem:[#allocation4 + $0x8c] sm:$0xf] %v907
        %972 = vst [vmem:[#allocation4 + $0x90] sm:$0xf] %v908
        %973 = vst [vmem:[#allocation4 + $0x94] sm:$0xf] %v909
        %974 = vst [vmem:[#allocation4 + $0x98] sm:$0xf] %v910
        %975 = vst [vmem:[#allocation4 + $0x9c] sm:$0xf] %v911
        %976 = vst [vmem:[#allocation4 + $0xa0] sm:$0xf] %v912
        %977 = vst [vmem:[#allocation4 + $0xa4] sm:$0xf] %v913
        %978 = vst [vmem:[#allocation4 + $0xa8] sm:$0xf] %v914
        %979 = vst [vmem:[#allocation4 + $0xac] sm:$0xf] %v915
        %980 = vst [vmem:[#allocation4 + $0xb0] sm:$0xf] %v916
        %981 = vst [vmem:[#allocation4 + $0xb4] sm:$0xf] %v917
        %982 = vst [vmem:[#allocation4 + $0xb8] sm:$0xf] %v918
        %983 = vst [vmem:[#allocation4 + $0xbc] sm:$0xf] %v919
        %984 = vst [vmem:[#allocation4 + $0xc0] sm:$0xf] %v920
        %985 = vst [vmem:[#allocation4 + $0xc4] sm:$0xf] %v921
        %986 = vst [vmem:[#allocation4 + $0xc8] sm:$0xf] %v922
        %987 = vst [vmem:[#allocation4 + $0xcc] sm:$0xf] %v923
        %988 = vst [vmem:[#allocation4 + $0xd0] sm:$0xf] %v924
        %989 = vst [vmem:[#allocation4 + $0xd4] sm:$0xf] %v925
        %990 = vst [vmem:[#allocation4 + $0xd8] sm:$0xf] %v926
        %991 = vst [vmem:[#allocation4 + $0xdc] sm:$0xf] %v927
        %992 = vst [vmem:[#allocation4 + $0xe0] sm:$0xf] %v928
        %993 = vst [vmem:[#allocation4 + $0xe4] sm:$0xf] %v929
        %994 = vst [vmem:[#allocation4 + $0xe8] sm:$0xf] %v930
        %995 = vst [vmem:[#allocation4 + $0xec] sm:$0xf] %v931
        %996 = vst [vmem:[#allocation4 + $0xf0] sm:$0xf] %v932
        %997 = vst [vmem:[#allocation4 + $0xf4] sm:$0xf] %v933
        %998 = vst [vmem:[#allocation4 + $0xf8] sm:$0xf] %v934
        %999 = vst [vmem:[#allocation4 + $0xfc] sm:$0xf] %v935
        %v1000 = vld [vmem:[#allocation10] sm:$0xf]
        %v1001 = vld [vmem:[%s4] sm:$0x1]
        %s1002 = smul.u32 0, 4
        %s1003 = smul.addr %s1002, 8
        %s1004 = scalar_lea.vmem %s251, %s1003 [#allocation5]
        %v1005 = vld [vmem:[%s1004] sm:$0xff]
        %v1006 = vld [vmem:[%s1004 + $0x8] sm:$0xff]
        %v1007 = vld [vmem:[%s1004 + $0x10] sm:$0xff]
        %v1008 = vld [vmem:[%s1004 + $0x18] sm:$0xff]
        %v1009 = vld [vmem:[%s1004 + $0x20] sm:$0xff]
        %v1010 = vld [vmem:[%s1004 + $0x28] sm:$0xff]
        %v1011 = vld [vmem:[%s1004 + $0x30] sm:$0xff]
        %v1012 = vld [vmem:[%s1004 + $0x38] sm:$0xff]
        %v1013 = vld [vmem:[%s1004 + $0x40] sm:$0xff]
        %v1014 = vld [vmem:[%s1004 + $0x48] sm:$0xff]
        %v1015 = vld [vmem:[%s1004 + $0x50] sm:$0xff]
        %v1016 = vld [vmem:[%s1004 + $0x58] sm:$0xff]
        %v1017 = vld [vmem:[%s1004 + $0x60] sm:$0xff]
        %v1018 = vld [vmem:[%s1004 + $0x68] sm:$0xff]
        %v1019 = vld [vmem:[%s1004 + $0x70] sm:$0xff]
        %v1020 = vld [vmem:[%s1004 + $0x78] sm:$0xff]
        %v1021 = vld [vmem:[%s1004 + $0x80] sm:$0xff]
        %v1022 = vld [vmem:[%s1004 + $0x88] sm:$0xff]
        %v1023 = vld [vmem:[%s1004 + $0x90] sm:$0xff]
        %v1024 = vld [vmem:[%s1004 + $0x98] sm:$0xff]
        %v1025 = vld [vmem:[%s1004 + $0xa0] sm:$0xff]
        %v1026 = vld [vmem:[%s1004 + $0xa8] sm:$0xff]
        %v1027 = vld [vmem:[%s1004 + $0xb0] sm:$0xff]
        %v1028 = vld [vmem:[%s1004 + $0xb8] sm:$0xff]
        %v1029 = vld [vmem:[%s1004 + $0xc0] sm:$0xff]
        %v1030 = vld [vmem:[%s1004 + $0xc8] sm:$0xff]
        %v1031 = vld [vmem:[%s1004 + $0xd0] sm:$0xff]
        %v1032 = vld [vmem:[%s1004 + $0xd8] sm:$0xff]
        %v1033 = vld [vmem:[%s1004 + $0xe0] sm:$0xff]
        %v1034 = vld [vmem:[%s1004 + $0xe8] sm:$0xff]
        %v1035 = vld [vmem:[%s1004 + $0xf0] sm:$0xff]
        %v1036 = vld [vmem:[%s1004 + $0xf8] sm:$0xff]
        %v1037 = vld [vmem:[%s1004 + $0x100] sm:$0xff]
        %v1038 = vld [vmem:[%s1004 + $0x108] sm:$0xff]
        %v1039 = vld [vmem:[%s1004 + $0x110] sm:$0xff]
        %v1040 = vld [vmem:[%s1004 + $0x118] sm:$0xff]
        %v1041 = vld [vmem:[%s1004 + $0x120] sm:$0xff]
        %v1042 = vld [vmem:[%s1004 + $0x128] sm:$0xff]
        %v1043 = vld [vmem:[%s1004 + $0x130] sm:$0xff]
        %v1044 = vld [vmem:[%s1004 + $0x138] sm:$0xff]
        %v1045 = vld [vmem:[%s1004 + $0x140] sm:$0xff]
        %v1046 = vld [vmem:[%s1004 + $0x148] sm:$0xff]
        %v1047 = vld [vmem:[%s1004 + $0x150] sm:$0xff]
        %v1048 = vld [vmem:[%s1004 + $0x158] sm:$0xff]
        %v1049 = vld [vmem:[%s1004 + $0x160] sm:$0xff]
        %v1050 = vld [vmem:[%s1004 + $0x168] sm:$0xff]
        %v1051 = vld [vmem:[%s1004 + $0x170] sm:$0xff]
        %v1052 = vld [vmem:[%s1004 + $0x178] sm:$0xff]
        %v1053 = vld [vmem:[%s1004 + $0x180] sm:$0xff]
        %v1054 = vld [vmem:[%s1004 + $0x188] sm:$0xff]
        %v1055 = vld [vmem:[%s1004 + $0x190] sm:$0xff]
        %v1056 = vld [vmem:[%s1004 + $0x198] sm:$0xff]
        %v1057 = vld [vmem:[%s1004 + $0x1a0] sm:$0xff]
        %v1058 = vld [vmem:[%s1004 + $0x1a8] sm:$0xff]
        %v1059 = vld [vmem:[%s1004 + $0x1b0] sm:$0xff]
        %v1060 = vld [vmem:[%s1004 + $0x1b8] sm:$0xff]
        %v1061 = vld [vmem:[%s1004 + $0x1c0] sm:$0xff]
        %v1062 = vld [vmem:[%s1004 + $0x1c8] sm:$0xff]
        %v1063 = vld [vmem:[%s1004 + $0x1d0] sm:$0xff]
        %v1064 = vld [vmem:[%s1004 + $0x1d8] sm:$0xff]
        %v1065 = vld [vmem:[%s1004 + $0x1e0] sm:$0xff]
        %v1066 = vld [vmem:[%s1004 + $0x1e8] sm:$0xff]
        %v1067 = vld [vmem:[%s1004 + $0x1f0] sm:$0xff]
        %v1068 = vld [vmem:[%s1004 + $0x1f8] sm:$0xff]
        %v1069 = vld [vmem:[%s1004 + $0x200] sm:$0xff]
        %v1070 = vld [vmem:[%s1004 + $0x208] sm:$0xff]
        %v1071 = vld [vmem:[%s1004 + $0x210] sm:$0xff]
        %v1072 = vld [vmem:[%s1004 + $0x218] sm:$0xff]
        %v1073 = vld [vmem:[%s1004 + $0x220] sm:$0xff]
        %v1074 = vld [vmem:[%s1004 + $0x228] sm:$0xff]
        %v1075 = vld [vmem:[%s1004 + $0x230] sm:$0xff]
        %v1076 = vld [vmem:[%s1004 + $0x238] sm:$0xff]
        %v1077 = vld [vmem:[%s1004 + $0x240] sm:$0xff]
        %v1078 = vld [vmem:[%s1004 + $0x248] sm:$0xff]
        %v1079 = vld [vmem:[%s1004 + $0x250] sm:$0xff]
        %v1080 = vld [vmem:[%s1004 + $0x258] sm:$0xff]
        %v1081 = vld [vmem:[%s1004 + $0x260] sm:$0xff]
        %v1082 = vld [vmem:[%s1004 + $0x268] sm:$0xff]
        %v1083 = vld [vmem:[%s1004 + $0x270] sm:$0xff]
        %v1084 = vld [vmem:[%s1004 + $0x278] sm:$0xff]
        %v1085 = vld [vmem:[%s1004 + $0x280] sm:$0xff]
        %v1086 = vld [vmem:[%s1004 + $0x288] sm:$0xff]
        %v1087 = vld [vmem:[%s1004 + $0x290] sm:$0xff]
        %v1088 = vld [vmem:[%s1004 + $0x298] sm:$0xff]
        %v1089 = vld [vmem:[%s1004 + $0x2a0] sm:$0xff]
        %v1090 = vld [vmem:[%s1004 + $0x2a8] sm:$0xff]
        %v1091 = vld [vmem:[%s1004 + $0x2b0] sm:$0xff]
        %v1092 = vld [vmem:[%s1004 + $0x2b8] sm:$0xff]
        %v1093 = vld [vmem:[%s1004 + $0x2c0] sm:$0xff]
        %v1094 = vld [vmem:[%s1004 + $0x2c8] sm:$0xff]
        %v1095 = vld [vmem:[%s1004 + $0x2d0] sm:$0xff]
        %v1096 = vld [vmem:[%s1004 + $0x2d8] sm:$0xff]
        %v1097 = vld [vmem:[%s1004 + $0x2e0] sm:$0xff]
        %v1098 = vld [vmem:[%s1004 + $0x2e8] sm:$0xff]
        %v1099 = vld [vmem:[%s1004 + $0x2f0] sm:$0xff]
        %v1100 = vld [vmem:[%s1004 + $0x2f8] sm:$0xff]
        %v1101 = vld [vmem:[%s1004 + $0x300] sm:$0xff]
        %v1102 = vld [vmem:[%s1004 + $0x308] sm:$0xff]
        %v1103 = vld [vmem:[%s1004 + $0x310] sm:$0xff]
        %v1104 = vld [vmem:[%s1004 + $0x318] sm:$0xff]
        %v1105 = vld [vmem:[%s1004 + $0x320] sm:$0xff]
        %v1106 = vld [vmem:[%s1004 + $0x328] sm:$0xff]
        %v1107 = vld [vmem:[%s1004 + $0x330] sm:$0xff]
        %v1108 = vld [vmem:[%s1004 + $0x338] sm:$0xff]
        %v1109 = vld [vmem:[%s1004 + $0x340] sm:$0xff]
        %v1110 = vld [vmem:[%s1004 + $0x348] sm:$0xff]
        %v1111 = vld [vmem:[%s1004 + $0x350] sm:$0xff]
        %v1112 = vld [vmem:[%s1004 + $0x358] sm:$0xff]
        %v1113 = vld [vmem:[%s1004 + $0x360] sm:$0xff]
        %v1114 = vld [vmem:[%s1004 + $0x368] sm:$0xff]
        %v1115 = vld [vmem:[%s1004 + $0x370] sm:$0xff]
        %v1116 = vld [vmem:[%s1004 + $0x378] sm:$0xff]
        %v1117 = vld [vmem:[%s1004 + $0x380] sm:$0xff]
        %v1118 = vld [vmem:[%s1004 + $0x388] sm:$0xff]
        %v1119 = vld [vmem:[%s1004 + $0x390] sm:$0xff]
        %v1120 = vld [vmem:[%s1004 + $0x398] sm:$0xff]
        %v1121 = vld [vmem:[%s1004 + $0x3a0] sm:$0xff]
        %v1122 = vld [vmem:[%s1004 + $0x3a8] sm:$0xff]
        %v1123 = vld [vmem:[%s1004 + $0x3b0] sm:$0xff]
        %v1124 = vld [vmem:[%s1004 + $0x3b8] sm:$0xff]
        %v1125 = vld [vmem:[%s1004 + $0x3c0] sm:$0xff]
        %v1126 = vld [vmem:[%s1004 + $0x3c8] sm:$0xff]
        %v1127 = vld [vmem:[%s1004 + $0x3d0] sm:$0xff]
        %v1128 = vld [vmem:[%s1004 + $0x3d8] sm:$0xff]
        %v1129 = vld [vmem:[%s1004 + $0x3e0] sm:$0xff]
        %v1130 = vld [vmem:[%s1004 + $0x3e8] sm:$0xff]
        %v1131 = vld [vmem:[%s1004 + $0x3f0] sm:$0xff]
        %v1132 = vld [vmem:[%s1004 + $0x3f8] sm:$0xff]
        %v1133 = vpack.c.bf16 %v1009, %v1005
        %v1134 = vpack.c.bf16 %v1010, %v1006
        %v1135 = vpack.c.bf16 %v1011, %v1007
        %v1136 = vpack.c.bf16 %v1012, %v1008
        %v1137 = vpack.c.bf16 %v1017, %v1013
        %v1138 = vpack.c.bf16 %v1018, %v1014
        %v1139 = vpack.c.bf16 %v1019, %v1015
        %v1140 = vpack.c.bf16 %v1020, %v1016
        %v1141 = vpack.c.bf16 %v1025, %v1021
        %v1142 = vpack.c.bf16 %v1026, %v1022
        %v1143 = vpack.c.bf16 %v1027, %v1023
        %v1144 = vpack.c.bf16 %v1028, %v1024
        %v1145 = vpack.c.bf16 %v1033, %v1029
        %v1146 = vpack.c.bf16 %v1034, %v1030
        %v1147 = vpack.c.bf16 %v1035, %v1031
        %v1148 = vpack.c.bf16 %v1036, %v1032
        %v1149 = vpack.c.bf16 %v1041, %v1037
        %v1150 = vpack.c.bf16 %v1042, %v1038
        %v1151 = vpack.c.bf16 %v1043, %v1039
        %v1152 = vpack.c.bf16 %v1044, %v1040
        %v1153 = vpack.c.bf16 %v1049, %v1045
        %v1154 = vpack.c.bf16 %v1050, %v1046
        %v1155 = vpack.c.bf16 %v1051, %v1047
        %v1156 = vpack.c.bf16 %v1052, %v1048
        %v1157 = vpack.c.bf16 %v1057, %v1053
        %v1158 = vpack.c.bf16 %v1058, %v1054
        %v1159 = vpack.c.bf16 %v1059, %v1055
        %v1160 = vpack.c.bf16 %v1060, %v1056
        %v1161 = vpack.c.bf16 %v1065, %v1061
        %v1162 = vpack.c.bf16 %v1066, %v1062
        %v1163 = vpack.c.bf16 %v1067, %v1063
        %v1164 = vpack.c.bf16 %v1068, %v1064
        %v1165 = vpack.c.bf16 %v1073, %v1069
        %v1166 = vpack.c.bf16 %v1074, %v1070
        %v1167 = vpack.c.bf16 %v1075, %v1071
        %v1168 = vpack.c.bf16 %v1076, %v1072
        %v1169 = vpack.c.bf16 %v1081, %v1077
        %v1170 = vpack.c.bf16 %v1082, %v1078
        %v1171 = vpack.c.bf16 %v1083, %v1079
        %v1172 = vpack.c.bf16 %v1084, %v1080
        %v1173 = vpack.c.bf16 %v1089, %v1085
        %v1174 = vpack.c.bf16 %v1090, %v1086
        %v1175 = vpack.c.bf16 %v1091, %v1087
        %v1176 = vpack.c.bf16 %v1092, %v1088
        %v1177 = vpack.c.bf16 %v1097, %v1093
        %v1178 = vpack.c.bf16 %v1098, %v1094
        %v1179 = vpack.c.bf16 %v1099, %v1095
        %v1180 = vpack.c.bf16 %v1100, %v1096
        %v1181 = vpack.c.bf16 %v1105, %v1101
        %v1182 = vpack.c.bf16 %v1106, %v1102
        %v1183 = vpack.c.bf16 %v1107, %v1103
        %v1184 = vpack.c.bf16 %v1108, %v1104
        %v1185 = vpack.c.bf16 %v1113, %v1109
        %v1186 = vpack.c.bf16 %v1114, %v1110
        %v1187 = vpack.c.bf16 %v1115, %v1111
        %v1188 = vpack.c.bf16 %v1116, %v1112
        %v1189 = vpack.c.bf16 %v1121, %v1117
        %v1190 = vpack.c.bf16 %v1122, %v1118
        %v1191 = vpack.c.bf16 %v1123, %v1119
        %v1192 = vpack.c.bf16 %v1124, %v1120
        %v1193 = vpack.c.bf16 %v1129, %v1125
        %v1194 = vpack.c.bf16 %v1130, %v1126
        %v1195 = vpack.c.bf16 %v1131, %v1127
        %v1196 = vpack.c.bf16 %v1132, %v1128
        %v1197 = vld [vmem:[#allocation3] sm:$0xff]
        %v1198 = vld [vmem:[#allocation3 + $0x8] sm:$0xff]
        %v1199 = vld [vmem:[#allocation3 + $0x10] sm:$0xff]
        %v1200 = vld [vmem:[#allocation3 + $0x18] sm:$0xff]
        %v1201 = vld [vmem:[#allocation3 + $0x20] sm:$0xff]
        %v1202 = vld [vmem:[#allocation3 + $0x28] sm:$0xff]
        %v1203 = vld [vmem:[#allocation3 + $0x30] sm:$0xff]
        %v1204 = vld [vmem:[#allocation3 + $0x38] sm:$0xff]
        %v1205 = vld [vmem:[#allocation3 + $0x40] sm:$0xff]
        %v1206 = vld [vmem:[#allocation3 + $0x48] sm:$0xff]
        %v1207 = vld [vmem:[#allocation3 + $0x50] sm:$0xff]
        %v1208 = vld [vmem:[#allocation3 + $0x58] sm:$0xff]
        %v1209 = vld [vmem:[#allocation3 + $0x60] sm:$0xff]
        %v1210 = vld [vmem:[#allocation3 + $0x68] sm:$0xff]
        %v1211 = vld [vmem:[#allocation3 + $0x70] sm:$0xff]
        %v1212 = vld [vmem:[#allocation3 + $0x78] sm:$0xff]
        %v1213 = vld [vmem:[#allocation3 + $0x80] sm:$0xff]
        %v1214 = vld [vmem:[#allocation3 + $0x88] sm:$0xff]
        %v1215 = vld [vmem:[#allocation3 + $0x90] sm:$0xff]
        %v1216 = vld [vmem:[#allocation3 + $0x98] sm:$0xff]
        %v1217 = vld [vmem:[#allocation3 + $0xa0] sm:$0xff]
        %v1218 = vld [vmem:[#allocation3 + $0xa8] sm:$0xff]
        %v1219 = vld [vmem:[#allocation3 + $0xb0] sm:$0xff]
        %v1220 = vld [vmem:[#allocation3 + $0xb8] sm:$0xff]
        %v1221 = vld [vmem:[#allocation3 + $0xc0] sm:$0xff]
        %v1222 = vld [vmem:[#allocation3 + $0xc8] sm:$0xff]
        %v1223 = vld [vmem:[#allocation3 + $0xd0] sm:$0xff]
        %v1224 = vld [vmem:[#allocation3 + $0xd8] sm:$0xff]
        %v1225 = vld [vmem:[#allocation3 + $0xe0] sm:$0xff]
        %v1226 = vld [vmem:[#allocation3 + $0xe8] sm:$0xff]
        %v1227 = vld [vmem:[#allocation3 + $0xf0] sm:$0xff]
        %v1228 = vld [vmem:[#allocation3 + $0xf8] sm:$0xff]
        %v1229 = vld [vmem:[#allocation3 + $0x100] sm:$0xff]
        %v1230 = vld [vmem:[#allocation3 + $0x108] sm:$0xff]
        %v1231 = vld [vmem:[#allocation3 + $0x110] sm:$0xff]
        %v1232 = vld [vmem:[#allocation3 + $0x118] sm:$0xff]
        %v1233 = vld [vmem:[#allocation3 + $0x120] sm:$0xff]
        %v1234 = vld [vmem:[#allocation3 + $0x128] sm:$0xff]
        %v1235 = vld [vmem:[#allocation3 + $0x130] sm:$0xff]
        %v1236 = vld [vmem:[#allocation3 + $0x138] sm:$0xff]
        %v1237 = vld [vmem:[#allocation3 + $0x140] sm:$0xff]
        %v1238 = vld [vmem:[#allocation3 + $0x148] sm:$0xff]
        %v1239 = vld [vmem:[#allocation3 + $0x150] sm:$0xff]
        %v1240 = vld [vmem:[#allocation3 + $0x158] sm:$0xff]
        %v1241 = vld [vmem:[#allocation3 + $0x160] sm:$0xff]
        %v1242 = vld [vmem:[#allocation3 + $0x168] sm:$0xff]
        %v1243 = vld [vmem:[#allocation3 + $0x170] sm:$0xff]
        %v1244 = vld [vmem:[#allocation3 + $0x178] sm:$0xff]
        %v1245 = vld [vmem:[#allocation3 + $0x180] sm:$0xff]
        %v1246 = vld [vmem:[#allocation3 + $0x188] sm:$0xff]
        %v1247 = vld [vmem:[#allocation3 + $0x190] sm:$0xff]
        %v1248 = vld [vmem:[#allocation3 + $0x198] sm:$0xff]
        %v1249 = vld [vmem:[#allocation3 + $0x1a0] sm:$0xff]
        %v1250 = vld [vmem:[#allocation3 + $0x1a8] sm:$0xff]
        %v1251 = vld [vmem:[#allocation3 + $0x1b0] sm:$0xff]
        %v1252 = vld [vmem:[#allocation3 + $0x1b8] sm:$0xff]
        %v1253 = vld [vmem:[#allocation3 + $0x1c0] sm:$0xff]
        %v1254 = vld [vmem:[#allocation3 + $0x1c8] sm:$0xff]
        %v1255 = vld [vmem:[#allocation3 + $0x1d0] sm:$0xff]
        %v1256 = vld [vmem:[#allocation3 + $0x1d8] sm:$0xff]
        %v1257 = vld [vmem:[#allocation3 + $0x1e0] sm:$0xff]
        %v1258 = vld [vmem:[#allocation3 + $0x1e8] sm:$0xff]
        %v1259 = vld [vmem:[#allocation3 + $0x1f0] sm:$0xff]
        %v1260 = vld [vmem:[#allocation3 + $0x1f8] sm:$0xff]
        %v1261 = vld [vmem:[#allocation3 + $0x200] sm:$0xff]
        %v1262 = vld [vmem:[#allocation3 + $0x208] sm:$0xff]
        %v1263 = vld [vmem:[#allocation3 + $0x210] sm:$0xff]
        %v1264 = vld [vmem:[#allocation3 + $0x218] sm:$0xff]
        %v1265 = vld [vmem:[#allocation3 + $0x220] sm:$0xff]
        %v1266 = vld [vmem:[#allocation3 + $0x228] sm:$0xff]
        %v1267 = vld [vmem:[#allocation3 + $0x230] sm:$0xff]
        %v1268 = vld [vmem:[#allocation3 + $0x238] sm:$0xff]
        %v1269 = vld [vmem:[#allocation3 + $0x240] sm:$0xff]
        %v1270 = vld [vmem:[#allocation3 + $0x248] sm:$0xff]
        %v1271 = vld [vmem:[#allocation3 + $0x250] sm:$0xff]
        %v1272 = vld [vmem:[#allocation3 + $0x258] sm:$0xff]
        %v1273 = vld [vmem:[#allocation3 + $0x260] sm:$0xff]
        %v1274 = vld [vmem:[#allocation3 + $0x268] sm:$0xff]
        %v1275 = vld [vmem:[#allocation3 + $0x270] sm:$0xff]
        %v1276 = vld [vmem:[#allocation3 + $0x278] sm:$0xff]
        %v1277 = vld [vmem:[#allocation3 + $0x280] sm:$0xff]
        %v1278 = vld [vmem:[#allocation3 + $0x288] sm:$0xff]
        %v1279 = vld [vmem:[#allocation3 + $0x290] sm:$0xff]
        %v1280 = vld [vmem:[#allocation3 + $0x298] sm:$0xff]
        %v1281 = vld [vmem:[#allocation3 + $0x2a0] sm:$0xff]
        %v1282 = vld [vmem:[#allocation3 + $0x2a8] sm:$0xff]
        %v1283 = vld [vmem:[#allocation3 + $0x2b0] sm:$0xff]
        %v1284 = vld [vmem:[#allocation3 + $0x2b8] sm:$0xff]
        %v1285 = vld [vmem:[#allocation3 + $0x2c0] sm:$0xff]
        %v1286 = vld [vmem:[#allocation3 + $0x2c8] sm:$0xff]
        %v1287 = vld [vmem:[#allocation3 + $0x2d0] sm:$0xff]
        %v1288 = vld [vmem:[#allocation3 + $0x2d8] sm:$0xff]
        %v1289 = vld [vmem:[#allocation3 + $0x2e0] sm:$0xff]
        %v1290 = vld [vmem:[#allocation3 + $0x2e8] sm:$0xff]
        %v1291 = vld [vmem:[#allocation3 + $0x2f0] sm:$0xff]
        %v1292 = vld [vmem:[#allocation3 + $0x2f8] sm:$0xff]
        %v1293 = vld [vmem:[#allocation3 + $0x300] sm:$0xff]
        %v1294 = vld [vmem:[#allocation3 + $0x308] sm:$0xff]
        %v1295 = vld [vmem:[#allocation3 + $0x310] sm:$0xff]
        %v1296 = vld [vmem:[#allocation3 + $0x318] sm:$0xff]
        %v1297 = vld [vmem:[#allocation3 + $0x320] sm:$0xff]
        %v1298 = vld [vmem:[#allocation3 + $0x328] sm:$0xff]
        %v1299 = vld [vmem:[#allocation3 + $0x330] sm:$0xff]
        %v1300 = vld [vmem:[#allocation3 + $0x338] sm:$0xff]
        %v1301 = vld [vmem:[#allocation3 + $0x340] sm:$0xff]
        %v1302 = vld [vmem:[#allocation3 + $0x348] sm:$0xff]
        %v1303 = vld [vmem:[#allocation3 + $0x350] sm:$0xff]
        %v1304 = vld [vmem:[#allocation3 + $0x358] sm:$0xff]
        %v1305 = vld [vmem:[#allocation3 + $0x360] sm:$0xff]
        %v1306 = vld [vmem:[#allocation3 + $0x368] sm:$0xff]
        %v1307 = vld [vmem:[#allocation3 + $0x370] sm:$0xff]
        %v1308 = vld [vmem:[#allocation3 + $0x378] sm:$0xff]
        %v1309 = vld [vmem:[#allocation3 + $0x380] sm:$0xff]
        %v1310 = vld [vmem:[#allocation3 + $0x388] sm:$0xff]
        %v1311 = vld [vmem:[#allocation3 + $0x390] sm:$0xff]
        %v1312 = vld [vmem:[#allocation3 + $0x398] sm:$0xff]
        %v1313 = vld [vmem:[#allocation3 + $0x3a0] sm:$0xff]
        %v1314 = vld [vmem:[#allocation3 + $0x3a8] sm:$0xff]
        %v1315 = vld [vmem:[#allocation3 + $0x3b0] sm:$0xff]
        %v1316 = vld [vmem:[#allocation3 + $0x3b8] sm:$0xff]
        %v1317 = vld [vmem:[#allocation3 + $0x3c0] sm:$0xff]
        %v1318 = vld [vmem:[#allocation3 + $0x3c8] sm:$0xff]
        %v1319 = vld [vmem:[#allocation3 + $0x3d0] sm:$0xff]
        %v1320 = vld [vmem:[#allocation3 + $0x3d8] sm:$0xff]
        %v1321 = vld [vmem:[#allocation3 + $0x3e0] sm:$0xff]
        %v1322 = vld [vmem:[#allocation3 + $0x3e8] sm:$0xff]
        %v1323 = vld [vmem:[#allocation3 + $0x3f0] sm:$0xff]
        %v1324 = vld [vmem:[#allocation3 + $0x3f8] sm:$0xff]
        %v1326 = vperm.slane %v1000, 0
        %v1327 = vperm.slane %v1000, 1
        %v1328 = vperm.slane %v1000, 2
        %v1329 = vperm.slane %v1000, 3
        %v1462 = vunpack.c.l.b16 %v1197
        %v1463 = vunpack.c.h.b16 %v1197
        %v1464 = vunpack.c.l.b16 %v1198
        %v1465 = vunpack.c.h.b16 %v1198
        %v1466 = vunpack.c.l.b16 %v1199
        %v1467 = vunpack.c.h.b16 %v1199
        %v1468 = vunpack.c.l.b16 %v1200
        %v1469 = vunpack.c.h.b16 %v1200
        %v1470 = vunpack.c.l.b16 %v1201
        %v1471 = vunpack.c.h.b16 %v1201
        %v1472 = vunpack.c.l.b16 %v1202
        %v1473 = vunpack.c.h.b16 %v1202
        %v1474 = vunpack.c.l.b16 %v1203
        %v1475 = vunpack.c.h.b16 %v1203
        %v1476 = vunpack.c.l.b16 %v1204
        %v1477 = vunpack.c.h.b16 %v1204
        %v1478 = vunpack.c.l.b16 %v1205
        %v1479 = vunpack.c.h.b16 %v1205
        %v1480 = vunpack.c.l.b16 %v1206
        %v1481 = vunpack.c.h.b16 %v1206
        %v1482 = vunpack.c.l.b16 %v1207
        %v1483 = vunpack.c.h.b16 %v1207
        %v1484 = vunpack.c.l.b16 %v1208
        %v1485 = vunpack.c.h.b16 %v1208
        %v1486 = vunpack.c.l.b16 %v1209
        %v1487 = vunpack.c.h.b16 %v1209
        %v1488 = vunpack.c.l.b16 %v1210
        %v1489 = vunpack.c.h.b16 %v1210
        %v1490 = vunpack.c.l.b16 %v1211
        %v1491 = vunpack.c.h.b16 %v1211
        %v1492 = vunpack.c.l.b16 %v1212
        %v1493 = vunpack.c.h.b16 %v1212
        %v1494 = vunpack.c.l.b16 %v1213
        %v1495 = vunpack.c.h.b16 %v1213
        %v1496 = vunpack.c.l.b16 %v1214
        %v1497 = vunpack.c.h.b16 %v1214
        %v1498 = vunpack.c.l.b16 %v1215
        %v1499 = vunpack.c.h.b16 %v1215
        %v1500 = vunpack.c.l.b16 %v1216
        %v1501 = vunpack.c.h.b16 %v1216
        %v1502 = vunpack.c.l.b16 %v1217
        %v1503 = vunpack.c.h.b16 %v1217
        %v1504 = vunpack.c.l.b16 %v1218
        %v1505 = vunpack.c.h.b16 %v1218
        %v1506 = vunpack.c.l.b16 %v1219
        %v1507 = vunpack.c.h.b16 %v1219
        %v1508 = vunpack.c.l.b16 %v1220
        %v1509 = vunpack.c.h.b16 %v1220
        %v1510 = vunpack.c.l.b16 %v1221
        %v1511 = vunpack.c.h.b16 %v1221
        %v1512 = vunpack.c.l.b16 %v1222
        %v1513 = vunpack.c.h.b16 %v1222
        %v1514 = vunpack.c.l.b16 %v1223
        %v1515 = vunpack.c.h.b16 %v1223
        %v1516 = vunpack.c.l.b16 %v1224
        %v1517 = vunpack.c.h.b16 %v1224
        %v1518 = vunpack.c.l.b16 %v1225
        %v1519 = vunpack.c.h.b16 %v1225
        %v1520 = vunpack.c.l.b16 %v1226
        %v1521 = vunpack.c.h.b16 %v1226
        %v1522 = vunpack.c.l.b16 %v1227
        %v1523 = vunpack.c.h.b16 %v1227
        %v1524 = vunpack.c.l.b16 %v1228
        %v1525 = vunpack.c.h.b16 %v1228
        %v1526 = vunpack.c.l.b16 %v1229
        %v1527 = vunpack.c.h.b16 %v1229
        %v1528 = vunpack.c.l.b16 %v1230
        %v1529 = vunpack.c.h.b16 %v1230
        %v1530 = vunpack.c.l.b16 %v1231
        %v1531 = vunpack.c.h.b16 %v1231
        %v1532 = vunpack.c.l.b16 %v1232
        %v1533 = vunpack.c.h.b16 %v1232
        %v1534 = vunpack.c.l.b16 %v1233
        %v1535 = vunpack.c.h.b16 %v1233
        %v1536 = vunpack.c.l.b16 %v1234
        %v1537 = vunpack.c.h.b16 %v1234
        %v1538 = vunpack.c.l.b16 %v1235
        %v1539 = vunpack.c.h.b16 %v1235
        %v1540 = vunpack.c.l.b16 %v1236
        %v1541 = vunpack.c.h.b16 %v1236
        %v1542 = vunpack.c.l.b16 %v1237
        %v1543 = vunpack.c.h.b16 %v1237
        %v1544 = vunpack.c.l.b16 %v1238
        %v1545 = vunpack.c.h.b16 %v1238
        %v1546 = vunpack.c.l.b16 %v1239
        %v1547 = vunpack.c.h.b16 %v1239
        %v1548 = vunpack.c.l.b16 %v1240
        %v1549 = vunpack.c.h.b16 %v1240
        %v1550 = vunpack.c.l.b16 %v1241
        %v1551 = vunpack.c.h.b16 %v1241
        %v1552 = vunpack.c.l.b16 %v1242
        %v1553 = vunpack.c.h.b16 %v1242
        %v1554 = vunpack.c.l.b16 %v1243
        %v1555 = vunpack.c.h.b16 %v1243
        %v1556 = vunpack.c.l.b16 %v1244
        %v1557 = vunpack.c.h.b16 %v1244
        %v1558 = vunpack.c.l.b16 %v1245
        %v1559 = vunpack.c.h.b16 %v1245
        %v1560 = vunpack.c.l.b16 %v1246
        %v1561 = vunpack.c.h.b16 %v1246
        %v1562 = vunpack.c.l.b16 %v1247
        %v1563 = vunpack.c.h.b16 %v1247
        %v1564 = vunpack.c.l.b16 %v1248
        %v1565 = vunpack.c.h.b16 %v1248
        %v1566 = vunpack.c.l.b16 %v1249
        %v1567 = vunpack.c.h.b16 %v1249
        %v1568 = vunpack.c.l.b16 %v1250
        %v1569 = vunpack.c.h.b16 %v1250
        %v1570 = vunpack.c.l.b16 %v1251
        %v1571 = vunpack.c.h.b16 %v1251
        %v1572 = vunpack.c.l.b16 %v1252
        %v1573 = vunpack.c.h.b16 %v1252
        %v1574 = vunpack.c.l.b16 %v1253
        %v1575 = vunpack.c.h.b16 %v1253
        %v1576 = vunpack.c.l.b16 %v1254
        %v1577 = vunpack.c.h.b16 %v1254
        %v1578 = vunpack.c.l.b16 %v1255
        %v1579 = vunpack.c.h.b16 %v1255
        %v1580 = vunpack.c.l.b16 %v1256
        %v1581 = vunpack.c.h.b16 %v1256
        %v1582 = vunpack.c.l.b16 %v1257
        %v1583 = vunpack.c.h.b16 %v1257
        %v1584 = vunpack.c.l.b16 %v1258
        %v1585 = vunpack.c.h.b16 %v1258
        %v1586 = vunpack.c.l.b16 %v1259
        %v1587 = vunpack.c.h.b16 %v1259
        %v1588 = vunpack.c.l.b16 %v1260
        %v1589 = vunpack.c.h.b16 %v1260
        %v1590 = vunpack.c.l.b16 %v1261
        %v1591 = vunpack.c.h.b16 %v1261
        %v1592 = vunpack.c.l.b16 %v1262
        %v1593 = vunpack.c.h.b16 %v1262
        %v1594 = vunpack.c.l.b16 %v1263
        %v1595 = vunpack.c.h.b16 %v1263
        %v1596 = vunpack.c.l.b16 %v1264
        %v1597 = vunpack.c.h.b16 %v1264
        %v1598 = vunpack.c.l.b16 %v1265
        %v1599 = vunpack.c.h.b16 %v1265
        %v1600 = vunpack.c.l.b16 %v1266
        %v1601 = vunpack.c.h.b16 %v1266
        %v1602 = vunpack.c.l.b16 %v1267
        %v1603 = vunpack.c.h.b16 %v1267
        %v1604 = vunpack.c.l.b16 %v1268
        %v1605 = vunpack.c.h.b16 %v1268
        %v1606 = vunpack.c.l.b16 %v1269
        %v1607 = vunpack.c.h.b16 %v1269
        %v1608 = vunpack.c.l.b16 %v1270
        %v1609 = vunpack.c.h.b16 %v1270
        %v1610 = vunpack.c.l.b16 %v1271
        %v1611 = vunpack.c.h.b16 %v1271
        %v1612 = vunpack.c.l.b16 %v1272
        %v1613 = vunpack.c.h.b16 %v1272
        %v1614 = vunpack.c.l.b16 %v1273
        %v1615 = vunpack.c.h.b16 %v1273
        %v1616 = vunpack.c.l.b16 %v1274
        %v1617 = vunpack.c.h.b16 %v1274
        %v1618 = vunpack.c.l.b16 %v1275
        %v1619 = vunpack.c.h.b16 %v1275
        %v1620 = vunpack.c.l.b16 %v1276
        %v1621 = vunpack.c.h.b16 %v1276
        %v1622 = vunpack.c.l.b16 %v1277
        %v1623 = vunpack.c.h.b16 %v1277
        %v1624 = vunpack.c.l.b16 %v1278
        %v1625 = vunpack.c.h.b16 %v1278
        %v1626 = vunpack.c.l.b16 %v1279
        %v1627 = vunpack.c.h.b16 %v1279
        %v1628 = vunpack.c.l.b16 %v1280
        %v1629 = vunpack.c.h.b16 %v1280
        %v1630 = vunpack.c.l.b16 %v1281
        %v1631 = vunpack.c.h.b16 %v1281
        %v1632 = vunpack.c.l.b16 %v1282
        %v1633 = vunpack.c.h.b16 %v1282
        %v1634 = vunpack.c.l.b16 %v1283
        %v1635 = vunpack.c.h.b16 %v1283
        %v1636 = vunpack.c.l.b16 %v1284
        %v1637 = vunpack.c.h.b16 %v1284
        %v1638 = vunpack.c.l.b16 %v1285
        %v1639 = vunpack.c.h.b16 %v1285
        %v1640 = vunpack.c.l.b16 %v1286
        %v1641 = vunpack.c.h.b16 %v1286
        %v1642 = vunpack.c.l.b16 %v1287
        %v1643 = vunpack.c.h.b16 %v1287
        %v1644 = vunpack.c.l.b16 %v1288
        %v1645 = vunpack.c.h.b16 %v1288
        %v1646 = vunpack.c.l.b16 %v1289
        %v1647 = vunpack.c.h.b16 %v1289
        %v1648 = vunpack.c.l.b16 %v1290
        %v1649 = vunpack.c.h.b16 %v1290
        %v1650 = vunpack.c.l.b16 %v1291
        %v1651 = vunpack.c.h.b16 %v1291
        %v1652 = vunpack.c.l.b16 %v1292
        %v1653 = vunpack.c.h.b16 %v1292
        %v1654 = vunpack.c.l.b16 %v1293
        %v1655 = vunpack.c.h.b16 %v1293
        %v1656 = vunpack.c.l.b16 %v1294
        %v1657 = vunpack.c.h.b16 %v1294
        %v1658 = vunpack.c.l.b16 %v1295
        %v1659 = vunpack.c.h.b16 %v1295
        %v1660 = vunpack.c.l.b16 %v1296
        %v1661 = vunpack.c.h.b16 %v1296
        %v1662 = vunpack.c.l.b16 %v1297
        %v1663 = vunpack.c.h.b16 %v1297
        %v1664 = vunpack.c.l.b16 %v1298
        %v1665 = vunpack.c.h.b16 %v1298
        %v1666 = vunpack.c.l.b16 %v1299
        %v1667 = vunpack.c.h.b16 %v1299
        %v1668 = vunpack.c.l.b16 %v1300
        %v1669 = vunpack.c.h.b16 %v1300
        %v1670 = vunpack.c.l.b16 %v1301
        %v1671 = vunpack.c.h.b16 %v1301
        %v1672 = vunpack.c.l.b16 %v1302
        %v1673 = vunpack.c.h.b16 %v1302
        %v1674 = vunpack.c.l.b16 %v1303
        %v1675 = vunpack.c.h.b16 %v1303
        %v1676 = vunpack.c.l.b16 %v1304
        %v1677 = vunpack.c.h.b16 %v1304
        %v1678 = vunpack.c.l.b16 %v1305
        %v1679 = vunpack.c.h.b16 %v1305
        %v1680 = vunpack.c.l.b16 %v1306
        %v1681 = vunpack.c.h.b16 %v1306
        %v1682 = vunpack.c.l.b16 %v1307
        %v1683 = vunpack.c.h.b16 %v1307
        %v1684 = vunpack.c.l.b16 %v1308
        %v1685 = vunpack.c.h.b16 %v1308
        %v1686 = vunpack.c.l.b16 %v1309
        %v1687 = vunpack.c.h.b16 %v1309
        %v1688 = vunpack.c.l.b16 %v1310
        %v1689 = vunpack.c.h.b16 %v1310
        %v1690 = vunpack.c.l.b16 %v1311
        %v1691 = vunpack.c.h.b16 %v1311
        %v1692 = vunpack.c.l.b16 %v1312
        %v1693 = vunpack.c.h.b16 %v1312
        %v1694 = vunpack.c.l.b16 %v1313
        %v1695 = vunpack.c.h.b16 %v1313
        %v1696 = vunpack.c.l.b16 %v1314
        %v1697 = vunpack.c.h.b16 %v1314
        %v1698 = vunpack.c.l.b16 %v1315
        %v1699 = vunpack.c.h.b16 %v1315
        %v1700 = vunpack.c.l.b16 %v1316
        %v1701 = vunpack.c.h.b16 %v1316
        %v1702 = vunpack.c.l.b16 %v1317
        %v1703 = vunpack.c.h.b16 %v1317
        %v1704 = vunpack.c.l.b16 %v1318
        %v1705 = vunpack.c.h.b16 %v1318
        %v1706 = vunpack.c.l.b16 %v1319
        %v1707 = vunpack.c.h.b16 %v1319
        %v1708 = vunpack.c.l.b16 %v1320
        %v1709 = vunpack.c.h.b16 %v1320
        %v1710 = vunpack.c.l.b16 %v1321
        %v1711 = vunpack.c.h.b16 %v1321
        %v1712 = vunpack.c.l.b16 %v1322
        %v1713 = vunpack.c.h.b16 %v1322
        %v1714 = vunpack.c.l.b16 %v1323
        %v1715 = vunpack.c.h.b16 %v1323
        %v1716 = vunpack.c.l.b16 %v1324
        %v1717 = vunpack.c.h.b16 %v1324
        %v1718 = vpack.c.b16 %v1466, %v1462
        %v1719 = vpack.c.b16 %v1467, %v1463
        %v1720 = vpack.c.b16 %v1468, %v1464
        %v1721 = vpack.c.b16 %v1469, %v1465
        %v1722 = vpack.c.b16 %v1474, %v1470
        %v1723 = vpack.c.b16 %v1475, %v1471
        %v1724 = vpack.c.b16 %v1476, %v1472
        %v1725 = vpack.c.b16 %v1477, %v1473
        %v1726 = vpack.c.b16 %v1482, %v1478
        %v1727 = vpack.c.b16 %v1483, %v1479
        %v1728 = vpack.c.b16 %v1484, %v1480
        %v1729 = vpack.c.b16 %v1485, %v1481
        %v1730 = vpack.c.b16 %v1490, %v1486
        %v1731 = vpack.c.b16 %v1491, %v1487
        %v1732 = vpack.c.b16 %v1492, %v1488
        %v1733 = vpack.c.b16 %v1493, %v1489
        %v1734 = vpack.c.b16 %v1498, %v1494
        %v1735 = vpack.c.b16 %v1499, %v1495
        %v1736 = vpack.c.b16 %v1500, %v1496
        %v1737 = vpack.c.b16 %v1501, %v1497
        %v1738 = vpack.c.b16 %v1506, %v1502
        %v1739 = vpack.c.b16 %v1507, %v1503
        %v1740 = vpack.c.b16 %v1508, %v1504
        %v1741 = vpack.c.b16 %v1509, %v1505
        %v1742 = vpack.c.b16 %v1514, %v1510
        %v1743 = vpack.c.b16 %v1515, %v1511
        %v1744 = vpack.c.b16 %v1516, %v1512
        %v1745 = vpack.c.b16 %v1517, %v1513
        %v1746 = vpack.c.b16 %v1522, %v1518
        %v1747 = vpack.c.b16 %v1523, %v1519
        %v1748 = vpack.c.b16 %v1524, %v1520
        %v1749 = vpack.c.b16 %v1525, %v1521
        %v1750 = vpack.c.b16 %v1530, %v1526
        %v1751 = vpack.c.b16 %v1531, %v1527
        %v1752 = vpack.c.b16 %v1532, %v1528
        %v1753 = vpack.c.b16 %v1533, %v1529
        %v1754 = vpack.c.b16 %v1538, %v1534
        %v1755 = vpack.c.b16 %v1539, %v1535
        %v1756 = vpack.c.b16 %v1540, %v1536
        %v1757 = vpack.c.b16 %v1541, %v1537
        %v1758 = vpack.c.b16 %v1546, %v1542
        %v1759 = vpack.c.b16 %v1547, %v1543
        %v1760 = vpack.c.b16 %v1548, %v1544
        %v1761 = vpack.c.b16 %v1549, %v1545
        %v1762 = vpack.c.b16 %v1554, %v1550
        %v1763 = vpack.c.b16 %v1555, %v1551
        %v1764 = vpack.c.b16 %v1556, %v1552
        %v1765 = vpack.c.b16 %v1557, %v1553
        %v1766 = vpack.c.b16 %v1562, %v1558
        %v1767 = vpack.c.b16 %v1563, %v1559
        %v1768 = vpack.c.b16 %v1564, %v1560
        %v1769 = vpack.c.b16 %v1565, %v1561
        %v1770 = vpack.c.b16 %v1570, %v1566
        %v1771 = vpack.c.b16 %v1571, %v1567
        %v1772 = vpack.c.b16 %v1572, %v1568
        %v1773 = vpack.c.b16 %v1573, %v1569
        %v1774 = vpack.c.b16 %v1578, %v1574
        %v1775 = vpack.c.b16 %v1579, %v1575
        %v1776 = vpack.c.b16 %v1580, %v1576
        %v1777 = vpack.c.b16 %v1581, %v1577
        %v1778 = vpack.c.b16 %v1586, %v1582
        %v1779 = vpack.c.b16 %v1587, %v1583
        %v1780 = vpack.c.b16 %v1588, %v1584
        %v1781 = vpack.c.b16 %v1589, %v1585
        %v1782 = vpack.c.b16 %v1594, %v1590
        %v1783 = vpack.c.b16 %v1595, %v1591
        %v1784 = vpack.c.b16 %v1596, %v1592
        %v1785 = vpack.c.b16 %v1597, %v1593
        %v1786 = vpack.c.b16 %v1602, %v1598
        %v1787 = vpack.c.b16 %v1603, %v1599
        %v1788 = vpack.c.b16 %v1604, %v1600
        %v1789 = vpack.c.b16 %v1605, %v1601
        %v1790 = vpack.c.b16 %v1610, %v1606
        %v1791 = vpack.c.b16 %v1611, %v1607
        %v1792 = vpack.c.b16 %v1612, %v1608
        %v1793 = vpack.c.b16 %v1613, %v1609
        %v1794 = vpack.c.b16 %v1618, %v1614
        %v1795 = vpack.c.b16 %v1619, %v1615
        %v1796 = vpack.c.b16 %v1620, %v1616
        %v1797 = vpack.c.b16 %v1621, %v1617
        %v1798 = vpack.c.b16 %v1626, %v1622
        %v1799 = vpack.c.b16 %v1627, %v1623
        %v1800 = vpack.c.b16 %v1628, %v1624
        %v1801 = vpack.c.b16 %v1629, %v1625
        %v1802 = vpack.c.b16 %v1634, %v1630
        %v1803 = vpack.c.b16 %v1635, %v1631
        %v1804 = vpack.c.b16 %v1636, %v1632
        %v1805 = vpack.c.b16 %v1637, %v1633
        %v1806 = vpack.c.b16 %v1642, %v1638
        %v1807 = vpack.c.b16 %v1643, %v1639
        %v1808 = vpack.c.b16 %v1644, %v1640
        %v1809 = vpack.c.b16 %v1645, %v1641
        %v1810 = vpack.c.b16 %v1650, %v1646
        %v1811 = vpack.c.b16 %v1651, %v1647
        %v1812 = vpack.c.b16 %v1652, %v1648
        %v1813 = vpack.c.b16 %v1653, %v1649
        %v1814 = vpack.c.b16 %v1658, %v1654
        %v1815 = vpack.c.b16 %v1659, %v1655
        %v1816 = vpack.c.b16 %v1660, %v1656
        %v1817 = vpack.c.b16 %v1661, %v1657
        %v1818 = vpack.c.b16 %v1666, %v1662
        %v1819 = vpack.c.b16 %v1667, %v1663
        %v1820 = vpack.c.b16 %v1668, %v1664
        %v1821 = vpack.c.b16 %v1669, %v1665
        %v1822 = vpack.c.b16 %v1674, %v1670
        %v1823 = vpack.c.b16 %v1675, %v1671
        %v1824 = vpack.c.b16 %v1676, %v1672
        %v1825 = vpack.c.b16 %v1677, %v1673
        %v1826 = vpack.c.b16 %v1682, %v1678
        %v1827 = vpack.c.b16 %v1683, %v1679
        %v1828 = vpack.c.b16 %v1684, %v1680
        %v1829 = vpack.c.b16 %v1685, %v1681
        %v1830 = vpack.c.b16 %v1690, %v1686
        %v1831 = vpack.c.b16 %v1691, %v1687
        %v1832 = vpack.c.b16 %v1692, %v1688
        %v1833 = vpack.c.b16 %v1693, %v1689
        %v1834 = vpack.c.b16 %v1698, %v1694
        %v1835 = vpack.c.b16 %v1699, %v1695
        %v1836 = vpack.c.b16 %v1700, %v1696
        %v1837 = vpack.c.b16 %v1701, %v1697
        %v1838 = vpack.c.b16 %v1706, %v1702
        %v1839 = vpack.c.b16 %v1707, %v1703
        %v1840 = vpack.c.b16 %v1708, %v1704
        %v1841 = vpack.c.b16 %v1709, %v1705
        %v1842 = vpack.c.b16 %v1714, %v1710
        %v1843 = vpack.c.b16 %v1715, %v1711
        %v1844 = vpack.c.b16 %v1716, %v1712
        %v1845 = vpack.c.b16 %v1717, %v1713
        %1974 = vmatpush.bf16.msra.mxu0 %v1746
        %1975 = vmatpush.bf16.msra.mxu0 %v1742
        %1976 = vmatpush.bf16.msra.mxu0 %v1738
        %1977 = vmatpush.bf16.msra.mxu0 %v1734
        %1978 = vmatpush.bf16.msra.mxu0 %v1730
        %1979 = vmatpush.bf16.msra.mxu0 %v1726
        %1980 = vmatpush.bf16.msra.mxu0 %v1722
        %1981 = vmatpush.bf16.msra.mxu0 %v1718
        %1982 = vmatmul.bf16.gmra.mxu0 %v1133
        %v1983 = vpop.f32.mrf.mxu0
        %v1984 = vadd.f32 %v1326, %v1983
        %v1985 = vpop.f32.mrf.mxu0
        %v1986 = vadd.f32 %v1326, %v1985
        %1987 = vmatmul.bf16.gmra.mxu0 %v1137
        %v1988 = vpop.f32.mrf.mxu0
        %v1989 = vadd.f32 %v1326, %v1988
        %v1990 = vpop.f32.mrf.mxu0
        %v1991 = vadd.f32 %v1326, %v1990
        %1992 = vmatmul.bf16.gmra.mxu0 %v1141
        %v1993 = vpop.f32.mrf.mxu0
        %v1994 = vadd.f32 %v1326, %v1993
        %v1995 = vpop.f32.mrf.mxu0
        %v1996 = vadd.f32 %v1326, %v1995
        %1997 = vmatmul.bf16.gmra.mxu0 %v1145
        %v1998 = vpop.f32.mrf.mxu0
        %v1999 = vadd.f32 %v1326, %v1998
        %v2000 = vpop.f32.mrf.mxu0
        %v2001 = vadd.f32 %v1326, %v2000
        %2002 = vmatmul.bf16.gmra.mxu0 %v1149
        %v2003 = vpop.f32.mrf.mxu0
        %v2004 = vadd.f32 %v1326, %v2003
        %v2005 = vpop.f32.mrf.mxu0
        %v2006 = vadd.f32 %v1326, %v2005
        %2007 = vmatmul.bf16.gmra.mxu0 %v1153
        %v2008 = vpop.f32.mrf.mxu0
        %v2009 = vadd.f32 %v1326, %v2008
        %v2010 = vpop.f32.mrf.mxu0
        %v2011 = vadd.f32 %v1326, %v2010
        %2012 = vmatmul.bf16.gmra.mxu0 %v1157
        %v2013 = vpop.f32.mrf.mxu0
        %v2014 = vadd.f32 %v1326, %v2013
        %v2015 = vpop.f32.mrf.mxu0
        %v2016 = vadd.f32 %v1326, %v2015
        %2017 = vmatmul.bf16.gmra.mxu0 %v1161
        %v2018 = vpop.f32.mrf.mxu0
        %v2019 = vadd.f32 %v1326, %v2018
        %v2020 = vpop.f32.mrf.mxu0
        %v2021 = vadd.f32 %v1326, %v2020
        %2022 = vmatmul.bf16.gmra.mxu0 %v1165
        %v2023 = vpop.f32.mrf.mxu0
        %v2024 = vadd.f32 %v1326, %v2023
        %v2025 = vpop.f32.mrf.mxu0
        %v2026 = vadd.f32 %v1326, %v2025
        %2027 = vmatmul.bf16.gmra.mxu0 %v1169
        %v2028 = vpop.f32.mrf.mxu0
        %v2029 = vadd.f32 %v1326, %v2028
        %v2030 = vpop.f32.mrf.mxu0
        %v2031 = vadd.f32 %v1326, %v2030
        %2032 = vmatmul.bf16.gmra.mxu0 %v1173
        %v2033 = vpop.f32.mrf.mxu0
        %v2034 = vadd.f32 %v1326, %v2033
        %v2035 = vpop.f32.mrf.mxu0
        %v2036 = vadd.f32 %v1326, %v2035
        %2037 = vmatmul.bf16.gmra.mxu0 %v1177
        %v2038 = vpop.f32.mrf.mxu0
        %v2039 = vadd.f32 %v1326, %v2038
        %v2040 = vpop.f32.mrf.mxu0
        %v2041 = vadd.f32 %v1326, %v2040
        %2042 = vmatmul.bf16.gmra.mxu0 %v1181
        %v2043 = vpop.f32.mrf.mxu0
        %v2044 = vadd.f32 %v1326, %v2043
        %v2045 = vpop.f32.mrf.mxu0
        %v2046 = vadd.f32 %v1326, %v2045
        %2047 = vmatmul.bf16.gmra.mxu0 %v1185
        %v2048 = vpop.f32.mrf.mxu0
        %v2049 = vadd.f32 %v1326, %v2048
        %v2050 = vpop.f32.mrf.mxu0
        %v2051 = vadd.f32 %v1326, %v2050
        %2052 = vmatmul.bf16.gmra.mxu0 %v1189
        %v2053 = vpop.f32.mrf.mxu0
        %v2054 = vadd.f32 %v1326, %v2053
        %v2055 = vpop.f32.mrf.mxu0
        %v2056 = vadd.f32 %v1326, %v2055
        %2057 = vmatmul.bf16.gmra.mxu0 %v1193
        %v2058 = vpop.f32.mrf.mxu0
        %v2059 = vadd.f32 %v1326, %v2058
        %v2060 = vpop.f32.mrf.mxu0
        %v2061 = vadd.f32 %v1326, %v2060
        %2062 = vdwg.mxu0
        %2063 = vmatpush.bf16.msra.mxu0 %v1778
        %2064 = vmatpush.bf16.msra.mxu0 %v1774
        %2065 = vmatpush.bf16.msra.mxu0 %v1770
        %2066 = vmatpush.bf16.msra.mxu0 %v1766
        %2067 = vmatpush.bf16.msra.mxu0 %v1762
        %2068 = vmatpush.bf16.msra.mxu0 %v1758
        %2069 = vmatpush.bf16.msra.mxu0 %v1754
        %2070 = vmatpush.bf16.msra.mxu0 %v1750
        %2071 = vmatmul.bf16.gmra.mxu0 %v1134
        %v2072 = vpop.f32.mrf.mxu0
        %v2073 = vadd.f32 %v1984, %v2072
        %v2074 = vpop.f32.mrf.mxu0
        %v2075 = vadd.f32 %v1986, %v2074
        %2076 = vmatmul.bf16.gmra.mxu0 %v1138
        %v2077 = vpop.f32.mrf.mxu0
        %v2078 = vadd.f32 %v1989, %v2077
        %v2079 = vpop.f32.mrf.mxu0
        %v2080 = vadd.f32 %v1991, %v2079
        %2081 = vmatmul.bf16.gmra.mxu0 %v1142
        %v2082 = vpop.f32.mrf.mxu0
        %v2083 = vadd.f32 %v1994, %v2082
        %v2084 = vpop.f32.mrf.mxu0
        %v2085 = vadd.f32 %v1996, %v2084
        %2086 = vmatmul.bf16.gmra.mxu0 %v1146
        %v2087 = vpop.f32.mrf.mxu0
        %v2088 = vadd.f32 %v1999, %v2087
        %v2089 = vpop.f32.mrf.mxu0
        %v2090 = vadd.f32 %v2001, %v2089
        %2091 = vmatmul.bf16.gmra.mxu0 %v1150
        %v2092 = vpop.f32.mrf.mxu0
        %v2093 = vadd.f32 %v2004, %v2092
        %v2094 = vpop.f32.mrf.mxu0
        %v2095 = vadd.f32 %v2006, %v2094
        %2096 = vmatmul.bf16.gmra.mxu0 %v1154
        %v2097 = vpop.f32.mrf.mxu0
        %v2098 = vadd.f32 %v2009, %v2097
        %v2099 = vpop.f32.mrf.mxu0
        %v2100 = vadd.f32 %v2011, %v2099
        %2101 = vmatmul.bf16.gmra.mxu0 %v1158
        %v2102 = vpop.f32.mrf.mxu0
        %v2103 = vadd.f32 %v2014, %v2102
        %v2104 = vpop.f32.mrf.mxu0
        %v2105 = vadd.f32 %v2016, %v2104
        %2106 = vmatmul.bf16.gmra.mxu0 %v1162
        %v2107 = vpop.f32.mrf.mxu0
        %v2108 = vadd.f32 %v2019, %v2107
        %v2109 = vpop.f32.mrf.mxu0
        %v2110 = vadd.f32 %v2021, %v2109
        %2111 = vmatmul.bf16.gmra.mxu0 %v1166
        %v2112 = vpop.f32.mrf.mxu0
        %v2113 = vadd.f32 %v2024, %v2112
        %v2114 = vpop.f32.mrf.mxu0
        %v2115 = vadd.f32 %v2026, %v2114
        %2116 = vmatmul.bf16.gmra.mxu0 %v1170
        %v2117 = vpop.f32.mrf.mxu0
        %v2118 = vadd.f32 %v2029, %v2117
        %v2119 = vpop.f32.mrf.mxu0
        %v2120 = vadd.f32 %v2031, %v2119
        %2121 = vmatmul.bf16.gmra.mxu0 %v1174
        %v2122 = vpop.f32.mrf.mxu0
        %v2123 = vadd.f32 %v2034, %v2122
        %v2124 = vpop.f32.mrf.mxu0
        %v2125 = vadd.f32 %v2036, %v2124
        %2126 = vmatmul.bf16.gmra.mxu0 %v1178
        %v2127 = vpop.f32.mrf.mxu0
        %v2128 = vadd.f32 %v2039, %v2127
        %v2129 = vpop.f32.mrf.mxu0
        %v2130 = vadd.f32 %v2041, %v2129
        %2131 = vmatmul.bf16.gmra.mxu0 %v1182
        %v2132 = vpop.f32.mrf.mxu0
        %v2133 = vadd.f32 %v2044, %v2132
        %v2134 = vpop.f32.mrf.mxu0
        %v2135 = vadd.f32 %v2046, %v2134
        %2136 = vmatmul.bf16.gmra.mxu0 %v1186
        %v2137 = vpop.f32.mrf.mxu0
        %v2138 = vadd.f32 %v2049, %v2137
        %v2139 = vpop.f32.mrf.mxu0
        %v2140 = vadd.f32 %v2051, %v2139
        %2141 = vmatmul.bf16.gmra.mxu0 %v1190
        %v2142 = vpop.f32.mrf.mxu0
        %v2143 = vadd.f32 %v2054, %v2142
        %v2144 = vpop.f32.mrf.mxu0
        %v2145 = vadd.f32 %v2056, %v2144
        %2146 = vmatmul.bf16.gmra.mxu0 %v1194
        %v2147 = vpop.f32.mrf.mxu0
        %v2148 = vadd.f32 %v2059, %v2147
        %v2149 = vpop.f32.mrf.mxu0
        %v2150 = vadd.f32 %v2061, %v2149
        %2151 = vdwg.mxu0
        %2152 = vmatpush.bf16.msra.mxu0 %v1810
        %2153 = vmatpush.bf16.msra.mxu0 %v1806
        %2154 = vmatpush.bf16.msra.mxu0 %v1802
        %2155 = vmatpush.bf16.msra.mxu0 %v1798
        %2156 = vmatpush.bf16.msra.mxu0 %v1794
        %2157 = vmatpush.bf16.msra.mxu0 %v1790
        %2158 = vmatpush.bf16.msra.mxu0 %v1786
        %2159 = vmatpush.bf16.msra.mxu0 %v1782
        %2160 = vmatmul.bf16.gmra.mxu0 %v1135
        %v2161 = vpop.f32.mrf.mxu0
        %v2162 = vadd.f32 %v2073, %v2161
        %v2163 = vpop.f32.mrf.mxu0
        %v2164 = vadd.f32 %v2075, %v2163
        %2165 = vmatmul.bf16.gmra.mxu0 %v1139
        %v2166 = vpop.f32.mrf.mxu0
        %v2167 = vadd.f32 %v2078, %v2166
        %v2168 = vpop.f32.mrf.mxu0
        %v2169 = vadd.f32 %v2080, %v2168
        %2170 = vmatmul.bf16.gmra.mxu0 %v1143
        %v2171 = vpop.f32.mrf.mxu0
        %v2172 = vadd.f32 %v2083, %v2171
        %v2173 = vpop.f32.mrf.mxu0
        %v2174 = vadd.f32 %v2085, %v2173
        %2175 = vmatmul.bf16.gmra.mxu0 %v1147
        %v2176 = vpop.f32.mrf.mxu0
        %v2177 = vadd.f32 %v2088, %v2176
        %v2178 = vpop.f32.mrf.mxu0
        %v2179 = vadd.f32 %v2090, %v2178
        %2180 = vmatmul.bf16.gmra.mxu0 %v1151
        %v2181 = vpop.f32.mrf.mxu0
        %v2182 = vadd.f32 %v2093, %v2181
        %v2183 = vpop.f32.mrf.mxu0
        %v2184 = vadd.f32 %v2095, %v2183
        %2185 = vmatmul.bf16.gmra.mxu0 %v1155
        %v2186 = vpop.f32.mrf.mxu0
        %v2187 = vadd.f32 %v2098, %v2186
        %v2188 = vpop.f32.mrf.mxu0
        %v2189 = vadd.f32 %v2100, %v2188
        %2190 = vmatmul.bf16.gmra.mxu0 %v1159
        %v2191 = vpop.f32.mrf.mxu0
        %v2192 = vadd.f32 %v2103, %v2191
        %v2193 = vpop.f32.mrf.mxu0
        %v2194 = vadd.f32 %v2105, %v2193
        %2195 = vmatmul.bf16.gmra.mxu0 %v1163
        %v2196 = vpop.f32.mrf.mxu0
        %v2197 = vadd.f32 %v2108, %v2196
        %v2198 = vpop.f32.mrf.mxu0
        %v2199 = vadd.f32 %v2110, %v2198
        %2200 = vmatmul.bf16.gmra.mxu0 %v1167
        %v2201 = vpop.f32.mrf.mxu0
        %v2202 = vadd.f32 %v2113, %v2201
        %v2203 = vpop.f32.mrf.mxu0
        %v2204 = vadd.f32 %v2115, %v2203
        %2205 = vmatmul.bf16.gmra.mxu0 %v1171
        %v2206 = vpop.f32.mrf.mxu0
        %v2207 = vadd.f32 %v2118, %v2206
        %v2208 = vpop.f32.mrf.mxu0
        %v2209 = vadd.f32 %v2120, %v2208
        %2210 = vmatmul.bf16.gmra.mxu0 %v1175
        %v2211 = vpop.f32.mrf.mxu0
        %v2212 = vadd.f32 %v2123, %v2211
        %v2213 = vpop.f32.mrf.mxu0
        %v2214 = vadd.f32 %v2125, %v2213
        %2215 = vmatmul.bf16.gmra.mxu0 %v1179
        %v2216 = vpop.f32.mrf.mxu0
        %v2217 = vadd.f32 %v2128, %v2216
        %v2218 = vpop.f32.mrf.mxu0
        %v2219 = vadd.f32 %v2130, %v2218
        %2220 = vmatmul.bf16.gmra.mxu0 %v1183
        %v2221 = vpop.f32.mrf.mxu0
        %v2222 = vadd.f32 %v2133, %v2221
        %v2223 = vpop.f32.mrf.mxu0
        %v2224 = vadd.f32 %v2135, %v2223
        %2225 = vmatmul.bf16.gmra.mxu0 %v1187
        %v2226 = vpop.f32.mrf.mxu0
        %v2227 = vadd.f32 %v2138, %v2226
        %v2228 = vpop.f32.mrf.mxu0
        %v2229 = vadd.f32 %v2140, %v2228
        %2230 = vmatmul.bf16.gmra.mxu0 %v1191
        %v2231 = vpop.f32.mrf.mxu0
        %v2232 = vadd.f32 %v2143, %v2231
        %v2233 = vpop.f32.mrf.mxu0
        %v2234 = vadd.f32 %v2145, %v2233
        %2235 = vmatmul.bf16.gmra.mxu0 %v1195
        %v2236 = vpop.f32.mrf.mxu0
        %v2237 = vadd.f32 %v2148, %v2236
        %v2238 = vpop.f32.mrf.mxu0
        %v2239 = vadd.f32 %v2150, %v2238
        %2240 = vdwg.mxu0
        %2241 = vmatpush.bf16.msra.mxu0 %v1842
        %2242 = vmatpush.bf16.msra.mxu0 %v1838
        %2243 = vmatpush.bf16.msra.mxu0 %v1834
        %2244 = vmatpush.bf16.msra.mxu0 %v1830
        %2245 = vmatpush.bf16.msra.mxu0 %v1826
        %2246 = vmatpush.bf16.msra.mxu0 %v1822
        %2247 = vmatpush.bf16.msra.mxu0 %v1818
        %2248 = vmatpush.bf16.msra.mxu0 %v1814
        %2249 = vmatmul.bf16.gmra.mxu0 %v1136
        %v2250 = vpop.f32.mrf.mxu0
        %v2251 = vadd.f32 %v2162, %v2250
        %v2252 = vpop.f32.mrf.mxu0
        %v2253 = vadd.f32 %v2164, %v2252
        %2254 = vmatmul.bf16.gmra.mxu0 %v1140
        %v2255 = vpop.f32.mrf.mxu0
        %v2256 = vadd.f32 %v2167, %v2255
        %v2257 = vpop.f32.mrf.mxu0
        %v2258 = vadd.f32 %v2169, %v2257
        %2259 = vmatmul.bf16.gmra.mxu0 %v1144
        %v2260 = vpop.f32.mrf.mxu0
        %v2261 = vadd.f32 %v2172, %v2260
        %v2262 = vpop.f32.mrf.mxu0
        %v2263 = vadd.f32 %v2174, %v2262
        %2264 = vmatmul.bf16.gmra.mxu0 %v1148
        %v2265 = vpop.f32.mrf.mxu0
        %v2266 = vadd.f32 %v2177, %v2265
        %v2267 = vpop.f32.mrf.mxu0
        %v2268 = vadd.f32 %v2179, %v2267
        %2269 = vmatmul.bf16.gmra.mxu0 %v1152
        %v2270 = vpop.f32.mrf.mxu0
        %v2271 = vadd.f32 %v2182, %v2270
        %v2272 = vpop.f32.mrf.mxu0
        %v2273 = vadd.f32 %v2184, %v2272
        %2274 = vmatmul.bf16.gmra.mxu0 %v1156
        %v2275 = vpop.f32.mrf.mxu0
        %v2276 = vadd.f32 %v2187, %v2275
        %v2277 = vpop.f32.mrf.mxu0
        %v2278 = vadd.f32 %v2189, %v2277
        %2279 = vmatmul.bf16.gmra.mxu0 %v1160
        %v2280 = vpop.f32.mrf.mxu0
        %v2281 = vadd.f32 %v2192, %v2280
        %v2282 = vpop.f32.mrf.mxu0
        %v2283 = vadd.f32 %v2194, %v2282
        %2284 = vmatmul.bf16.gmra.mxu0 %v1164
        %v2285 = vpop.f32.mrf.mxu0
        %v2286 = vadd.f32 %v2197, %v2285
        %v2287 = vpop.f32.mrf.mxu0
        %v2288 = vadd.f32 %v2199, %v2287
        %2289 = vmatmul.bf16.gmra.mxu0 %v1168
        %v2290 = vpop.f32.mrf.mxu0
        %v2291 = vadd.f32 %v2202, %v2290
        %v2292 = vpop.f32.mrf.mxu0
        %v2293 = vadd.f32 %v2204, %v2292
        %2294 = vmatmul.bf16.gmra.mxu0 %v1172
        %v2295 = vpop.f32.mrf.mxu0
        %v2296 = vadd.f32 %v2207, %v2295
        %v2297 = vpop.f32.mrf.mxu0
        %v2298 = vadd.f32 %v2209, %v2297
        %2299 = vmatmul.bf16.gmra.mxu0 %v1176
        %v2300 = vpop.f32.mrf.mxu0
        %v2301 = vadd.f32 %v2212, %v2300
        %v2302 = vpop.f32.mrf.mxu0
        %v2303 = vadd.f32 %v2214, %v2302
        %2304 = vmatmul.bf16.gmra.mxu0 %v1180
        %v2305 = vpop.f32.mrf.mxu0
        %v2306 = vadd.f32 %v2217, %v2305
        %v2307 = vpop.f32.mrf.mxu0
        %v2308 = vadd.f32 %v2219, %v2307
        %2309 = vmatmul.bf16.gmra.mxu0 %v1184
        %v2310 = vpop.f32.mrf.mxu0
        %v2311 = vadd.f32 %v2222, %v2310
        %v2312 = vpop.f32.mrf.mxu0
        %v2313 = vadd.f32 %v2224, %v2312
        %2314 = vmatmul.bf16.gmra.mxu0 %v1188
        %v2315 = vpop.f32.mrf.mxu0
        %v2316 = vadd.f32 %v2227, %v2315
        %v2317 = vpop.f32.mrf.mxu0
        %v2318 = vadd.f32 %v2229, %v2317
        %2319 = vmatmul.bf16.gmra.mxu0 %v1192
        %v2320 = vpop.f32.mrf.mxu0
        %v2321 = vadd.f32 %v2232, %v2320
        %v2322 = vpop.f32.mrf.mxu0
        %v2323 = vadd.f32 %v2234, %v2322
        %2324 = vmatmul.bf16.gmra.mxu0 %v1196
        %v2325 = vpop.f32.mrf.mxu0
        %v2326 = vadd.f32 %v2237, %v2325
        %v2327 = vpop.f32.mrf.mxu0
        %v2328 = vadd.f32 %v2239, %v2327
        %2329 = vdwg.mxu0
        %2330 = vmatpush.bf16.msra.mxu0 %v1747
        %2331 = vmatpush.bf16.msra.mxu0 %v1743
        %2332 = vmatpush.bf16.msra.mxu0 %v1739
        %2333 = vmatpush.bf16.msra.mxu0 %v1735
        %2334 = vmatpush.bf16.msra.mxu0 %v1731
        %2335 = vmatpush.bf16.msra.mxu0 %v1727
        %2336 = vmatpush.bf16.msra.mxu0 %v1723
        %2337 = vmatpush.bf16.msra.mxu0 %v1719
        %2338 = vmatmul.bf16.gmra.mxu0 %v1133
        %v2339 = vpop.f32.mrf.mxu0
        %v2340 = vadd.f32 %v1327, %v2339
        %v2341 = vpop.f32.mrf.mxu0
        %v2342 = vadd.f32 %v1327, %v2341
        %2343 = vmatmul.bf16.gmra.mxu0 %v1137
        %v2344 = vpop.f32.mrf.mxu0
        %v2345 = vadd.f32 %v1327, %v2344
        %v2346 = vpop.f32.mrf.mxu0
        %v2347 = vadd.f32 %v1327, %v2346
        %2348 = vmatmul.bf16.gmra.mxu0 %v1141
        %v2349 = vpop.f32.mrf.mxu0
        %v2350 = vadd.f32 %v1327, %v2349
        %v2351 = vpop.f32.mrf.mxu0
        %v2352 = vadd.f32 %v1327, %v2351
        %2353 = vmatmul.bf16.gmra.mxu0 %v1145
        %v2354 = vpop.f32.mrf.mxu0
        %v2355 = vadd.f32 %v1327, %v2354
        %v2356 = vpop.f32.mrf.mxu0
        %v2357 = vadd.f32 %v1327, %v2356
        %2358 = vmatmul.bf16.gmra.mxu0 %v1149
        %v2359 = vpop.f32.mrf.mxu0
        %v2360 = vadd.f32 %v1327, %v2359
        %v2361 = vpop.f32.mrf.mxu0
        %v2362 = vadd.f32 %v1327, %v2361
        %2363 = vmatmul.bf16.gmra.mxu0 %v1153
        %v2364 = vpop.f32.mrf.mxu0
        %v2365 = vadd.f32 %v1327, %v2364
        %v2366 = vpop.f32.mrf.mxu0
        %v2367 = vadd.f32 %v1327, %v2366
        %2368 = vmatmul.bf16.gmra.mxu0 %v1157
        %v2369 = vpop.f32.mrf.mxu0
        %v2370 = vadd.f32 %v1327, %v2369
        %v2371 = vpop.f32.mrf.mxu0
        %v2372 = vadd.f32 %v1327, %v2371
        %2373 = vmatmul.bf16.gmra.mxu0 %v1161
        %v2374 = vpop.f32.mrf.mxu0
        %v2375 = vadd.f32 %v1327, %v2374
        %v2376 = vpop.f32.mrf.mxu0
        %v2377 = vadd.f32 %v1327, %v2376
        %2378 = vmatmul.bf16.gmra.mxu0 %v1165
        %v2379 = vpop.f32.mrf.mxu0
        %v2380 = vadd.f32 %v1327, %v2379
        %v2381 = vpop.f32.mrf.mxu0
        %v2382 = vadd.f32 %v1327, %v2381
        %2383 = vmatmul.bf16.gmra.mxu0 %v1169
        %v2384 = vpop.f32.mrf.mxu0
        %v2385 = vadd.f32 %v1327, %v2384
        %v2386 = vpop.f32.mrf.mxu0
        %v2387 = vadd.f32 %v1327, %v2386
        %2388 = vmatmul.bf16.gmra.mxu0 %v1173
        %v2389 = vpop.f32.mrf.mxu0
        %v2390 = vadd.f32 %v1327, %v2389
        %v2391 = vpop.f32.mrf.mxu0
        %v2392 = vadd.f32 %v1327, %v2391
        %2393 = vmatmul.bf16.gmra.mxu0 %v1177
        %v2394 = vpop.f32.mrf.mxu0
        %v2395 = vadd.f32 %v1327, %v2394
        %v2396 = vpop.f32.mrf.mxu0
        %v2397 = vadd.f32 %v1327, %v2396
        %2398 = vmatmul.bf16.gmra.mxu0 %v1181
        %v2399 = vpop.f32.mrf.mxu0
        %v2400 = vadd.f32 %v1327, %v2399
        %v2401 = vpop.f32.mrf.mxu0
        %v2402 = vadd.f32 %v1327, %v2401
        %2403 = vmatmul.bf16.gmra.mxu0 %v1185
        %v2404 = vpop.f32.mrf.mxu0
        %v2405 = vadd.f32 %v1327, %v2404
        %v2406 = vpop.f32.mrf.mxu0
        %v2407 = vadd.f32 %v1327, %v2406
        %2408 = vmatmul.bf16.gmra.mxu0 %v1189
        %v2409 = vpop.f32.mrf.mxu0
        %v2410 = vadd.f32 %v1327, %v2409
        %v2411 = vpop.f32.mrf.mxu0
        %v2412 = vadd.f32 %v1327, %v2411
        %2413 = vmatmul.bf16.gmra.mxu0 %v1193
        %v2414 = vpop.f32.mrf.mxu0
        %v2415 = vadd.f32 %v1327, %v2414
        %v2416 = vpop.f32.mrf.mxu0
        %v2417 = vadd.f32 %v1327, %v2416
        %2418 = vdwg.mxu0
        %2419 = vmatpush.bf16.msra.mxu0 %v1779
        %2420 = vmatpush.bf16.msra.mxu0 %v1775
        %2421 = vmatpush.bf16.msra.mxu0 %v1771
        %2422 = vmatpush.bf16.msra.mxu0 %v1767
        %2423 = vmatpush.bf16.msra.mxu0 %v1763
        %2424 = vmatpush.bf16.msra.mxu0 %v1759
        %2425 = vmatpush.bf16.msra.mxu0 %v1755
        %2426 = vmatpush.bf16.msra.mxu0 %v1751
        %2427 = vmatmul.bf16.gmra.mxu0 %v1134
        %v2428 = vpop.f32.mrf.mxu0
        %v2429 = vadd.f32 %v2340, %v2428
        %v2430 = vpop.f32.mrf.mxu0
        %v2431 = vadd.f32 %v2342, %v2430
        %2432 = vmatmul.bf16.gmra.mxu0 %v1138
        %v2433 = vpop.f32.mrf.mxu0
        %v2434 = vadd.f32 %v2345, %v2433
        %v2435 = vpop.f32.mrf.mxu0
        %v2436 = vadd.f32 %v2347, %v2435
        %2437 = vmatmul.bf16.gmra.mxu0 %v1142
        %v2438 = vpop.f32.mrf.mxu0
        %v2439 = vadd.f32 %v2350, %v2438
        %v2440 = vpop.f32.mrf.mxu0
        %v2441 = vadd.f32 %v2352, %v2440
        %2442 = vmatmul.bf16.gmra.mxu0 %v1146
        %v2443 = vpop.f32.mrf.mxu0
        %v2444 = vadd.f32 %v2355, %v2443
        %v2445 = vpop.f32.mrf.mxu0
        %v2446 = vadd.f32 %v2357, %v2445
        %2447 = vmatmul.bf16.gmra.mxu0 %v1150
        %v2448 = vpop.f32.mrf.mxu0
        %v2449 = vadd.f32 %v2360, %v2448
        %v2450 = vpop.f32.mrf.mxu0
        %v2451 = vadd.f32 %v2362, %v2450
        %2452 = vmatmul.bf16.gmra.mxu0 %v1154
        %v2453 = vpop.f32.mrf.mxu0
        %v2454 = vadd.f32 %v2365, %v2453
        %v2455 = vpop.f32.mrf.mxu0
        %v2456 = vadd.f32 %v2367, %v2455
        %2457 = vmatmul.bf16.gmra.mxu0 %v1158
        %v2458 = vpop.f32.mrf.mxu0
        %v2459 = vadd.f32 %v2370, %v2458
        %v2460 = vpop.f32.mrf.mxu0
        %v2461 = vadd.f32 %v2372, %v2460
        %2462 = vmatmul.bf16.gmra.mxu0 %v1162
        %v2463 = vpop.f32.mrf.mxu0
        %v2464 = vadd.f32 %v2375, %v2463
        %v2465 = vpop.f32.mrf.mxu0
        %v2466 = vadd.f32 %v2377, %v2465
        %2467 = vmatmul.bf16.gmra.mxu0 %v1166
        %v2468 = vpop.f32.mrf.mxu0
        %v2469 = vadd.f32 %v2380, %v2468
        %v2470 = vpop.f32.mrf.mxu0
        %v2471 = vadd.f32 %v2382, %v2470
        %2472 = vmatmul.bf16.gmra.mxu0 %v1170
        %v2473 = vpop.f32.mrf.mxu0
        %v2474 = vadd.f32 %v2385, %v2473
        %v2475 = vpop.f32.mrf.mxu0
        %v2476 = vadd.f32 %v2387, %v2475
        %2477 = vmatmul.bf16.gmra.mxu0 %v1174
        %v2478 = vpop.f32.mrf.mxu0
        %v2479 = vadd.f32 %v2390, %v2478
        %v2480 = vpop.f32.mrf.mxu0
        %v2481 = vadd.f32 %v2392, %v2480
        %2482 = vmatmul.bf16.gmra.mxu0 %v1178
        %v2483 = vpop.f32.mrf.mxu0
        %v2484 = vadd.f32 %v2395, %v2483
        %v2485 = vpop.f32.mrf.mxu0
        %v2486 = vadd.f32 %v2397, %v2485
        %2487 = vmatmul.bf16.gmra.mxu0 %v1182
        %v2488 = vpop.f32.mrf.mxu0
        %v2489 = vadd.f32 %v2400, %v2488
        %v2490 = vpop.f32.mrf.mxu0
        %v2491 = vadd.f32 %v2402, %v2490
        %2492 = vmatmul.bf16.gmra.mxu0 %v1186
        %v2493 = vpop.f32.mrf.mxu0
        %v2494 = vadd.f32 %v2405, %v2493
        %v2495 = vpop.f32.mrf.mxu0
        %v2496 = vadd.f32 %v2407, %v2495
        %2497 = vmatmul.bf16.gmra.mxu0 %v1190
        %v2498 = vpop.f32.mrf.mxu0
        %v2499 = vadd.f32 %v2410, %v2498
        %v2500 = vpop.f32.mrf.mxu0
        %v2501 = vadd.f32 %v2412, %v2500
        %2502 = vmatmul.bf16.gmra.mxu0 %v1194
        %v2503 = vpop.f32.mrf.mxu0
        %v2504 = vadd.f32 %v2415, %v2503
        %v2505 = vpop.f32.mrf.mxu0
        %v2506 = vadd.f32 %v2417, %v2505
        %2507 = vdwg.mxu0
        %2508 = vmatpush.bf16.msra.mxu0 %v1811
        %2509 = vmatpush.bf16.msra.mxu0 %v1807
        %2510 = vmatpush.bf16.msra.mxu0 %v1803
        %2511 = vmatpush.bf16.msra.mxu0 %v1799
        %2512 = vmatpush.bf16.msra.mxu0 %v1795
        %2513 = vmatpush.bf16.msra.mxu0 %v1791
        %2514 = vmatpush.bf16.msra.mxu0 %v1787
        %2515 = vmatpush.bf16.msra.mxu0 %v1783
        %2516 = vmatmul.bf16.gmra.mxu0 %v1135
        %v2517 = vpop.f32.mrf.mxu0
        %v2518 = vadd.f32 %v2429, %v2517
        %v2519 = vpop.f32.mrf.mxu0
        %v2520 = vadd.f32 %v2431, %v2519
        %2521 = vmatmul.bf16.gmra.mxu0 %v1139
        %v2522 = vpop.f32.mrf.mxu0
        %v2523 = vadd.f32 %v2434, %v2522
        %v2524 = vpop.f32.mrf.mxu0
        %v2525 = vadd.f32 %v2436, %v2524
        %2526 = vmatmul.bf16.gmra.mxu0 %v1143
        %v2527 = vpop.f32.mrf.mxu0
        %v2528 = vadd.f32 %v2439, %v2527
        %v2529 = vpop.f32.mrf.mxu0
        %v2530 = vadd.f32 %v2441, %v2529
        %2531 = vmatmul.bf16.gmra.mxu0 %v1147
        %v2532 = vpop.f32.mrf.mxu0
        %v2533 = vadd.f32 %v2444, %v2532
        %v2534 = vpop.f32.mrf.mxu0
        %v2535 = vadd.f32 %v2446, %v2534
        %2536 = vmatmul.bf16.gmra.mxu0 %v1151
        %v2537 = vpop.f32.mrf.mxu0
        %v2538 = vadd.f32 %v2449, %v2537
        %v2539 = vpop.f32.mrf.mxu0
        %v2540 = vadd.f32 %v2451, %v2539
        %2541 = vmatmul.bf16.gmra.mxu0 %v1155
        %v2542 = vpop.f32.mrf.mxu0
        %v2543 = vadd.f32 %v2454, %v2542
        %v2544 = vpop.f32.mrf.mxu0
        %v2545 = vadd.f32 %v2456, %v2544
        %2546 = vmatmul.bf16.gmra.mxu0 %v1159
        %v2547 = vpop.f32.mrf.mxu0
        %v2548 = vadd.f32 %v2459, %v2547
        %v2549 = vpop.f32.mrf.mxu0
        %v2550 = vadd.f32 %v2461, %v2549
        %2551 = vmatmul.bf16.gmra.mxu0 %v1163
        %v2552 = vpop.f32.mrf.mxu0
        %v2553 = vadd.f32 %v2464, %v2552
        %v2554 = vpop.f32.mrf.mxu0
        %v2555 = vadd.f32 %v2466, %v2554
        %2556 = vmatmul.bf16.gmra.mxu0 %v1167
        %v2557 = vpop.f32.mrf.mxu0
        %v2558 = vadd.f32 %v2469, %v2557
        %v2559 = vpop.f32.mrf.mxu0
        %v2560 = vadd.f32 %v2471, %v2559
        %2561 = vmatmul.bf16.gmra.mxu0 %v1171
        %v2562 = vpop.f32.mrf.mxu0
        %v2563 = vadd.f32 %v2474, %v2562
        %v2564 = vpop.f32.mrf.mxu0
        %v2565 = vadd.f32 %v2476, %v2564
        %2566 = vmatmul.bf16.gmra.mxu0 %v1175
        %v2567 = vpop.f32.mrf.mxu0
        %v2568 = vadd.f32 %v2479, %v2567
        %v2569 = vpop.f32.mrf.mxu0
        %v2570 = vadd.f32 %v2481, %v2569
        %2571 = vmatmul.bf16.gmra.mxu0 %v1179
        %v2572 = vpop.f32.mrf.mxu0
        %v2573 = vadd.f32 %v2484, %v2572
        %v2574 = vpop.f32.mrf.mxu0
        %v2575 = vadd.f32 %v2486, %v2574
        %2576 = vmatmul.bf16.gmra.mxu0 %v1183
        %v2577 = vpop.f32.mrf.mxu0
        %v2578 = vadd.f32 %v2489, %v2577
        %v2579 = vpop.f32.mrf.mxu0
        %v2580 = vadd.f32 %v2491, %v2579
        %2581 = vmatmul.bf16.gmra.mxu0 %v1187
        %v2582 = vpop.f32.mrf.mxu0
        %v2583 = vadd.f32 %v2494, %v2582
        %v2584 = vpop.f32.mrf.mxu0
        %v2585 = vadd.f32 %v2496, %v2584
        %2586 = vmatmul.bf16.gmra.mxu0 %v1191
        %v2587 = vpop.f32.mrf.mxu0
        %v2588 = vadd.f32 %v2499, %v2587
        %v2589 = vpop.f32.mrf.mxu0
        %v2590 = vadd.f32 %v2501, %v2589
        %2591 = vmatmul.bf16.gmra.mxu0 %v1195
        %v2592 = vpop.f32.mrf.mxu0
        %v2593 = vadd.f32 %v2504, %v2592
        %v2594 = vpop.f32.mrf.mxu0
        %v2595 = vadd.f32 %v2506, %v2594
        %2596 = vdwg.mxu0
        %2597 = vmatpush.bf16.msra.mxu0 %v1843
        %2598 = vmatpush.bf16.msra.mxu0 %v1839
        %2599 = vmatpush.bf16.msra.mxu0 %v1835
        %2600 = vmatpush.bf16.msra.mxu0 %v1831
        %2601 = vmatpush.bf16.msra.mxu0 %v1827
        %2602 = vmatpush.bf16.msra.mxu0 %v1823
        %2603 = vmatpush.bf16.msra.mxu0 %v1819
        %2604 = vmatpush.bf16.msra.mxu0 %v1815
        %2605 = vmatmul.bf16.gmra.mxu0 %v1136
        %v2606 = vpop.f32.mrf.mxu0
        %v2607 = vadd.f32 %v2518, %v2606
        %v2608 = vpop.f32.mrf.mxu0
        %v2609 = vadd.f32 %v2520, %v2608
        %2610 = vmatmul.bf16.gmra.mxu0 %v1140
        %v2611 = vpop.f32.mrf.mxu0
        %v2612 = vadd.f32 %v2523, %v2611
        %v2613 = vpop.f32.mrf.mxu0
        %v2614 = vadd.f32 %v2525, %v2613
        %2615 = vmatmul.bf16.gmra.mxu0 %v1144
        %v2616 = vpop.f32.mrf.mxu0
        %v2617 = vadd.f32 %v2528, %v2616
        %v2618 = vpop.f32.mrf.mxu0
        %v2619 = vadd.f32 %v2530, %v2618
        %2620 = vmatmul.bf16.gmra.mxu0 %v1148
        %v2621 = vpop.f32.mrf.mxu0
        %v2622 = vadd.f32 %v2533, %v2621
        %v2623 = vpop.f32.mrf.mxu0
        %v2624 = vadd.f32 %v2535, %v2623
        %2625 = vmatmul.bf16.gmra.mxu0 %v1152
        %v2626 = vpop.f32.mrf.mxu0
        %v2627 = vadd.f32 %v2538, %v2626
        %v2628 = vpop.f32.mrf.mxu0
        %v2629 = vadd.f32 %v2540, %v2628
        %2630 = vmatmul.bf16.gmra.mxu0 %v1156
        %v2631 = vpop.f32.mrf.mxu0
        %v2632 = vadd.f32 %v2543, %v2631
        %v2633 = vpop.f32.mrf.mxu0
        %v2634 = vadd.f32 %v2545, %v2633
        %2635 = vmatmul.bf16.gmra.mxu0 %v1160
        %v2636 = vpop.f32.mrf.mxu0
        %v2637 = vadd.f32 %v2548, %v2636
        %v2638 = vpop.f32.mrf.mxu0
        %v2639 = vadd.f32 %v2550, %v2638
        %2640 = vmatmul.bf16.gmra.mxu0 %v1164
        %v2641 = vpop.f32.mrf.mxu0
        %v2642 = vadd.f32 %v2553, %v2641
        %v2643 = vpop.f32.mrf.mxu0
        %v2644 = vadd.f32 %v2555, %v2643
        %2645 = vmatmul.bf16.gmra.mxu0 %v1168
        %v2646 = vpop.f32.mrf.mxu0
        %v2647 = vadd.f32 %v2558, %v2646
        %v2648 = vpop.f32.mrf.mxu0
        %v2649 = vadd.f32 %v2560, %v2648
        %2650 = vmatmul.bf16.gmra.mxu0 %v1172
        %v2651 = vpop.f32.mrf.mxu0
        %v2652 = vadd.f32 %v2563, %v2651
        %v2653 = vpop.f32.mrf.mxu0
        %v2654 = vadd.f32 %v2565, %v2653
        %2655 = vmatmul.bf16.gmra.mxu0 %v1176
        %v2656 = vpop.f32.mrf.mxu0
        %v2657 = vadd.f32 %v2568, %v2656
        %v2658 = vpop.f32.mrf.mxu0
        %v2659 = vadd.f32 %v2570, %v2658
        %2660 = vmatmul.bf16.gmra.mxu0 %v1180
        %v2661 = vpop.f32.mrf.mxu0
        %v2662 = vadd.f32 %v2573, %v2661
        %v2663 = vpop.f32.mrf.mxu0
        %v2664 = vadd.f32 %v2575, %v2663
        %2665 = vmatmul.bf16.gmra.mxu0 %v1184
        %v2666 = vpop.f32.mrf.mxu0
        %v2667 = vadd.f32 %v2578, %v2666
        %v2668 = vpop.f32.mrf.mxu0
        %v2669 = vadd.f32 %v2580, %v2668
        %2670 = vmatmul.bf16.gmra.mxu0 %v1188
        %v2671 = vpop.f32.mrf.mxu0
        %v2672 = vadd.f32 %v2583, %v2671
        %v2673 = vpop.f32.mrf.mxu0
        %v2674 = vadd.f32 %v2585, %v2673
        %2675 = vmatmul.bf16.gmra.mxu0 %v1192
        %v2676 = vpop.f32.mrf.mxu0
        %v2677 = vadd.f32 %v2588, %v2676
        %v2678 = vpop.f32.mrf.mxu0
        %v2679 = vadd.f32 %v2590, %v2678
        %2680 = vmatmul.bf16.gmra.mxu0 %v1196
        %v2681 = vpop.f32.mrf.mxu0
        %v2682 = vadd.f32 %v2593, %v2681
        %v2683 = vpop.f32.mrf.mxu0
        %v2684 = vadd.f32 %v2595, %v2683
        %2685 = vdwg.mxu0
        %2686 = vmatpush.bf16.msra.mxu0 %v1748
        %2687 = vmatpush.bf16.msra.mxu0 %v1744
        %2688 = vmatpush.bf16.msra.mxu0 %v1740
        %2689 = vmatpush.bf16.msra.mxu0 %v1736
        %2690 = vmatpush.bf16.msra.mxu0 %v1732
        %2691 = vmatpush.bf16.msra.mxu0 %v1728
        %2692 = vmatpush.bf16.msra.mxu0 %v1724
        %2693 = vmatpush.bf16.msra.mxu0 %v1720
        %2694 = vmatmul.bf16.gmra.mxu0 %v1133
        %v2695 = vpop.f32.mrf.mxu0
        %v2696 = vadd.f32 %v1328, %v2695
        %v2697 = vpop.f32.mrf.mxu0
        %v2698 = vadd.f32 %v1328, %v2697
        %2699 = vmatmul.bf16.gmra.mxu0 %v1137
        %v2700 = vpop.f32.mrf.mxu0
        %v2701 = vadd.f32 %v1328, %v2700
        %v2702 = vpop.f32.mrf.mxu0
        %v2703 = vadd.f32 %v1328, %v2702
        %2704 = vmatmul.bf16.gmra.mxu0 %v1141
        %v2705 = vpop.f32.mrf.mxu0
        %v2706 = vadd.f32 %v1328, %v2705
        %v2707 = vpop.f32.mrf.mxu0
        %v2708 = vadd.f32 %v1328, %v2707
        %2709 = vmatmul.bf16.gmra.mxu0 %v1145
        %v2710 = vpop.f32.mrf.mxu0
        %v2711 = vadd.f32 %v1328, %v2710
        %v2712 = vpop.f32.mrf.mxu0
        %v2713 = vadd.f32 %v1328, %v2712
        %2714 = vmatmul.bf16.gmra.mxu0 %v1149
        %v2715 = vpop.f32.mrf.mxu0
        %v2716 = vadd.f32 %v1328, %v2715
        %v2717 = vpop.f32.mrf.mxu0
        %v2718 = vadd.f32 %v1328, %v2717
        %2719 = vmatmul.bf16.gmra.mxu0 %v1153
        %v2720 = vpop.f32.mrf.mxu0
        %v2721 = vadd.f32 %v1328, %v2720
        %v2722 = vpop.f32.mrf.mxu0
        %v2723 = vadd.f32 %v1328, %v2722
        %2724 = vmatmul.bf16.gmra.mxu0 %v1157
        %v2725 = vpop.f32.mrf.mxu0
        %v2726 = vadd.f32 %v1328, %v2725
        %v2727 = vpop.f32.mrf.mxu0
        %v2728 = vadd.f32 %v1328, %v2727
        %2729 = vmatmul.bf16.gmra.mxu0 %v1161
        %v2730 = vpop.f32.mrf.mxu0
        %v2731 = vadd.f32 %v1328, %v2730
        %v2732 = vpop.f32.mrf.mxu0
        %v2733 = vadd.f32 %v1328, %v2732
        %2734 = vmatmul.bf16.gmra.mxu0 %v1165
        %v2735 = vpop.f32.mrf.mxu0
        %v2736 = vadd.f32 %v1328, %v2735
        %v2737 = vpop.f32.mrf.mxu0
        %v2738 = vadd.f32 %v1328, %v2737
        %2739 = vmatmul.bf16.gmra.mxu0 %v1169
        %v2740 = vpop.f32.mrf.mxu0
        %v2741 = vadd.f32 %v1328, %v2740
        %v2742 = vpop.f32.mrf.mxu0
        %v2743 = vadd.f32 %v1328, %v2742
        %2744 = vmatmul.bf16.gmra.mxu0 %v1173
        %v2745 = vpop.f32.mrf.mxu0
        %v2746 = vadd.f32 %v1328, %v2745
        %v2747 = vpop.f32.mrf.mxu0
        %v2748 = vadd.f32 %v1328, %v2747
        %2749 = vmatmul.bf16.gmra.mxu0 %v1177
        %v2750 = vpop.f32.mrf.mxu0
        %v2751 = vadd.f32 %v1328, %v2750
        %v2752 = vpop.f32.mrf.mxu0
        %v2753 = vadd.f32 %v1328, %v2752
        %2754 = vmatmul.bf16.gmra.mxu0 %v1181
        %v2755 = vpop.f32.mrf.mxu0
        %v2756 = vadd.f32 %v1328, %v2755
        %v2757 = vpop.f32.mrf.mxu0
        %v2758 = vadd.f32 %v1328, %v2757
        %2759 = vmatmul.bf16.gmra.mxu0 %v1185
        %v2760 = vpop.f32.mrf.mxu0
        %v2761 = vadd.f32 %v1328, %v2760
        %v2762 = vpop.f32.mrf.mxu0
        %v2763 = vadd.f32 %v1328, %v2762
        %2764 = vmatmul.bf16.gmra.mxu0 %v1189
        %v2765 = vpop.f32.mrf.mxu0
        %v2766 = vadd.f32 %v1328, %v2765
        %v2767 = vpop.f32.mrf.mxu0
        %v2768 = vadd.f32 %v1328, %v2767
        %2769 = vmatmul.bf16.gmra.mxu0 %v1193
        %v2770 = vpop.f32.mrf.mxu0
        %v2771 = vadd.f32 %v1328, %v2770
        %v2772 = vpop.f32.mrf.mxu0
        %v2773 = vadd.f32 %v1328, %v2772
        %2774 = vdwg.mxu0
        %2775 = vmatpush.bf16.msra.mxu0 %v1780
        %2776 = vmatpush.bf16.msra.mxu0 %v1776
        %2777 = vmatpush.bf16.msra.mxu0 %v1772
        %2778 = vmatpush.bf16.msra.mxu0 %v1768
        %2779 = vmatpush.bf16.msra.mxu0 %v1764
        %2780 = vmatpush.bf16.msra.mxu0 %v1760
        %2781 = vmatpush.bf16.msra.mxu0 %v1756
        %2782 = vmatpush.bf16.msra.mxu0 %v1752
        %2783 = vmatmul.bf16.gmra.mxu0 %v1134
        %v2784 = vpop.f32.mrf.mxu0
        %v2785 = vadd.f32 %v2696, %v2784
        %v2786 = vpop.f32.mrf.mxu0
        %v2787 = vadd.f32 %v2698, %v2786
        %2788 = vmatmul.bf16.gmra.mxu0 %v1138
        %v2789 = vpop.f32.mrf.mxu0
        %v2790 = vadd.f32 %v2701, %v2789
        %v2791 = vpop.f32.mrf.mxu0
        %v2792 = vadd.f32 %v2703, %v2791
        %2793 = vmatmul.bf16.gmra.mxu0 %v1142
        %v2794 = vpop.f32.mrf.mxu0
        %v2795 = vadd.f32 %v2706, %v2794
        %v2796 = vpop.f32.mrf.mxu0
        %v2797 = vadd.f32 %v2708, %v2796
        %2798 = vmatmul.bf16.gmra.mxu0 %v1146
        %v2799 = vpop.f32.mrf.mxu0
        %v2800 = vadd.f32 %v2711, %v2799
        %v2801 = vpop.f32.mrf.mxu0
        %v2802 = vadd.f32 %v2713, %v2801
        %2803 = vmatmul.bf16.gmra.mxu0 %v1150
        %v2804 = vpop.f32.mrf.mxu0
        %v2805 = vadd.f32 %v2716, %v2804
        %v2806 = vpop.f32.mrf.mxu0
        %v2807 = vadd.f32 %v2718, %v2806
        %2808 = vmatmul.bf16.gmra.mxu0 %v1154
        %v2809 = vpop.f32.mrf.mxu0
        %v2810 = vadd.f32 %v2721, %v2809
        %v2811 = vpop.f32.mrf.mxu0
        %v2812 = vadd.f32 %v2723, %v2811
        %2813 = vmatmul.bf16.gmra.mxu0 %v1158
        %v2814 = vpop.f32.mrf.mxu0
        %v2815 = vadd.f32 %v2726, %v2814
        %v2816 = vpop.f32.mrf.mxu0
        %v2817 = vadd.f32 %v2728, %v2816
        %2818 = vmatmul.bf16.gmra.mxu0 %v1162
        %v2819 = vpop.f32.mrf.mxu0
        %v2820 = vadd.f32 %v2731, %v2819
        %v2821 = vpop.f32.mrf.mxu0
        %v2822 = vadd.f32 %v2733, %v2821
        %2823 = vmatmul.bf16.gmra.mxu0 %v1166
        %v2824 = vpop.f32.mrf.mxu0
        %v2825 = vadd.f32 %v2736, %v2824
        %v2826 = vpop.f32.mrf.mxu0
        %v2827 = vadd.f32 %v2738, %v2826
        %2828 = vmatmul.bf16.gmra.mxu0 %v1170
        %v2829 = vpop.f32.mrf.mxu0
        %v2830 = vadd.f32 %v2741, %v2829
        %v2831 = vpop.f32.mrf.mxu0
        %v2832 = vadd.f32 %v2743, %v2831
        %2833 = vmatmul.bf16.gmra.mxu0 %v1174
        %v2834 = vpop.f32.mrf.mxu0
        %v2835 = vadd.f32 %v2746, %v2834
        %v2836 = vpop.f32.mrf.mxu0
        %v2837 = vadd.f32 %v2748, %v2836
        %2838 = vmatmul.bf16.gmra.mxu0 %v1178
        %v2839 = vpop.f32.mrf.mxu0
        %v2840 = vadd.f32 %v2751, %v2839
        %v2841 = vpop.f32.mrf.mxu0
        %v2842 = vadd.f32 %v2753, %v2841
        %2843 = vmatmul.bf16.gmra.mxu0 %v1182
        %v2844 = vpop.f32.mrf.mxu0
        %v2845 = vadd.f32 %v2756, %v2844
        %v2846 = vpop.f32.mrf.mxu0
        %v2847 = vadd.f32 %v2758, %v2846
        %2848 = vmatmul.bf16.gmra.mxu0 %v1186
        %v2849 = vpop.f32.mrf.mxu0
        %v2850 = vadd.f32 %v2761, %v2849
        %v2851 = vpop.f32.mrf.mxu0
        %v2852 = vadd.f32 %v2763, %v2851
        %2853 = vmatmul.bf16.gmra.mxu0 %v1190
        %v2854 = vpop.f32.mrf.mxu0
        %v2855 = vadd.f32 %v2766, %v2854
        %v2856 = vpop.f32.mrf.mxu0
        %v2857 = vadd.f32 %v2768, %v2856
        %2858 = vmatmul.bf16.gmra.mxu0 %v1194
        %v2859 = vpop.f32.mrf.mxu0
        %v2860 = vadd.f32 %v2771, %v2859
        %v2861 = vpop.f32.mrf.mxu0
        %v2862 = vadd.f32 %v2773, %v2861
        %2863 = vdwg.mxu0
        %2864 = vmatpush.bf16.msra.mxu0 %v1812
        %2865 = vmatpush.bf16.msra.mxu0 %v1808
        %2866 = vmatpush.bf16.msra.mxu0 %v1804
        %2867 = vmatpush.bf16.msra.mxu0 %v1800
        %2868 = vmatpush.bf16.msra.mxu0 %v1796
        %2869 = vmatpush.bf16.msra.mxu0 %v1792
        %2870 = vmatpush.bf16.msra.mxu0 %v1788
        %2871 = vmatpush.bf16.msra.mxu0 %v1784
        %2872 = vmatmul.bf16.gmra.mxu0 %v1135
        %v2873 = vpop.f32.mrf.mxu0
        %v2874 = vadd.f32 %v2785, %v2873
        %v2875 = vpop.f32.mrf.mxu0
        %v2876 = vadd.f32 %v2787, %v2875
        %2877 = vmatmul.bf16.gmra.mxu0 %v1139
        %v2878 = vpop.f32.mrf.mxu0
        %v2879 = vadd.f32 %v2790, %v2878
        %v2880 = vpop.f32.mrf.mxu0
        %v2881 = vadd.f32 %v2792, %v2880
        %2882 = vmatmul.bf16.gmra.mxu0 %v1143
        %v2883 = vpop.f32.mrf.mxu0
        %v2884 = vadd.f32 %v2795, %v2883
        %v2885 = vpop.f32.mrf.mxu0
        %v2886 = vadd.f32 %v2797, %v2885
        %2887 = vmatmul.bf16.gmra.mxu0 %v1147
        %v2888 = vpop.f32.mrf.mxu0
        %v2889 = vadd.f32 %v2800, %v2888
        %v2890 = vpop.f32.mrf.mxu0
        %v2891 = vadd.f32 %v2802, %v2890
        %2892 = vmatmul.bf16.gmra.mxu0 %v1151
        %v2893 = vpop.f32.mrf.mxu0
        %v2894 = vadd.f32 %v2805, %v2893
        %v2895 = vpop.f32.mrf.mxu0
        %v2896 = vadd.f32 %v2807, %v2895
        %2897 = vmatmul.bf16.gmra.mxu0 %v1155
        %v2898 = vpop.f32.mrf.mxu0
        %v2899 = vadd.f32 %v2810, %v2898
        %v2900 = vpop.f32.mrf.mxu0
        %v2901 = vadd.f32 %v2812, %v2900
        %2902 = vmatmul.bf16.gmra.mxu0 %v1159
        %v2903 = vpop.f32.mrf.mxu0
        %v2904 = vadd.f32 %v2815, %v2903
        %v2905 = vpop.f32.mrf.mxu0
        %v2906 = vadd.f32 %v2817, %v2905
        %2907 = vmatmul.bf16.gmra.mxu0 %v1163
        %v2908 = vpop.f32.mrf.mxu0
        %v2909 = vadd.f32 %v2820, %v2908
        %v2910 = vpop.f32.mrf.mxu0
        %v2911 = vadd.f32 %v2822, %v2910
        %2912 = vmatmul.bf16.gmra.mxu0 %v1167
        %v2913 = vpop.f32.mrf.mxu0
        %v2914 = vadd.f32 %v2825, %v2913
        %v2915 = vpop.f32.mrf.mxu0
        %v2916 = vadd.f32 %v2827, %v2915
        %2917 = vmatmul.bf16.gmra.mxu0 %v1171
        %v2918 = vpop.f32.mrf.mxu0
        %v2919 = vadd.f32 %v2830, %v2918
        %v2920 = vpop.f32.mrf.mxu0
        %v2921 = vadd.f32 %v2832, %v2920
        %2922 = vmatmul.bf16.gmra.mxu0 %v1175
        %v2923 = vpop.f32.mrf.mxu0
        %v2924 = vadd.f32 %v2835, %v2923
        %v2925 = vpop.f32.mrf.mxu0
        %v2926 = vadd.f32 %v2837, %v2925
        %2927 = vmatmul.bf16.gmra.mxu0 %v1179
        %v2928 = vpop.f32.mrf.mxu0
        %v2929 = vadd.f32 %v2840, %v2928
        %v2930 = vpop.f32.mrf.mxu0
        %v2931 = vadd.f32 %v2842, %v2930
        %2932 = vmatmul.bf16.gmra.mxu0 %v1183
        %v2933 = vpop.f32.mrf.mxu0
        %v2934 = vadd.f32 %v2845, %v2933
        %v2935 = vpop.f32.mrf.mxu0
        %v2936 = vadd.f32 %v2847, %v2935
        %2937 = vmatmul.bf16.gmra.mxu0 %v1187
        %v2938 = vpop.f32.mrf.mxu0
        %v2939 = vadd.f32 %v2850, %v2938
        %v2940 = vpop.f32.mrf.mxu0
        %v2941 = vadd.f32 %v2852, %v2940
        %2942 = vmatmul.bf16.gmra.mxu0 %v1191
        %v2943 = vpop.f32.mrf.mxu0
        %v2944 = vadd.f32 %v2855, %v2943
        %v2945 = vpop.f32.mrf.mxu0
        %v2946 = vadd.f32 %v2857, %v2945
        %2947 = vmatmul.bf16.gmra.mxu0 %v1195
        %v2948 = vpop.f32.mrf.mxu0
        %v2949 = vadd.f32 %v2860, %v2948
        %v2950 = vpop.f32.mrf.mxu0
        %v2951 = vadd.f32 %v2862, %v2950
        %2952 = vdwg.mxu0
        %2953 = vmatpush.bf16.msra.mxu0 %v1844
        %2954 = vmatpush.bf16.msra.mxu0 %v1840
        %2955 = vmatpush.bf16.msra.mxu0 %v1836
        %2956 = vmatpush.bf16.msra.mxu0 %v1832
        %2957 = vmatpush.bf16.msra.mxu0 %v1828
        %2958 = vmatpush.bf16.msra.mxu0 %v1824
        %2959 = vmatpush.bf16.msra.mxu0 %v1820
        %2960 = vmatpush.bf16.msra.mxu0 %v1816
        %2961 = vmatmul.bf16.gmra.mxu0 %v1136
        %v2962 = vpop.f32.mrf.mxu0
        %v2963 = vadd.f32 %v2874, %v2962
        %v2964 = vpop.f32.mrf.mxu0
        %v2965 = vadd.f32 %v2876, %v2964
        %2966 = vmatmul.bf16.gmra.mxu0 %v1140
        %v2967 = vpop.f32.mrf.mxu0
        %v2968 = vadd.f32 %v2879, %v2967
        %v2969 = vpop.f32.mrf.mxu0
        %v2970 = vadd.f32 %v2881, %v2969
        %2971 = vmatmul.bf16.gmra.mxu0 %v1144
        %v2972 = vpop.f32.mrf.mxu0
        %v2973 = vadd.f32 %v2884, %v2972
        %v2974 = vpop.f32.mrf.mxu0
        %v2975 = vadd.f32 %v2886, %v2974
        %2976 = vmatmul.bf16.gmra.mxu0 %v1148
        %v2977 = vpop.f32.mrf.mxu0
        %v2978 = vadd.f32 %v2889, %v2977
        %v2979 = vpop.f32.mrf.mxu0
        %v2980 = vadd.f32 %v2891, %v2979
        %2981 = vmatmul.bf16.gmra.mxu0 %v1152
        %v2982 = vpop.f32.mrf.mxu0
        %v2983 = vadd.f32 %v2894, %v2982
        %v2984 = vpop.f32.mrf.mxu0
        %v2985 = vadd.f32 %v2896, %v2984
        %2986 = vmatmul.bf16.gmra.mxu0 %v1156
        %v2987 = vpop.f32.mrf.mxu0
        %v2988 = vadd.f32 %v2899, %v2987
        %v2989 = vpop.f32.mrf.mxu0
        %v2990 = vadd.f32 %v2901, %v2989
        %2991 = vmatmul.bf16.gmra.mxu0 %v1160
        %v2992 = vpop.f32.mrf.mxu0
        %v2993 = vadd.f32 %v2904, %v2992
        %v2994 = vpop.f32.mrf.mxu0
        %v2995 = vadd.f32 %v2906, %v2994
        %2996 = vmatmul.bf16.gmra.mxu0 %v1164
        %v2997 = vpop.f32.mrf.mxu0
        %v2998 = vadd.f32 %v2909, %v2997
        %v2999 = vpop.f32.mrf.mxu0
        %v3000 = vadd.f32 %v2911, %v2999
        %3001 = vmatmul.bf16.gmra.mxu0 %v1168
        %v3002 = vpop.f32.mrf.mxu0
        %v3003 = vadd.f32 %v2914, %v3002
        %v3004 = vpop.f32.mrf.mxu0
        %v3005 = vadd.f32 %v2916, %v3004
        %3006 = vmatmul.bf16.gmra.mxu0 %v1172
        %v3007 = vpop.f32.mrf.mxu0
        %v3008 = vadd.f32 %v2919, %v3007
        %v3009 = vpop.f32.mrf.mxu0
        %v3010 = vadd.f32 %v2921, %v3009
        %3011 = vmatmul.bf16.gmra.mxu0 %v1176
        %v3012 = vpop.f32.mrf.mxu0
        %v3013 = vadd.f32 %v2924, %v3012
        %v3014 = vpop.f32.mrf.mxu0
        %v3015 = vadd.f32 %v2926, %v3014
        %3016 = vmatmul.bf16.gmra.mxu0 %v1180
        %v3017 = vpop.f32.mrf.mxu0
        %v3018 = vadd.f32 %v2929, %v3017
        %v3019 = vpop.f32.mrf.mxu0
        %v3020 = vadd.f32 %v2931, %v3019
        %3021 = vmatmul.bf16.gmra.mxu0 %v1184
        %v3022 = vpop.f32.mrf.mxu0
        %v3023 = vadd.f32 %v2934, %v3022
        %v3024 = vpop.f32.mrf.mxu0
        %v3025 = vadd.f32 %v2936, %v3024
        %3026 = vmatmul.bf16.gmra.mxu0 %v1188
        %v3027 = vpop.f32.mrf.mxu0
        %v3028 = vadd.f32 %v2939, %v3027
        %v3029 = vpop.f32.mrf.mxu0
        %v3030 = vadd.f32 %v2941, %v3029
        %3031 = vmatmul.bf16.gmra.mxu0 %v1192
        %v3032 = vpop.f32.mrf.mxu0
        %v3033 = vadd.f32 %v2944, %v3032
        %v3034 = vpop.f32.mrf.mxu0
        %v3035 = vadd.f32 %v2946, %v3034
        %3036 = vmatmul.bf16.gmra.mxu0 %v1196
        %v3037 = vpop.f32.mrf.mxu0
        %v3038 = vadd.f32 %v2949, %v3037
        %v3039 = vpop.f32.mrf.mxu0
        %v3040 = vadd.f32 %v2951, %v3039
        %3041 = vdwg.mxu0
        %3042 = vmatpush.bf16.msra.mxu0 %v1749
        %3043 = vmatpush.bf16.msra.mxu0 %v1745
        %3044 = vmatpush.bf16.msra.mxu0 %v1741
        %3045 = vmatpush.bf16.msra.mxu0 %v1737
        %3046 = vmatpush.bf16.msra.mxu0 %v1733
        %3047 = vmatpush.bf16.msra.mxu0 %v1729
        %3048 = vmatpush.bf16.msra.mxu0 %v1725
        %3049 = vmatpush.bf16.msra.mxu0 %v1721
        %3050 = vmatmul.bf16.gmra.mxu0 %v1133
        %v3051 = vpop.f32.mrf.mxu0
        %v3052 = vadd.f32 %v1329, %v3051
        %v3053 = vpop.f32.mrf.mxu0
        %v3054 = vadd.f32 %v1329, %v3053
        %3055 = vmatmul.bf16.gmra.mxu0 %v1137
        %v3056 = vpop.f32.mrf.mxu0
        %v3057 = vadd.f32 %v1329, %v3056
        %v3058 = vpop.f32.mrf.mxu0
        %v3059 = vadd.f32 %v1329, %v3058
        %3060 = vmatmul.bf16.gmra.mxu0 %v1141
        %v3061 = vpop.f32.mrf.mxu0
        %v3062 = vadd.f32 %v1329, %v3061
        %v3063 = vpop.f32.mrf.mxu0
        %v3064 = vadd.f32 %v1329, %v3063
        %3065 = vmatmul.bf16.gmra.mxu0 %v1145
        %v3066 = vpop.f32.mrf.mxu0
        %v3067 = vadd.f32 %v1329, %v3066
        %v3068 = vpop.f32.mrf.mxu0
        %v3069 = vadd.f32 %v1329, %v3068
        %3070 = vmatmul.bf16.gmra.mxu0 %v1149
        %v3071 = vpop.f32.mrf.mxu0
        %v3072 = vadd.f32 %v1329, %v3071
        %v3073 = vpop.f32.mrf.mxu0
        %v3074 = vadd.f32 %v1329, %v3073
        %3075 = vmatmul.bf16.gmra.mxu0 %v1153
        %v3076 = vpop.f32.mrf.mxu0
        %v3077 = vadd.f32 %v1329, %v3076
        %v3078 = vpop.f32.mrf.mxu0
        %v3079 = vadd.f32 %v1329, %v3078
        %3080 = vmatmul.bf16.gmra.mxu0 %v1157
        %v3081 = vpop.f32.mrf.mxu0
        %v3082 = vadd.f32 %v1329, %v3081
        %v3083 = vpop.f32.mrf.mxu0
        %v3084 = vadd.f32 %v1329, %v3083
        %3085 = vmatmul.bf16.gmra.mxu0 %v1161
        %v3086 = vpop.f32.mrf.mxu0
        %v3087 = vadd.f32 %v1329, %v3086
        %v3088 = vpop.f32.mrf.mxu0
        %v3089 = vadd.f32 %v1329, %v3088
        %3090 = vmatmul.bf16.gmra.mxu0 %v1165
        %v3091 = vpop.f32.mrf.mxu0
        %v3092 = vadd.f32 %v1329, %v3091
        %v3093 = vpop.f32.mrf.mxu0
        %v3094 = vadd.f32 %v1329, %v3093
        %3095 = vmatmul.bf16.gmra.mxu0 %v1169
        %v3096 = vpop.f32.mrf.mxu0
        %v3097 = vadd.f32 %v1329, %v3096
        %v3098 = vpop.f32.mrf.mxu0
        %v3099 = vadd.f32 %v1329, %v3098
        %3100 = vmatmul.bf16.gmra.mxu0 %v1173
        %v3101 = vpop.f32.mrf.mxu0
        %v3102 = vadd.f32 %v1329, %v3101
        %v3103 = vpop.f32.mrf.mxu0
        %v3104 = vadd.f32 %v1329, %v3103
        %3105 = vmatmul.bf16.gmra.mxu0 %v1177
        %v3106 = vpop.f32.mrf.mxu0
        %v3107 = vadd.f32 %v1329, %v3106
        %v3108 = vpop.f32.mrf.mxu0
        %v3109 = vadd.f32 %v1329, %v3108
        %3110 = vmatmul.bf16.gmra.mxu0 %v1181
        %v3111 = vpop.f32.mrf.mxu0
        %v3112 = vadd.f32 %v1329, %v3111
        %v3113 = vpop.f32.mrf.mxu0
        %v3114 = vadd.f32 %v1329, %v3113
        %3115 = vmatmul.bf16.gmra.mxu0 %v1185
        %v3116 = vpop.f32.mrf.mxu0
        %v3117 = vadd.f32 %v1329, %v3116
        %v3118 = vpop.f32.mrf.mxu0
        %v3119 = vadd.f32 %v1329, %v3118
        %3120 = vmatmul.bf16.gmra.mxu0 %v1189
        %v3121 = vpop.f32.mrf.mxu0
        %v3122 = vadd.f32 %v1329, %v3121
        %v3123 = vpop.f32.mrf.mxu0
        %v3124 = vadd.f32 %v1329, %v3123
        %3125 = vmatmul.bf16.gmra.mxu0 %v1193
        %v3126 = vpop.f32.mrf.mxu0
        %v3127 = vadd.f32 %v1329, %v3126
        %v3128 = vpop.f32.mrf.mxu0
        %v3129 = vadd.f32 %v1329, %v3128
        %3130 = vdwg.mxu0
        %3131 = vmatpush.bf16.msra.mxu0 %v1781
        %3132 = vmatpush.bf16.msra.mxu0 %v1777
        %3133 = vmatpush.bf16.msra.mxu0 %v1773
        %3134 = vmatpush.bf16.msra.mxu0 %v1769
        %3135 = vmatpush.bf16.msra.mxu0 %v1765
        %3136 = vmatpush.bf16.msra.mxu0 %v1761
        %3137 = vmatpush.bf16.msra.mxu0 %v1757
        %3138 = vmatpush.bf16.msra.mxu0 %v1753
        %3139 = vmatmul.bf16.gmra.mxu0 %v1134
        %v3140 = vpop.f32.mrf.mxu0
        %v3141 = vadd.f32 %v3052, %v3140
        %v3142 = vpop.f32.mrf.mxu0
        %v3143 = vadd.f32 %v3054, %v3142
        %3144 = vmatmul.bf16.gmra.mxu0 %v1138
        %v3145 = vpop.f32.mrf.mxu0
        %v3146 = vadd.f32 %v3057, %v3145
        %v3147 = vpop.f32.mrf.mxu0
        %v3148 = vadd.f32 %v3059, %v3147
        %3149 = vmatmul.bf16.gmra.mxu0 %v1142
        %v3150 = vpop.f32.mrf.mxu0
        %v3151 = vadd.f32 %v3062, %v3150
        %v3152 = vpop.f32.mrf.mxu0
        %v3153 = vadd.f32 %v3064, %v3152
        %3154 = vmatmul.bf16.gmra.mxu0 %v1146
        %v3155 = vpop.f32.mrf.mxu0
        %v3156 = vadd.f32 %v3067, %v3155
        %v3157 = vpop.f32.mrf.mxu0
        %v3158 = vadd.f32 %v3069, %v3157
        %3159 = vmatmul.bf16.gmra.mxu0 %v1150
        %v3160 = vpop.f32.mrf.mxu0
        %v3161 = vadd.f32 %v3072, %v3160
        %v3162 = vpop.f32.mrf.mxu0
        %v3163 = vadd.f32 %v3074, %v3162
        %3164 = vmatmul.bf16.gmra.mxu0 %v1154
        %v3165 = vpop.f32.mrf.mxu0
        %v3166 = vadd.f32 %v3077, %v3165
        %v3167 = vpop.f32.mrf.mxu0
        %v3168 = vadd.f32 %v3079, %v3167
        %3169 = vmatmul.bf16.gmra.mxu0 %v1158
        %v3170 = vpop.f32.mrf.mxu0
        %v3171 = vadd.f32 %v3082, %v3170
        %v3172 = vpop.f32.mrf.mxu0
        %v3173 = vadd.f32 %v3084, %v3172
        %3174 = vmatmul.bf16.gmra.mxu0 %v1162
        %v3175 = vpop.f32.mrf.mxu0
        %v3176 = vadd.f32 %v3087, %v3175
        %v3177 = vpop.f32.mrf.mxu0
        %v3178 = vadd.f32 %v3089, %v3177
        %3179 = vmatmul.bf16.gmra.mxu0 %v1166
        %v3180 = vpop.f32.mrf.mxu0
        %v3181 = vadd.f32 %v3092, %v3180
        %v3182 = vpop.f32.mrf.mxu0
        %v3183 = vadd.f32 %v3094, %v3182
        %3184 = vmatmul.bf16.gmra.mxu0 %v1170
        %v3185 = vpop.f32.mrf.mxu0
        %v3186 = vadd.f32 %v3097, %v3185
        %v3187 = vpop.f32.mrf.mxu0
        %v3188 = vadd.f32 %v3099, %v3187
        %3189 = vmatmul.bf16.gmra.mxu0 %v1174
        %v3190 = vpop.f32.mrf.mxu0
        %v3191 = vadd.f32 %v3102, %v3190
        %v3192 = vpop.f32.mrf.mxu0
        %v3193 = vadd.f32 %v3104, %v3192
        %3194 = vmatmul.bf16.gmra.mxu0 %v1178
        %v3195 = vpop.f32.mrf.mxu0
        %v3196 = vadd.f32 %v3107, %v3195
        %v3197 = vpop.f32.mrf.mxu0
        %v3198 = vadd.f32 %v3109, %v3197
        %3199 = vmatmul.bf16.gmra.mxu0 %v1182
        %v3200 = vpop.f32.mrf.mxu0
        %v3201 = vadd.f32 %v3112, %v3200
        %v3202 = vpop.f32.mrf.mxu0
        %v3203 = vadd.f32 %v3114, %v3202
        %3204 = vmatmul.bf16.gmra.mxu0 %v1186
        %v3205 = vpop.f32.mrf.mxu0
        %v3206 = vadd.f32 %v3117, %v3205
        %v3207 = vpop.f32.mrf.mxu0
        %v3208 = vadd.f32 %v3119, %v3207
        %3209 = vmatmul.bf16.gmra.mxu0 %v1190
        %v3210 = vpop.f32.mrf.mxu0
        %v3211 = vadd.f32 %v3122, %v3210
        %v3212 = vpop.f32.mrf.mxu0
        %v3213 = vadd.f32 %v3124, %v3212
        %3214 = vmatmul.bf16.gmra.mxu0 %v1194
        %v3215 = vpop.f32.mrf.mxu0
        %v3216 = vadd.f32 %v3127, %v3215
        %v3217 = vpop.f32.mrf.mxu0
        %v3218 = vadd.f32 %v3129, %v3217
        %3219 = vdwg.mxu0
        %3220 = vmatpush.bf16.msra.mxu0 %v1813
        %3221 = vmatpush.bf16.msra.mxu0 %v1809
        %3222 = vmatpush.bf16.msra.mxu0 %v1805
        %3223 = vmatpush.bf16.msra.mxu0 %v1801
        %3224 = vmatpush.bf16.msra.mxu0 %v1797
        %3225 = vmatpush.bf16.msra.mxu0 %v1793
        %3226 = vmatpush.bf16.msra.mxu0 %v1789
        %3227 = vmatpush.bf16.msra.mxu0 %v1785
        %3228 = vmatmul.bf16.gmra.mxu0 %v1135
        %v3229 = vpop.f32.mrf.mxu0
        %v3230 = vadd.f32 %v3141, %v3229
        %v3231 = vpop.f32.mrf.mxu0
        %v3232 = vadd.f32 %v3143, %v3231
        %3233 = vmatmul.bf16.gmra.mxu0 %v1139
        %v3234 = vpop.f32.mrf.mxu0
        %v3235 = vadd.f32 %v3146, %v3234
        %v3236 = vpop.f32.mrf.mxu0
        %v3237 = vadd.f32 %v3148, %v3236
        %3238 = vmatmul.bf16.gmra.mxu0 %v1143
        %v3239 = vpop.f32.mrf.mxu0
        %v3240 = vadd.f32 %v3151, %v3239
        %v3241 = vpop.f32.mrf.mxu0
        %v3242 = vadd.f32 %v3153, %v3241
        %3243 = vmatmul.bf16.gmra.mxu0 %v1147
        %v3244 = vpop.f32.mrf.mxu0
        %v3245 = vadd.f32 %v3156, %v3244
        %v3246 = vpop.f32.mrf.mxu0
        %v3247 = vadd.f32 %v3158, %v3246
        %3248 = vmatmul.bf16.gmra.mxu0 %v1151
        %v3249 = vpop.f32.mrf.mxu0
        %v3250 = vadd.f32 %v3161, %v3249
        %v3251 = vpop.f32.mrf.mxu0
        %v3252 = vadd.f32 %v3163, %v3251
        %3253 = vmatmul.bf16.gmra.mxu0 %v1155
        %v3254 = vpop.f32.mrf.mxu0
        %v3255 = vadd.f32 %v3166, %v3254
        %v3256 = vpop.f32.mrf.mxu0
        %v3257 = vadd.f32 %v3168, %v3256
        %3258 = vmatmul.bf16.gmra.mxu0 %v1159
        %v3259 = vpop.f32.mrf.mxu0
        %v3260 = vadd.f32 %v3171, %v3259
        %v3261 = vpop.f32.mrf.mxu0
        %v3262 = vadd.f32 %v3173, %v3261
        %3263 = vmatmul.bf16.gmra.mxu0 %v1163
        %v3264 = vpop.f32.mrf.mxu0
        %v3265 = vadd.f32 %v3176, %v3264
        %v3266 = vpop.f32.mrf.mxu0
        %v3267 = vadd.f32 %v3178, %v3266
        %3268 = vmatmul.bf16.gmra.mxu0 %v1167
        %v3269 = vpop.f32.mrf.mxu0
        %v3270 = vadd.f32 %v3181, %v3269
        %v3271 = vpop.f32.mrf.mxu0
        %v3272 = vadd.f32 %v3183, %v3271
        %3273 = vmatmul.bf16.gmra.mxu0 %v1171
        %v3274 = vpop.f32.mrf.mxu0
        %v3275 = vadd.f32 %v3186, %v3274
        %v3276 = vpop.f32.mrf.mxu0
        %v3277 = vadd.f32 %v3188, %v3276
        %3278 = vmatmul.bf16.gmra.mxu0 %v1175
        %v3279 = vpop.f32.mrf.mxu0
        %v3280 = vadd.f32 %v3191, %v3279
        %v3281 = vpop.f32.mrf.mxu0
        %v3282 = vadd.f32 %v3193, %v3281
        %3283 = vmatmul.bf16.gmra.mxu0 %v1179
        %v3284 = vpop.f32.mrf.mxu0
        %v3285 = vadd.f32 %v3196, %v3284
        %v3286 = vpop.f32.mrf.mxu0
        %v3287 = vadd.f32 %v3198, %v3286
        %3288 = vmatmul.bf16.gmra.mxu0 %v1183
        %v3289 = vpop.f32.mrf.mxu0
        %v3290 = vadd.f32 %v3201, %v3289
        %v3291 = vpop.f32.mrf.mxu0
        %v3292 = vadd.f32 %v3203, %v3291
        %3293 = vmatmul.bf16.gmra.mxu0 %v1187
        %v3294 = vpop.f32.mrf.mxu0
        %v3295 = vadd.f32 %v3206, %v3294
        %v3296 = vpop.f32.mrf.mxu0
        %v3297 = vadd.f32 %v3208, %v3296
        %3298 = vmatmul.bf16.gmra.mxu0 %v1191
        %v3299 = vpop.f32.mrf.mxu0
        %v3300 = vadd.f32 %v3211, %v3299
        %v3301 = vpop.f32.mrf.mxu0
        %v3302 = vadd.f32 %v3213, %v3301
        %3303 = vmatmul.bf16.gmra.mxu0 %v1195
        %v3304 = vpop.f32.mrf.mxu0
        %v3305 = vadd.f32 %v3216, %v3304
        %v3306 = vpop.f32.mrf.mxu0
        %v3307 = vadd.f32 %v3218, %v3306
        %3308 = vdwg.mxu0
        %3309 = vmatpush.bf16.msra.mxu0 %v1845
        %3310 = vmatpush.bf16.msra.mxu0 %v1841
        %3311 = vmatpush.bf16.msra.mxu0 %v1837
        %3312 = vmatpush.bf16.msra.mxu0 %v1833
        %3313 = vmatpush.bf16.msra.mxu0 %v1829
        %3314 = vmatpush.bf16.msra.mxu0 %v1825
        %3315 = vmatpush.bf16.msra.mxu0 %v1821
        %3316 = vmatpush.bf16.msra.mxu0 %v1817
        %3317 = vmatmul.bf16.gmra.mxu0 %v1136
        %v3318 = vpop.f32.mrf.mxu0
        %v3319 = vadd.f32 %v3230, %v3318
        %v3320 = vpop.f32.mrf.mxu0
        %v3321 = vadd.f32 %v3232, %v3320
        %3322 = vmatmul.bf16.gmra.mxu0 %v1140
        %v3323 = vpop.f32.mrf.mxu0
        %v3324 = vadd.f32 %v3235, %v3323
        %v3325 = vpop.f32.mrf.mxu0
        %v3326 = vadd.f32 %v3237, %v3325
        %3327 = vmatmul.bf16.gmra.mxu0 %v1144
        %v3328 = vpop.f32.mrf.mxu0
        %v3329 = vadd.f32 %v3240, %v3328
        %v3330 = vpop.f32.mrf.mxu0
        %v3331 = vadd.f32 %v3242, %v3330
        %3332 = vmatmul.bf16.gmra.mxu0 %v1148
        %v3333 = vpop.f32.mrf.mxu0
        %v3334 = vadd.f32 %v3245, %v3333
        %v3335 = vpop.f32.mrf.mxu0
        %v3336 = vadd.f32 %v3247, %v3335
        %3337 = vmatmul.bf16.gmra.mxu0 %v1152
        %v3338 = vpop.f32.mrf.mxu0
        %v3339 = vadd.f32 %v3250, %v3338
        %v3340 = vpop.f32.mrf.mxu0
        %v3341 = vadd.f32 %v3252, %v3340
        %3342 = vmatmul.bf16.gmra.mxu0 %v1156
        %v3343 = vpop.f32.mrf.mxu0
        %v3344 = vadd.f32 %v3255, %v3343
        %v3345 = vpop.f32.mrf.mxu0
        %v3346 = vadd.f32 %v3257, %v3345
        %3347 = vmatmul.bf16.gmra.mxu0 %v1160
        %v3348 = vpop.f32.mrf.mxu0
        %v3349 = vadd.f32 %v3260, %v3348
        %v3350 = vpop.f32.mrf.mxu0
        %v3351 = vadd.f32 %v3262, %v3350
        %3352 = vmatmul.bf16.gmra.mxu0 %v1164
        %v3353 = vpop.f32.mrf.mxu0
        %v3354 = vadd.f32 %v3265, %v3353
        %v3355 = vpop.f32.mrf.mxu0
        %v3356 = vadd.f32 %v3267, %v3355
        %3357 = vmatmul.bf16.gmra.mxu0 %v1168
        %v3358 = vpop.f32.mrf.mxu0
        %v3359 = vadd.f32 %v3270, %v3358
        %v3360 = vpop.f32.mrf.mxu0
        %v3361 = vadd.f32 %v3272, %v3360
        %3362 = vmatmul.bf16.gmra.mxu0 %v1172
        %v3363 = vpop.f32.mrf.mxu0
        %v3364 = vadd.f32 %v3275, %v3363
        %v3365 = vpop.f32.mrf.mxu0
        %v3366 = vadd.f32 %v3277, %v3365
        %3367 = vmatmul.bf16.gmra.mxu0 %v1176
        %v3368 = vpop.f32.mrf.mxu0
        %v3369 = vadd.f32 %v3280, %v3368
        %v3370 = vpop.f32.mrf.mxu0
        %v3371 = vadd.f32 %v3282, %v3370
        %3372 = vmatmul.bf16.gmra.mxu0 %v1180
        %v3373 = vpop.f32.mrf.mxu0
        %v3374 = vadd.f32 %v3285, %v3373
        %v3375 = vpop.f32.mrf.mxu0
        %v3376 = vadd.f32 %v3287, %v3375
        %3377 = vmatmul.bf16.gmra.mxu0 %v1184
        %v3378 = vpop.f32.mrf.mxu0
        %v3379 = vadd.f32 %v3290, %v3378
        %v3380 = vpop.f32.mrf.mxu0
        %v3381 = vadd.f32 %v3292, %v3380
        %3382 = vmatmul.bf16.gmra.mxu0 %v1188
        %v3383 = vpop.f32.mrf.mxu0
        %v3384 = vadd.f32 %v3295, %v3383
        %v3385 = vpop.f32.mrf.mxu0
        %v3386 = vadd.f32 %v3297, %v3385
        %3387 = vmatmul.bf16.gmra.mxu0 %v1192
        %v3388 = vpop.f32.mrf.mxu0
        %v3389 = vadd.f32 %v3300, %v3388
        %v3390 = vpop.f32.mrf.mxu0
        %v3391 = vadd.f32 %v3302, %v3390
        %3392 = vmatmul.bf16.gmra.mxu0 %v1196
        %v3393 = vpop.f32.mrf.mxu0
        %v3394 = vadd.f32 %v3305, %v3393
        %v3395 = vpop.f32.mrf.mxu0
        %v3396 = vadd.f32 %v3307, %v3395
        %3397 = vdwg.mxu0
        %v3398 = vmax.f32 %v2251, 0.0
        %v3399 = vmax.f32 %v2607, 0.0
        %v3400 = vmax.f32 %v2963, 0.0
        %v3401 = vmax.f32 %v3319, 0.0
        %v3402 = vmax.f32 %v2253, 0.0
        %v3403 = vmax.f32 %v2609, 0.0
        %v3404 = vmax.f32 %v2965, 0.0
        %v3405 = vmax.f32 %v3321, 0.0
        %v3406 = vmax.f32 %v2256, 0.0
        %v3407 = vmax.f32 %v2612, 0.0
        %v3408 = vmax.f32 %v2968, 0.0
        %v3409 = vmax.f32 %v3324, 0.0
        %v3410 = vmax.f32 %v2258, 0.0
        %v3411 = vmax.f32 %v2614, 0.0
        %v3412 = vmax.f32 %v2970, 0.0
        %v3413 = vmax.f32 %v3326, 0.0
        %v3414 = vmax.f32 %v2261, 0.0
        %v3415 = vmax.f32 %v2617, 0.0
        %v3416 = vmax.f32 %v2973, 0.0
        %v3417 = vmax.f32 %v3329, 0.0
        %v3418 = vmax.f32 %v2263, 0.0
        %v3419 = vmax.f32 %v2619, 0.0
        %v3420 = vmax.f32 %v2975, 0.0
        %v3421 = vmax.f32 %v3331, 0.0
        %v3422 = vmax.f32 %v2266, 0.0
        %v3423 = vmax.f32 %v2622, 0.0
        %v3424 = vmax.f32 %v2978, 0.0
        %v3425 = vmax.f32 %v3334, 0.0
        %v3426 = vmax.f32 %v2268, 0.0
        %v3427 = vmax.f32 %v2624, 0.0
        %v3428 = vmax.f32 %v2980, 0.0
        %v3429 = vmax.f32 %v3336, 0.0
        %v3430 = vmax.f32 %v2271, 0.0
        %v3431 = vmax.f32 %v2627, 0.0
        %v3432 = vmax.f32 %v2983, 0.0
        %v3433 = vmax.f32 %v3339, 0.0
        %v3434 = vmax.f32 %v2273, 0.0
        %v3435 = vmax.f32 %v2629, 0.0
        %v3436 = vmax.f32 %v2985, 0.0
        %v3437 = vmax.f32 %v3341, 0.0
        %v3438 = vmax.f32 %v2276, 0.0
        %v3439 = vmax.f32 %v2632, 0.0
        %v3440 = vmax.f32 %v2988, 0.0
        %v3441 = vmax.f32 %v3344, 0.0
        %v3442 = vmax.f32 %v2278, 0.0
        %v3443 = vmax.f32 %v2634, 0.0
        %v3444 = vmax.f32 %v2990, 0.0
        %v3445 = vmax.f32 %v3346, 0.0
        %v3446 = vmax.f32 %v2281, 0.0
        %v3447 = vmax.f32 %v2637, 0.0
        %v3448 = vmax.f32 %v2993, 0.0
        %v3449 = vmax.f32 %v3349, 0.0
        %v3450 = vmax.f32 %v2283, 0.0
        %v3451 = vmax.f32 %v2639, 0.0
        %v3452 = vmax.f32 %v2995, 0.0
        %v3453 = vmax.f32 %v3351, 0.0
        %v3454 = vmax.f32 %v2286, 0.0
        %v3455 = vmax.f32 %v2642, 0.0
        %v3456 = vmax.f32 %v2998, 0.0
        %v3457 = vmax.f32 %v3354, 0.0
        %v3458 = vmax.f32 %v2288, 0.0
        %v3459 = vmax.f32 %v2644, 0.0
        %v3460 = vmax.f32 %v3000, 0.0
        %v3461 = vmax.f32 %v3356, 0.0
        %v3462 = vmax.f32 %v2291, 0.0
        %v3463 = vmax.f32 %v2647, 0.0
        %v3464 = vmax.f32 %v3003, 0.0
        %v3465 = vmax.f32 %v3359, 0.0
        %v3466 = vmax.f32 %v2293, 0.0
        %v3467 = vmax.f32 %v2649, 0.0
        %v3468 = vmax.f32 %v3005, 0.0
        %v3469 = vmax.f32 %v3361, 0.0
        %v3470 = vmax.f32 %v2296, 0.0
        %v3471 = vmax.f32 %v2652, 0.0
        %v3472 = vmax.f32 %v3008, 0.0
        %v3473 = vmax.f32 %v3364, 0.0
        %v3474 = vmax.f32 %v2298, 0.0
        %v3475 = vmax.f32 %v2654, 0.0
        %v3476 = vmax.f32 %v3010, 0.0
        %v3477 = vmax.f32 %v3366, 0.0
        %v3478 = vmax.f32 %v2301, 0.0
        %v3479 = vmax.f32 %v2657, 0.0
        %v3480 = vmax.f32 %v3013, 0.0
        %v3481 = vmax.f32 %v3369, 0.0
        %v3482 = vmax.f32 %v2303, 0.0
        %v3483 = vmax.f32 %v2659, 0.0
        %v3484 = vmax.f32 %v3015, 0.0
        %v3485 = vmax.f32 %v3371, 0.0
        %v3486 = vmax.f32 %v2306, 0.0
        %v3487 = vmax.f32 %v2662, 0.0
        %v3488 = vmax.f32 %v3018, 0.0
        %v3489 = vmax.f32 %v3374, 0.0
        %v3490 = vmax.f32 %v2308, 0.0
        %v3491 = vmax.f32 %v2664, 0.0
        %v3492 = vmax.f32 %v3020, 0.0
        %v3493 = vmax.f32 %v3376, 0.0
        %v3494 = vmax.f32 %v2311, 0.0
        %v3495 = vmax.f32 %v2667, 0.0
        %v3496 = vmax.f32 %v3023, 0.0
        %v3497 = vmax.f32 %v3379, 0.0
        %v3498 = vmax.f32 %v2313, 0.0
        %v3499 = vmax.f32 %v2669, 0.0
        %v3500 = vmax.f32 %v3025, 0.0
        %v3501 = vmax.f32 %v3381, 0.0
        %v3502 = vmax.f32 %v2316, 0.0
        %v3503 = vmax.f32 %v2672, 0.0
        %v3504 = vmax.f32 %v3028, 0.0
        %v3505 = vmax.f32 %v3384, 0.0
        %v3506 = vmax.f32 %v2318, 0.0
        %v3507 = vmax.f32 %v2674, 0.0
        %v3508 = vmax.f32 %v3030, 0.0
        %v3509 = vmax.f32 %v3386, 0.0
        %v3510 = vmax.f32 %v2321, 0.0
        %v3511 = vmax.f32 %v2677, 0.0
        %v3512 = vmax.f32 %v3033, 0.0
        %v3513 = vmax.f32 %v3389, 0.0
        %v3514 = vmax.f32 %v2323, 0.0
        %v3515 = vmax.f32 %v2679, 0.0
        %v3516 = vmax.f32 %v3035, 0.0
        %v3517 = vmax.f32 %v3391, 0.0
        %v3518 = vmax.f32 %v2326, 0.0
        %v3519 = vmax.f32 %v2682, 0.0
        %v3520 = vmax.f32 %v3038, 0.0
        %v3521 = vmax.f32 %v3394, 0.0
        %v3522 = vmax.f32 %v2328, 0.0
        %v3523 = vmax.f32 %v2684, 0.0
        %v3524 = vmax.f32 %v3040, 0.0
        %v3525 = vmax.f32 %v3396, 0.0
        %v3526 = vpack.c.bf16 %v3399, %v3398
        %v3527 = vpack.c.bf16 %v3401, %v3400
        %v3528 = vpack.c.bf16 %v3403, %v3402
        %v3529 = vpack.c.bf16 %v3405, %v3404
        %v3530 = vpack.c.bf16 %v3407, %v3406
        %v3531 = vpack.c.bf16 %v3409, %v3408
        %v3532 = vpack.c.bf16 %v3411, %v3410
        %v3533 = vpack.c.bf16 %v3413, %v3412
        %v3534 = vpack.c.bf16 %v3415, %v3414
        %v3535 = vpack.c.bf16 %v3417, %v3416
        %v3536 = vpack.c.bf16 %v3419, %v3418
        %v3537 = vpack.c.bf16 %v3421, %v3420
        %v3538 = vpack.c.bf16 %v3423, %v3422
        %v3539 = vpack.c.bf16 %v3425, %v3424
        %v3540 = vpack.c.bf16 %v3427, %v3426
        %v3541 = vpack.c.bf16 %v3429, %v3428
        %v3542 = vpack.c.bf16 %v3431, %v3430
        %v3543 = vpack.c.bf16 %v3433, %v3432
        %v3544 = vpack.c.bf16 %v3435, %v3434
        %v3545 = vpack.c.bf16 %v3437, %v3436
        %v3546 = vpack.c.bf16 %v3439, %v3438
        %v3547 = vpack.c.bf16 %v3441, %v3440
        %v3548 = vpack.c.bf16 %v3443, %v3442
        %v3549 = vpack.c.bf16 %v3445, %v3444
        %v3550 = vpack.c.bf16 %v3447, %v3446
        %v3551 = vpack.c.bf16 %v3449, %v3448
        %v3552 = vpack.c.bf16 %v3451, %v3450
        %v3553 = vpack.c.bf16 %v3453, %v3452
        %v3554 = vpack.c.bf16 %v3455, %v3454
        %v3555 = vpack.c.bf16 %v3457, %v3456
        %v3556 = vpack.c.bf16 %v3459, %v3458
        %v3557 = vpack.c.bf16 %v3461, %v3460
        %v3558 = vpack.c.bf16 %v3463, %v3462
        %v3559 = vpack.c.bf16 %v3465, %v3464
        %v3560 = vpack.c.bf16 %v3467, %v3466
        %v3561 = vpack.c.bf16 %v3469, %v3468
        %v3562 = vpack.c.bf16 %v3471, %v3470
        %v3563 = vpack.c.bf16 %v3473, %v3472
        %v3564 = vpack.c.bf16 %v3475, %v3474
        %v3565 = vpack.c.bf16 %v3477, %v3476
        %v3566 = vpack.c.bf16 %v3479, %v3478
        %v3567 = vpack.c.bf16 %v3481, %v3480
        %v3568 = vpack.c.bf16 %v3483, %v3482
        %v3569 = vpack.c.bf16 %v3485, %v3484
        %v3570 = vpack.c.bf16 %v3487, %v3486
        %v3571 = vpack.c.bf16 %v3489, %v3488
        %v3572 = vpack.c.bf16 %v3491, %v3490
        %v3573 = vpack.c.bf16 %v3493, %v3492
        %v3574 = vpack.c.bf16 %v3495, %v3494
        %v3575 = vpack.c.bf16 %v3497, %v3496
        %v3576 = vpack.c.bf16 %v3499, %v3498
        %v3577 = vpack.c.bf16 %v3501, %v3500
        %v3578 = vpack.c.bf16 %v3503, %v3502
        %v3579 = vpack.c.bf16 %v3505, %v3504
        %v3580 = vpack.c.bf16 %v3507, %v3506
        %v3581 = vpack.c.bf16 %v3509, %v3508
        %v3582 = vpack.c.bf16 %v3511, %v3510
        %v3583 = vpack.c.bf16 %v3513, %v3512
        %v3584 = vpack.c.bf16 %v3515, %v3514
        %v3585 = vpack.c.bf16 %v3517, %v3516
        %v3586 = vpack.c.bf16 %v3519, %v3518
        %v3587 = vpack.c.bf16 %v3521, %v3520
        %v3588 = vpack.c.bf16 %v3523, %v3522
        %v3589 = vpack.c.bf16 %v3525, %v3524
        %3590 = vst [vmem:[#allocation2] sm:$0xff] %v3526
        %3591 = vst [vmem:[#allocation2 + $0x8] sm:$0xff] %v3527
        %3592 = vst [vmem:[#allocation2 + $0x10] sm:$0xff] %v3528
        %3593 = vst [vmem:[#allocation2 + $0x18] sm:$0xff] %v3529
        %3594 = vst [vmem:[#allocation2 + $0x20] sm:$0xff] %v3530
        %3595 = vst [vmem:[#allocation2 + $0x28] sm:$0xff] %v3531
        %3596 = vst [vmem:[#allocation2 + $0x30] sm:$0xff] %v3532
        %3597 = vst [vmem:[#allocation2 + $0x38] sm:$0xff] %v3533
        %3598 = vst [vmem:[#allocation2 + $0x40] sm:$0xff] %v3534
        %3599 = vst [vmem:[#allocation2 + $0x48] sm:$0xff] %v3535
        %3600 = vst [vmem:[#allocation2 + $0x50] sm:$0xff] %v3536
        %3601 = vst [vmem:[#allocation2 + $0x58] sm:$0xff] %v3537
        %3602 = vst [vmem:[#allocation2 + $0x60] sm:$0xff] %v3538
        %3603 = vst [vmem:[#allocation2 + $0x68] sm:$0xff] %v3539
        %3604 = vst [vmem:[#allocation2 + $0x70] sm:$0xff] %v3540
        %3605 = vst [vmem:[#allocation2 + $0x78] sm:$0xff] %v3541
        %3606 = vst [vmem:[#allocation2 + $0x80] sm:$0xff] %v3542
        %3607 = vst [vmem:[#allocation2 + $0x88] sm:$0xff] %v3543
        %3608 = vst [vmem:[#allocation2 + $0x90] sm:$0xff] %v3544
        %3609 = vst [vmem:[#allocation2 + $0x98] sm:$0xff] %v3545
        %3610 = vst [vmem:[#allocation2 + $0xa0] sm:$0xff] %v3546
        %3611 = vst [vmem:[#allocation2 + $0xa8] sm:$0xff] %v3547
        %3612 = vst [vmem:[#allocation2 + $0xb0] sm:$0xff] %v3548
        %3613 = vst [vmem:[#allocation2 + $0xb8] sm:$0xff] %v3549
        %3614 = vst [vmem:[#allocation2 + $0xc0] sm:$0xff] %v3550
        %3615 = vst [vmem:[#allocation2 + $0xc8] sm:$0xff] %v3551
        %3616 = vst [vmem:[#allocation2 + $0xd0] sm:$0xff] %v3552
        %3617 = vst [vmem:[#allocation2 + $0xd8] sm:$0xff] %v3553
        %3618 = vst [vmem:[#allocation2 + $0xe0] sm:$0xff] %v3554
        %3619 = vst [vmem:[#allocation2 + $0xe8] sm:$0xff] %v3555
        %3620 = vst [vmem:[#allocation2 + $0xf0] sm:$0xff] %v3556
        %3621 = vst [vmem:[#allocation2 + $0xf8] sm:$0xff] %v3557
        %3622 = vst [vmem:[#allocation2 + $0x100] sm:$0xff] %v3558
        %3623 = vst [vmem:[#allocation2 + $0x108] sm:$0xff] %v3559
        %3624 = vst [vmem:[#allocation2 + $0x110] sm:$0xff] %v3560
        %3625 = vst [vmem:[#allocation2 + $0x118] sm:$0xff] %v3561
        %3626 = vst [vmem:[#allocation2 + $0x120] sm:$0xff] %v3562
        %3627 = vst [vmem:[#allocation2 + $0x128] sm:$0xff] %v3563
        %3628 = vst [vmem:[#allocation2 + $0x130] sm:$0xff] %v3564
        %3629 = vst [vmem:[#allocation2 + $0x138] sm:$0xff] %v3565
        %3630 = vst [vmem:[#allocation2 + $0x140] sm:$0xff] %v3566
        %3631 = vst [vmem:[#allocation2 + $0x148] sm:$0xff] %v3567
        %3632 = vst [vmem:[#allocation2 + $0x150] sm:$0xff] %v3568
        %3633 = vst [vmem:[#allocation2 + $0x158] sm:$0xff] %v3569
        %3634 = vst [vmem:[#allocation2 + $0x160] sm:$0xff] %v3570
        %3635 = vst [vmem:[#allocation2 + $0x168] sm:$0xff] %v3571
        %3636 = vst [vmem:[#allocation2 + $0x170] sm:$0xff] %v3572
        %3637 = vst [vmem:[#allocation2 + $0x178] sm:$0xff] %v3573
        %3638 = vst [vmem:[#allocation2 + $0x180] sm:$0xff] %v3574
        %3639 = vst [vmem:[#allocation2 + $0x188] sm:$0xff] %v3575
        %3640 = vst [vmem:[#allocation2 + $0x190] sm:$0xff] %v3576
        %3641 = vst [vmem:[#allocation2 + $0x198] sm:$0xff] %v3577
        %3642 = vst [vmem:[#allocation2 + $0x1a0] sm:$0xff] %v3578
        %3643 = vst [vmem:[#allocation2 + $0x1a8] sm:$0xff] %v3579
        %3644 = vst [vmem:[#allocation2 + $0x1b0] sm:$0xff] %v3580
        %3645 = vst [vmem:[#allocation2 + $0x1b8] sm:$0xff] %v3581
        %3646 = vst [vmem:[#allocation2 + $0x1c0] sm:$0xff] %v3582
        %3647 = vst [vmem:[#allocation2 + $0x1c8] sm:$0xff] %v3583
        %3648 = vst [vmem:[#allocation2 + $0x1d0] sm:$0xff] %v3584
        %3649 = vst [vmem:[#allocation2 + $0x1d8] sm:$0xff] %v3585
        %3650 = vst [vmem:[#allocation2 + $0x1e0] sm:$0xff] %v3586
        %3651 = vst [vmem:[#allocation2 + $0x1e8] sm:$0xff] %v3587
        %3652 = vst [vmem:[#allocation2 + $0x1f0] sm:$0xff] %v3588
        %3653 = vst [vmem:[#allocation2 + $0x1f8] sm:$0xff] %v3589
        %v3654 = vld [vmem:[#allocation2] sm:$0xff]
        %v3655 = vld [vmem:[#allocation2 + $0x8] sm:$0xff]
        %v3656 = vld [vmem:[#allocation2 + $0x10] sm:$0xff]
        %v3657 = vld [vmem:[#allocation2 + $0x18] sm:$0xff]
        %v3658 = vld [vmem:[#allocation2 + $0x20] sm:$0xff]
        %v3659 = vld [vmem:[#allocation2 + $0x28] sm:$0xff]
        %v3660 = vld [vmem:[#allocation2 + $0x30] sm:$0xff]
        %v3661 = vld [vmem:[#allocation2 + $0x38] sm:$0xff]
        %v3662 = vld [vmem:[#allocation2 + $0x40] sm:$0xff]
        %v3663 = vld [vmem:[#allocation2 + $0x48] sm:$0xff]
        %v3664 = vld [vmem:[#allocation2 + $0x50] sm:$0xff]
        %v3665 = vld [vmem:[#allocation2 + $0x58] sm:$0xff]
        %v3666 = vld [vmem:[#allocation2 + $0x60] sm:$0xff]
        %v3667 = vld [vmem:[#allocation2 + $0x68] sm:$0xff]
        %v3668 = vld [vmem:[#allocation2 + $0x70] sm:$0xff]
        %v3669 = vld [vmem:[#allocation2 + $0x78] sm:$0xff]
        %v3670 = vld [vmem:[#allocation2 + $0x80] sm:$0xff]
        %v3671 = vld [vmem:[#allocation2 + $0x88] sm:$0xff]
        %v3672 = vld [vmem:[#allocation2 + $0x90] sm:$0xff]
        %v3673 = vld [vmem:[#allocation2 + $0x98] sm:$0xff]
        %v3674 = vld [vmem:[#allocation2 + $0xa0] sm:$0xff]
        %v3675 = vld [vmem:[#allocation2 + $0xa8] sm:$0xff]
        %v3676 = vld [vmem:[#allocation2 + $0xb0] sm:$0xff]
        %v3677 = vld [vmem:[#allocation2 + $0xb8] sm:$0xff]
        %v3678 = vld [vmem:[#allocation2 + $0xc0] sm:$0xff]
        %v3679 = vld [vmem:[#allocation2 + $0xc8] sm:$0xff]
        %v3680 = vld [vmem:[#allocation2 + $0xd0] sm:$0xff]
        %v3681 = vld [vmem:[#allocation2 + $0xd8] sm:$0xff]
        %v3682 = vld [vmem:[#allocation2 + $0xe0] sm:$0xff]
        %v3683 = vld [vmem:[#allocation2 + $0xe8] sm:$0xff]
        %v3684 = vld [vmem:[#allocation2 + $0xf0] sm:$0xff]
        %v3685 = vld [vmem:[#allocation2 + $0xf8] sm:$0xff]
        %v3686 = vld [vmem:[#allocation2 + $0x100] sm:$0xff]
        %v3687 = vld [vmem:[#allocation2 + $0x108] sm:$0xff]
        %v3688 = vld [vmem:[#allocation2 + $0x110] sm:$0xff]
        %v3689 = vld [vmem:[#allocation2 + $0x118] sm:$0xff]
        %v3690 = vld [vmem:[#allocation2 + $0x120] sm:$0xff]
        %v3691 = vld [vmem:[#allocation2 + $0x128] sm:$0xff]
        %v3692 = vld [vmem:[#allocation2 + $0x130] sm:$0xff]
        %v3693 = vld [vmem:[#allocation2 + $0x138] sm:$0xff]
        %v3694 = vld [vmem:[#allocation2 + $0x140] sm:$0xff]
        %v3695 = vld [vmem:[#allocation2 + $0x148] sm:$0xff]
        %v3696 = vld [vmem:[#allocation2 + $0x150] sm:$0xff]
        %v3697 = vld [vmem:[#allocation2 + $0x158] sm:$0xff]
        %v3698 = vld [vmem:[#allocation2 + $0x160] sm:$0xff]
        %v3699 = vld [vmem:[#allocation2 + $0x168] sm:$0xff]
        %v3700 = vld [vmem:[#allocation2 + $0x170] sm:$0xff]
        %v3701 = vld [vmem:[#allocation2 + $0x178] sm:$0xff]
        %v3702 = vld [vmem:[#allocation2 + $0x180] sm:$0xff]
        %v3703 = vld [vmem:[#allocation2 + $0x188] sm:$0xff]
        %v3704 = vld [vmem:[#allocation2 + $0x190] sm:$0xff]
        %v3705 = vld [vmem:[#allocation2 + $0x198] sm:$0xff]
        %v3706 = vld [vmem:[#allocation2 + $0x1a0] sm:$0xff]
        %v3707 = vld [vmem:[#allocation2 + $0x1a8] sm:$0xff]
        %v3708 = vld [vmem:[#allocation2 + $0x1b0] sm:$0xff]
        %v3709 = vld [vmem:[#allocation2 + $0x1b8] sm:$0xff]
        %v3710 = vld [vmem:[#allocation2 + $0x1c0] sm:$0xff]
        %v3711 = vld [vmem:[#allocation2 + $0x1c8] sm:$0xff]
        %v3712 = vld [vmem:[#allocation2 + $0x1d0] sm:$0xff]
        %v3713 = vld [vmem:[#allocation2 + $0x1d8] sm:$0xff]
        %v3714 = vld [vmem:[#allocation2 + $0x1e0] sm:$0xff]
        %v3715 = vld [vmem:[#allocation2 + $0x1e8] sm:$0xff]
        %v3716 = vld [vmem:[#allocation2 + $0x1f0] sm:$0xff]
        %v3717 = vld [vmem:[#allocation2 + $0x1f8] sm:$0xff]
        %v3718 = vld [vmem:[#allocation4] sm:$0xf]
        %v3719 = vld [vmem:[#allocation4 + $0x4] sm:$0xf]
        %v3720 = vld [vmem:[#allocation4 + $0x8] sm:$0xf]
        %v3721 = vld [vmem:[#allocation4 + $0xc] sm:$0xf]
        %v3722 = vld [vmem:[#allocation4 + $0x10] sm:$0xf]
        %v3723 = vld [vmem:[#allocation4 + $0x14] sm:$0xf]
        %v3724 = vld [vmem:[#allocation4 + $0x18] sm:$0xf]
        %v3725 = vld [vmem:[#allocation4 + $0x1c] sm:$0xf]
        %v3726 = vld [vmem:[#allocation4 + $0x20] sm:$0xf]
        %v3727 = vld [vmem:[#allocation4 + $0x24] sm:$0xf]
        %v3728 = vld [vmem:[#allocation4 + $0x28] sm:$0xf]
        %v3729 = vld [vmem:[#allocation4 + $0x2c] sm:$0xf]
        %v3730 = vld [vmem:[#allocation4 + $0x30] sm:$0xf]
        %v3731 = vld [vmem:[#allocation4 + $0x34] sm:$0xf]
        %v3732 = vld [vmem:[#allocation4 + $0x38] sm:$0xf]
        %v3733 = vld [vmem:[#allocation4 + $0x3c] sm:$0xf]
        %v3734 = vld [vmem:[#allocation4 + $0x40] sm:$0xf]
        %v3735 = vld [vmem:[#allocation4 + $0x44] sm:$0xf]
        %v3736 = vld [vmem:[#allocation4 + $0x48] sm:$0xf]
        %v3737 = vld [vmem:[#allocation4 + $0x4c] sm:$0xf]
        %v3738 = vld [vmem:[#allocation4 + $0x50] sm:$0xf]
        %v3739 = vld [vmem:[#allocation4 + $0x54] sm:$0xf]
        %v3740 = vld [vmem:[#allocation4 + $0x58] sm:$0xf]
        %v3741 = vld [vmem:[#allocation4 + $0x5c] sm:$0xf]
        %v3742 = vld [vmem:[#allocation4 + $0x60] sm:$0xf]
        %v3743 = vld [vmem:[#allocation4 + $0x64] sm:$0xf]
        %v3744 = vld [vmem:[#allocation4 + $0x68] sm:$0xf]
        %v3745 = vld [vmem:[#allocation4 + $0x6c] sm:$0xf]
        %v3746 = vld [vmem:[#allocation4 + $0x70] sm:$0xf]
        %v3747 = vld [vmem:[#allocation4 + $0x74] sm:$0xf]
        %v3748 = vld [vmem:[#allocation4 + $0x78] sm:$0xf]
        %v3749 = vld [vmem:[#allocation4 + $0x7c] sm:$0xf]
        %v3750 = vld [vmem:[#allocation4 + $0x80] sm:$0xf]
        %v3751 = vld [vmem:[#allocation4 + $0x84] sm:$0xf]
        %v3752 = vld [vmem:[#allocation4 + $0x88] sm:$0xf]
        %v3753 = vld [vmem:[#allocation4 + $0x8c] sm:$0xf]
        %v3754 = vld [vmem:[#allocation4 + $0x90] sm:$0xf]
        %v3755 = vld [vmem:[#allocation4 + $0x94] sm:$0xf]
        %v3756 = vld [vmem:[#allocation4 + $0x98] sm:$0xf]
        %v3757 = vld [vmem:[#allocation4 + $0x9c] sm:$0xf]
        %v3758 = vld [vmem:[#allocation4 + $0xa0] sm:$0xf]
        %v3759 = vld [vmem:[#allocation4 + $0xa4] sm:$0xf]
        %v3760 = vld [vmem:[#allocation4 + $0xa8] sm:$0xf]
        %v3761 = vld [vmem:[#allocation4 + $0xac] sm:$0xf]
        %v3762 = vld [vmem:[#allocation4 + $0xb0] sm:$0xf]
        %v3763 = vld [vmem:[#allocation4 + $0xb4] sm:$0xf]
        %v3764 = vld [vmem:[#allocation4 + $0xb8] sm:$0xf]
        %v3765 = vld [vmem:[#allocation4 + $0xbc] sm:$0xf]
        %v3766 = vld [vmem:[#allocation4 + $0xc0] sm:$0xf]
        %v3767 = vld [vmem:[#allocation4 + $0xc4] sm:$0xf]
        %v3768 = vld [vmem:[#allocation4 + $0xc8] sm:$0xf]
        %v3769 = vld [vmem:[#allocation4 + $0xcc] sm:$0xf]
        %v3770 = vld [vmem:[#allocation4 + $0xd0] sm:$0xf]
        %v3771 = vld [vmem:[#allocation4 + $0xd4] sm:$0xf]
        %v3772 = vld [vmem:[#allocation4 + $0xd8] sm:$0xf]
        %v3773 = vld [vmem:[#allocation4 + $0xdc] sm:$0xf]
        %v3774 = vld [vmem:[#allocation4 + $0xe0] sm:$0xf]
        %v3775 = vld [vmem:[#allocation4 + $0xe4] sm:$0xf]
        %v3776 = vld [vmem:[#allocation4 + $0xe8] sm:$0xf]
        %v3777 = vld [vmem:[#allocation4 + $0xec] sm:$0xf]
        %v3778 = vld [vmem:[#allocation4 + $0xf0] sm:$0xf]
        %v3779 = vld [vmem:[#allocation4 + $0xf4] sm:$0xf]
        %v3780 = vld [vmem:[#allocation4 + $0xf8] sm:$0xf]
        %v3781 = vld [vmem:[#allocation4 + $0xfc] sm:$0xf]
        %v3783 = vperm.slane %v1001, 0
        %v3849 = vunpack.c.l.b16 %v3654
        %v3850 = vunpack.c.h.b16 %v3654
        %v3851 = vunpack.c.l.b16 %v3655
        %v3852 = vunpack.c.h.b16 %v3655
        %v3853 = vunpack.c.l.b16 %v3656
        %v3854 = vunpack.c.h.b16 %v3656
        %v3855 = vunpack.c.l.b16 %v3657
        %v3856 = vunpack.c.h.b16 %v3657
        %v3857 = vunpack.c.l.b16 %v3658
        %v3858 = vunpack.c.h.b16 %v3658
        %v3859 = vunpack.c.l.b16 %v3659
        %v3860 = vunpack.c.h.b16 %v3659
        %v3861 = vunpack.c.l.b16 %v3660
        %v3862 = vunpack.c.h.b16 %v3660
        %v3863 = vunpack.c.l.b16 %v3661
        %v3864 = vunpack.c.h.b16 %v3661
        %v3865 = vunpack.c.l.b16 %v3662
        %v3866 = vunpack.c.h.b16 %v3662
        %v3867 = vunpack.c.l.b16 %v3663
        %v3868 = vunpack.c.h.b16 %v3663
        %v3869 = vunpack.c.l.b16 %v3664
        %v3870 = vunpack.c.h.b16 %v3664
        %v3871 = vunpack.c.l.b16 %v3665
        %v3872 = vunpack.c.h.b16 %v3665
        %v3873 = vunpack.c.l.b16 %v3666
        %v3874 = vunpack.c.h.b16 %v3666
        %v3875 = vunpack.c.l.b16 %v3667
        %v3876 = vunpack.c.h.b16 %v3667
        %v3877 = vunpack.c.l.b16 %v3668
        %v3878 = vunpack.c.h.b16 %v3668
        %v3879 = vunpack.c.l.b16 %v3669
        %v3880 = vunpack.c.h.b16 %v3669
        %v3881 = vunpack.c.l.b16 %v3670
        %v3882 = vunpack.c.h.b16 %v3670
        %v3883 = vunpack.c.l.b16 %v3671
        %v3884 = vunpack.c.h.b16 %v3671
        %v3885 = vunpack.c.l.b16 %v3672
        %v3886 = vunpack.c.h.b16 %v3672
        %v3887 = vunpack.c.l.b16 %v3673
        %v3888 = vunpack.c.h.b16 %v3673
        %v3889 = vunpack.c.l.b16 %v3674
        %v3890 = vunpack.c.h.b16 %v3674
        %v3891 = vunpack.c.l.b16 %v3675
        %v3892 = vunpack.c.h.b16 %v3675
        %v3893 = vunpack.c.l.b16 %v3676
        %v3894 = vunpack.c.h.b16 %v3676
        %v3895 = vunpack.c.l.b16 %v3677
        %v3896 = vunpack.c.h.b16 %v3677
        %v3897 = vunpack.c.l.b16 %v3678
        %v3898 = vunpack.c.h.b16 %v3678
        %v3899 = vunpack.c.l.b16 %v3679
        %v3900 = vunpack.c.h.b16 %v3679
        %v3901 = vunpack.c.l.b16 %v3680
        %v3902 = vunpack.c.h.b16 %v3680
        %v3903 = vunpack.c.l.b16 %v3681
        %v3904 = vunpack.c.h.b16 %v3681
        %v3905 = vunpack.c.l.b16 %v3682
        %v3906 = vunpack.c.h.b16 %v3682
        %v3907 = vunpack.c.l.b16 %v3683
        %v3908 = vunpack.c.h.b16 %v3683
        %v3909 = vunpack.c.l.b16 %v3684
        %v3910 = vunpack.c.h.b16 %v3684
        %v3911 = vunpack.c.l.b16 %v3685
        %v3912 = vunpack.c.h.b16 %v3685
        %v3913 = vunpack.c.l.b16 %v3686
        %v3914 = vunpack.c.h.b16 %v3686
        %v3915 = vunpack.c.l.b16 %v3687
        %v3916 = vunpack.c.h.b16 %v3687
        %v3917 = vunpack.c.l.b16 %v3688
        %v3918 = vunpack.c.h.b16 %v3688
        %v3919 = vunpack.c.l.b16 %v3689
        %v3920 = vunpack.c.h.b16 %v3689
        %v3921 = vunpack.c.l.b16 %v3690
        %v3922 = vunpack.c.h.b16 %v3690
        %v3923 = vunpack.c.l.b16 %v3691
        %v3924 = vunpack.c.h.b16 %v3691
        %v3925 = vunpack.c.l.b16 %v3692
        %v3926 = vunpack.c.h.b16 %v3692
        %v3927 = vunpack.c.l.b16 %v3693
        %v3928 = vunpack.c.h.b16 %v3693
        %v3929 = vunpack.c.l.b16 %v3694
        %v3930 = vunpack.c.h.b16 %v3694
        %v3931 = vunpack.c.l.b16 %v3695
        %v3932 = vunpack.c.h.b16 %v3695
        %v3933 = vunpack.c.l.b16 %v3696
        %v3934 = vunpack.c.h.b16 %v3696
        %v3935 = vunpack.c.l.b16 %v3697
        %v3936 = vunpack.c.h.b16 %v3697
        %v3937 = vunpack.c.l.b16 %v3698
        %v3938 = vunpack.c.h.b16 %v3698
        %v3939 = vunpack.c.l.b16 %v3699
        %v3940 = vunpack.c.h.b16 %v3699
        %v3941 = vunpack.c.l.b16 %v3700
        %v3942 = vunpack.c.h.b16 %v3700
        %v3943 = vunpack.c.l.b16 %v3701
        %v3944 = vunpack.c.h.b16 %v3701
        %v3945 = vunpack.c.l.b16 %v3702
        %v3946 = vunpack.c.h.b16 %v3702
        %v3947 = vunpack.c.l.b16 %v3703
        %v3948 = vunpack.c.h.b16 %v3703
        %v3949 = vunpack.c.l.b16 %v3704
        %v3950 = vunpack.c.h.b16 %v3704
        %v3951 = vunpack.c.l.b16 %v3705
        %v3952 = vunpack.c.h.b16 %v3705
        %v3953 = vunpack.c.l.b16 %v3706
        %v3954 = vunpack.c.h.b16 %v3706
        %v3955 = vunpack.c.l.b16 %v3707
        %v3956 = vunpack.c.h.b16 %v3707
        %v3957 = vunpack.c.l.b16 %v3708
        %v3958 = vunpack.c.h.b16 %v3708
        %v3959 = vunpack.c.l.b16 %v3709
        %v3960 = vunpack.c.h.b16 %v3709
        %v3961 = vunpack.c.l.b16 %v3710
        %v3962 = vunpack.c.h.b16 %v3710
        %v3963 = vunpack.c.l.b16 %v3711
        %v3964 = vunpack.c.h.b16 %v3711
        %v3965 = vunpack.c.l.b16 %v3712
        %v3966 = vunpack.c.h.b16 %v3712
        %v3967 = vunpack.c.l.b16 %v3713
        %v3968 = vunpack.c.h.b16 %v3713
        %v3969 = vunpack.c.l.b16 %v3714
        %v3970 = vunpack.c.h.b16 %v3714
        %v3971 = vunpack.c.l.b16 %v3715
        %v3972 = vunpack.c.h.b16 %v3715
        %v3973 = vunpack.c.l.b16 %v3716
        %v3974 = vunpack.c.h.b16 %v3716
        %v3975 = vunpack.c.l.b16 %v3717
        %v3976 = vunpack.c.h.b16 %v3717
        %v3977 = vpack.c.b16 %v3853, %v3849
        %v3978 = vpack.c.b16 %v3854, %v3850
        %v3979 = vpack.c.b16 %v3855, %v3851
        %v3980 = vpack.c.b16 %v3856, %v3852
        %v3981 = vpack.c.b16 %v3861, %v3857
        %v3982 = vpack.c.b16 %v3862, %v3858
        %v3983 = vpack.c.b16 %v3863, %v3859
        %v3984 = vpack.c.b16 %v3864, %v3860
        %v3985 = vpack.c.b16 %v3869, %v3865
        %v3986 = vpack.c.b16 %v3870, %v3866
        %v3987 = vpack.c.b16 %v3871, %v3867
        %v3988 = vpack.c.b16 %v3872, %v3868
        %v3989 = vpack.c.b16 %v3877, %v3873
        %v3990 = vpack.c.b16 %v3878, %v3874
        %v3991 = vpack.c.b16 %v3879, %v3875
        %v3992 = vpack.c.b16 %v3880, %v3876
        %v3993 = vpack.c.b16 %v3885, %v3881
        %v3994 = vpack.c.b16 %v3886, %v3882
        %v3995 = vpack.c.b16 %v3887, %v3883
        %v3996 = vpack.c.b16 %v3888, %v3884
        %v3997 = vpack.c.b16 %v3893, %v3889
        %v3998 = vpack.c.b16 %v3894, %v3890
        %v3999 = vpack.c.b16 %v3895, %v3891
        %v4000 = vpack.c.b16 %v3896, %v3892
        %v4001 = vpack.c.b16 %v3901, %v3897
        %v4002 = vpack.c.b16 %v3902, %v3898
        %v4003 = vpack.c.b16 %v3903, %v3899
        %v4004 = vpack.c.b16 %v3904, %v3900
        %v4005 = vpack.c.b16 %v3909, %v3905
        %v4006 = vpack.c.b16 %v3910, %v3906
        %v4007 = vpack.c.b16 %v3911, %v3907
        %v4008 = vpack.c.b16 %v3912, %v3908
        %v4009 = vpack.c.b16 %v3917, %v3913
        %v4010 = vpack.c.b16 %v3918, %v3914
        %v4011 = vpack.c.b16 %v3919, %v3915
        %v4012 = vpack.c.b16 %v3920, %v3916
        %v4013 = vpack.c.b16 %v3925, %v3921
        %v4014 = vpack.c.b16 %v3926, %v3922
        %v4015 = vpack.c.b16 %v3927, %v3923
        %v4016 = vpack.c.b16 %v3928, %v3924
        %v4017 = vpack.c.b16 %v3933, %v3929
        %v4018 = vpack.c.b16 %v3934, %v3930
        %v4019 = vpack.c.b16 %v3935, %v3931
        %v4020 = vpack.c.b16 %v3936, %v3932
        %v4021 = vpack.c.b16 %v3941, %v3937
        %v4022 = vpack.c.b16 %v3942, %v3938
        %v4023 = vpack.c.b16 %v3943, %v3939
        %v4024 = vpack.c.b16 %v3944, %v3940
        %v4025 = vpack.c.b16 %v3949, %v3945
        %v4026 = vpack.c.b16 %v3950, %v3946
        %v4027 = vpack.c.b16 %v3951, %v3947
        %v4028 = vpack.c.b16 %v3952, %v3948
        %v4029 = vpack.c.b16 %v3957, %v3953
        %v4030 = vpack.c.b16 %v3958, %v3954
        %v4031 = vpack.c.b16 %v3959, %v3955
        %v4032 = vpack.c.b16 %v3960, %v3956
        %v4033 = vpack.c.b16 %v3965, %v3961
        %v4034 = vpack.c.b16 %v3966, %v3962
        %v4035 = vpack.c.b16 %v3967, %v3963
        %v4036 = vpack.c.b16 %v3968, %v3964
        %v4037 = vpack.c.b16 %v3973, %v3969
        %v4038 = vpack.c.b16 %v3974, %v3970
        %v4039 = vpack.c.b16 %v3975, %v3971
        %v4040 = vpack.c.b16 %v3976, %v3972
        %v4169 = vunpack.c.l.b16 %v3718
        %v4170 = vunpack.c.l.b16 %v3719
        %v4171 = vunpack.c.l.b16 %v3720
        %v4172 = vunpack.c.l.b16 %v3721
        %v4173 = vunpack.c.l.b16 %v3722
        %v4174 = vunpack.c.l.b16 %v3723
        %v4175 = vunpack.c.l.b16 %v3724
        %v4176 = vunpack.c.l.b16 %v3725
        %v4177 = vunpack.c.l.b16 %v3726
        %v4178 = vunpack.c.l.b16 %v3727
        %v4179 = vunpack.c.l.b16 %v3728
        %v4180 = vunpack.c.l.b16 %v3729
        %v4181 = vunpack.c.l.b16 %v3730
        %v4182 = vunpack.c.l.b16 %v3731
        %v4183 = vunpack.c.l.b16 %v3732
        %v4184 = vunpack.c.l.b16 %v3733
        %v4185 = vunpack.c.l.b16 %v3734
        %v4186 = vunpack.c.l.b16 %v3735
        %v4187 = vunpack.c.l.b16 %v3736
        %v4188 = vunpack.c.l.b16 %v3737
        %v4189 = vunpack.c.l.b16 %v3738
        %v4190 = vunpack.c.l.b16 %v3739
        %v4191 = vunpack.c.l.b16 %v3740
        %v4192 = vunpack.c.l.b16 %v3741
        %v4193 = vunpack.c.l.b16 %v3742
        %v4194 = vunpack.c.l.b16 %v3743
        %v4195 = vunpack.c.l.b16 %v3744
        %v4196 = vunpack.c.l.b16 %v3745
        %v4197 = vunpack.c.l.b16 %v3746
        %v4198 = vunpack.c.l.b16 %v3747
        %v4199 = vunpack.c.l.b16 %v3748
        %v4200 = vunpack.c.l.b16 %v3749
        %v4201 = vunpack.c.l.b16 %v3750
        %v4202 = vunpack.c.l.b16 %v3751
        %v4203 = vunpack.c.l.b16 %v3752
        %v4204 = vunpack.c.l.b16 %v3753
        %v4205 = vunpack.c.l.b16 %v3754
        %v4206 = vunpack.c.l.b16 %v3755
        %v4207 = vunpack.c.l.b16 %v3756
        %v4208 = vunpack.c.l.b16 %v3757
        %v4209 = vunpack.c.l.b16 %v3758
        %v4210 = vunpack.c.l.b16 %v3759
        %v4211 = vunpack.c.l.b16 %v3760
        %v4212 = vunpack.c.l.b16 %v3761
        %v4213 = vunpack.c.l.b16 %v3762
        %v4214 = vunpack.c.l.b16 %v3763
        %v4215 = vunpack.c.l.b16 %v3764
        %v4216 = vunpack.c.l.b16 %v3765
        %v4217 = vunpack.c.l.b16 %v3766
        %v4218 = vunpack.c.l.b16 %v3767
        %v4219 = vunpack.c.l.b16 %v3768
        %v4220 = vunpack.c.l.b16 %v3769
        %v4221 = vunpack.c.l.b16 %v3770
        %v4222 = vunpack.c.l.b16 %v3771
        %v4223 = vunpack.c.l.b16 %v3772
        %v4224 = vunpack.c.l.b16 %v3773
        %v4225 = vunpack.c.l.b16 %v3774
        %v4226 = vunpack.c.l.b16 %v3775
        %v4227 = vunpack.c.l.b16 %v3776
        %v4228 = vunpack.c.l.b16 %v3777
        %v4229 = vunpack.c.l.b16 %v3778
        %v4230 = vunpack.c.l.b16 %v3779
        %v4231 = vunpack.c.l.b16 %v3780
        %v4232 = vunpack.c.l.b16 %v3781
        %v4233 = vpack.c.b16 %v4170, %v4169
        %v4234 = vpack.c.b16 %v4172, %v4171
        %v4235 = vpack.c.b16 %v4174, %v4173
        %v4236 = vpack.c.b16 %v4176, %v4175
        %v4237 = vpack.c.b16 %v4178, %v4177
        %v4238 = vpack.c.b16 %v4180, %v4179
        %v4239 = vpack.c.b16 %v4182, %v4181
        %v4240 = vpack.c.b16 %v4184, %v4183
        %v4241 = vpack.c.b16 %v4186, %v4185
        %v4242 = vpack.c.b16 %v4188, %v4187
        %v4243 = vpack.c.b16 %v4190, %v4189
        %v4244 = vpack.c.b16 %v4192, %v4191
        %v4245 = vpack.c.b16 %v4194, %v4193
        %v4246 = vpack.c.b16 %v4196, %v4195
        %v4247 = vpack.c.b16 %v4198, %v4197
        %v4248 = vpack.c.b16 %v4200, %v4199
        %v4249 = vpack.c.b16 %v4202, %v4201
        %v4250 = vpack.c.b16 %v4204, %v4203
        %v4251 = vpack.c.b16 %v4206, %v4205
        %v4252 = vpack.c.b16 %v4208, %v4207
        %v4253 = vpack.c.b16 %v4210, %v4209
        %v4254 = vpack.c.b16 %v4212, %v4211
        %v4255 = vpack.c.b16 %v4214, %v4213
        %v4256 = vpack.c.b16 %v4216, %v4215
        %v4257 = vpack.c.b16 %v4218, %v4217
        %v4258 = vpack.c.b16 %v4220, %v4219
        %v4259 = vpack.c.b16 %v4222, %v4221
        %v4260 = vpack.c.b16 %v4224, %v4223
        %v4261 = vpack.c.b16 %v4226, %v4225
        %v4262 = vpack.c.b16 %v4228, %v4227
        %v4263 = vpack.c.b16 %v4230, %v4229
        %v4264 = vpack.c.b16 %v4232, %v4231
        %4297 = vmatpush.bf16.msra.mxu0 %v4240
        %4298 = vmatpush.bf16.msra.mxu0 %v4239
        %4299 = vmatpush.bf16.msra.mxu0 %v4238
        %4300 = vmatpush.bf16.msra.mxu0 %v4237
        %4301 = vmatpush.bf16.msra.mxu0 %v4236
        %4302 = vmatpush.bf16.msra.mxu0 %v4235
        %4303 = vmatpush.bf16.msra.mxu0 %v4234
        %4304 = vmatpush.bf16.msra.mxu0 %v4233
        %4305 = vmatmul.bf16.gmra.mxu0 %v3977
        %v4306 = vpop.f32.mrf.mxu0
        %v4307 = vadd.f32 %v3783, %v4306
        %v4308 = vpop.f32.mrf.mxu0
        %v4309 = vadd.f32 %v3783, %v4308
        %4310 = vmatmul.bf16.gmra.mxu0 %v3981
        %v4311 = vpop.f32.mrf.mxu0
        %v4312 = vadd.f32 %v3783, %v4311
        %v4313 = vpop.f32.mrf.mxu0
        %v4314 = vadd.f32 %v3783, %v4313
        %4315 = vmatmul.bf16.gmra.mxu0 %v3985
        %v4316 = vpop.f32.mrf.mxu0
        %v4317 = vadd.f32 %v3783, %v4316
        %v4318 = vpop.f32.mrf.mxu0
        %v4319 = vadd.f32 %v3783, %v4318
        %4320 = vmatmul.bf16.gmra.mxu0 %v3989
        %v4321 = vpop.f32.mrf.mxu0
        %v4322 = vadd.f32 %v3783, %v4321
        %v4323 = vpop.f32.mrf.mxu0
        %v4324 = vadd.f32 %v3783, %v4323
        %4325 = vmatmul.bf16.gmra.mxu0 %v3993
        %v4326 = vpop.f32.mrf.mxu0
        %v4327 = vadd.f32 %v3783, %v4326
        %v4328 = vpop.f32.mrf.mxu0
        %v4329 = vadd.f32 %v3783, %v4328
        %4330 = vmatmul.bf16.gmra.mxu0 %v3997
        %v4331 = vpop.f32.mrf.mxu0
        %v4332 = vadd.f32 %v3783, %v4331
        %v4333 = vpop.f32.mrf.mxu0
        %v4334 = vadd.f32 %v3783, %v4333
        %4335 = vmatmul.bf16.gmra.mxu0 %v4001
        %v4336 = vpop.f32.mrf.mxu0
        %v4337 = vadd.f32 %v3783, %v4336
        %v4338 = vpop.f32.mrf.mxu0
        %v4339 = vadd.f32 %v3783, %v4338
        %4340 = vmatmul.bf16.gmra.mxu0 %v4005
        %v4341 = vpop.f32.mrf.mxu0
        %v4342 = vadd.f32 %v3783, %v4341
        %v4343 = vpop.f32.mrf.mxu0
        %v4344 = vadd.f32 %v3783, %v4343
        %4345 = vmatmul.bf16.gmra.mxu0 %v4009
        %v4346 = vpop.f32.mrf.mxu0
        %v4347 = vadd.f32 %v3783, %v4346
        %v4348 = vpop.f32.mrf.mxu0
        %v4349 = vadd.f32 %v3783, %v4348
        %4350 = vmatmul.bf16.gmra.mxu0 %v4013
        %v4351 = vpop.f32.mrf.mxu0
        %v4352 = vadd.f32 %v3783, %v4351
        %v4353 = vpop.f32.mrf.mxu0
        %v4354 = vadd.f32 %v3783, %v4353
        %4355 = vmatmul.bf16.gmra.mxu0 %v4017
        %v4356 = vpop.f32.mrf.mxu0
        %v4357 = vadd.f32 %v3783, %v4356
        %v4358 = vpop.f32.mrf.mxu0
        %v4359 = vadd.f32 %v3783, %v4358
        %4360 = vmatmul.bf16.gmra.mxu0 %v4021
        %v4361 = vpop.f32.mrf.mxu0
        %v4362 = vadd.f32 %v3783, %v4361
        %v4363 = vpop.f32.mrf.mxu0
        %v4364 = vadd.f32 %v3783, %v4363
        %4365 = vmatmul.bf16.gmra.mxu0 %v4025
        %v4366 = vpop.f32.mrf.mxu0
        %v4367 = vadd.f32 %v3783, %v4366
        %v4368 = vpop.f32.mrf.mxu0
        %v4369 = vadd.f32 %v3783, %v4368
        %4370 = vmatmul.bf16.gmra.mxu0 %v4029
        %v4371 = vpop.f32.mrf.mxu0
        %v4372 = vadd.f32 %v3783, %v4371
        %v4373 = vpop.f32.mrf.mxu0
        %v4374 = vadd.f32 %v3783, %v4373
        %4375 = vmatmul.bf16.gmra.mxu0 %v4033
        %v4376 = vpop.f32.mrf.mxu0
        %v4377 = vadd.f32 %v3783, %v4376
        %v4378 = vpop.f32.mrf.mxu0
        %v4379 = vadd.f32 %v3783, %v4378
        %4380 = vmatmul.bf16.gmra.mxu0 %v4037
        %v4381 = vpop.f32.mrf.mxu0
        %v4382 = vadd.f32 %v3783, %v4381
        %v4383 = vpop.f32.mrf.mxu0
        %v4384 = vadd.f32 %v3783, %v4383
        %4385 = vdwg.mxu0
        %4386 = vmatpush.bf16.msra.mxu0 %v4248
        %4387 = vmatpush.bf16.msra.mxu0 %v4247
        %4388 = vmatpush.bf16.msra.mxu0 %v4246
        %4389 = vmatpush.bf16.msra.mxu0 %v4245
        %4390 = vmatpush.bf16.msra.mxu0 %v4244
        %4391 = vmatpush.bf16.msra.mxu0 %v4243
        %4392 = vmatpush.bf16.msra.mxu0 %v4242
        %4393 = vmatpush.bf16.msra.mxu0 %v4241
        %4394 = vmatmul.bf16.gmra.mxu0 %v3978
        %v4395 = vpop.f32.mrf.mxu0
        %v4396 = vadd.f32 %v4307, %v4395
        %v4397 = vpop.f32.mrf.mxu0
        %v4398 = vadd.f32 %v4309, %v4397
        %4399 = vmatmul.bf16.gmra.mxu0 %v3982
        %v4400 = vpop.f32.mrf.mxu0
        %v4401 = vadd.f32 %v4312, %v4400
        %v4402 = vpop.f32.mrf.mxu0
        %v4403 = vadd.f32 %v4314, %v4402
        %4404 = vmatmul.bf16.gmra.mxu0 %v3986
        %v4405 = vpop.f32.mrf.mxu0
        %v4406 = vadd.f32 %v4317, %v4405
        %v4407 = vpop.f32.mrf.mxu0
        %v4408 = vadd.f32 %v4319, %v4407
        %4409 = vmatmul.bf16.gmra.mxu0 %v3990
        %v4410 = vpop.f32.mrf.mxu0
        %v4411 = vadd.f32 %v4322, %v4410
        %v4412 = vpop.f32.mrf.mxu0
        %v4413 = vadd.f32 %v4324, %v4412
        %4414 = vmatmul.bf16.gmra.mxu0 %v3994
        %v4415 = vpop.f32.mrf.mxu0
        %v4416 = vadd.f32 %v4327, %v4415
        %v4417 = vpop.f32.mrf.mxu0
        %v4418 = vadd.f32 %v4329, %v4417
        %4419 = vmatmul.bf16.gmra.mxu0 %v3998
        %v4420 = vpop.f32.mrf.mxu0
        %v4421 = vadd.f32 %v4332, %v4420
        %v4422 = vpop.f32.mrf.mxu0
        %v4423 = vadd.f32 %v4334, %v4422
        %4424 = vmatmul.bf16.gmra.mxu0 %v4002
        %v4425 = vpop.f32.mrf.mxu0
        %v4426 = vadd.f32 %v4337, %v4425
        %v4427 = vpop.f32.mrf.mxu0
        %v4428 = vadd.f32 %v4339, %v4427
        %4429 = vmatmul.bf16.gmra.mxu0 %v4006
        %v4430 = vpop.f32.mrf.mxu0
        %v4431 = vadd.f32 %v4342, %v4430
        %v4432 = vpop.f32.mrf.mxu0
        %v4433 = vadd.f32 %v4344, %v4432
        %4434 = vmatmul.bf16.gmra.mxu0 %v4010
        %v4435 = vpop.f32.mrf.mxu0
        %v4436 = vadd.f32 %v4347, %v4435
        %v4437 = vpop.f32.mrf.mxu0
        %v4438 = vadd.f32 %v4349, %v4437
        %4439 = vmatmul.bf16.gmra.mxu0 %v4014
        %v4440 = vpop.f32.mrf.mxu0
        %v4441 = vadd.f32 %v4352, %v4440
        %v4442 = vpop.f32.mrf.mxu0
        %v4443 = vadd.f32 %v4354, %v4442
        %4444 = vmatmul.bf16.gmra.mxu0 %v4018
        %v4445 = vpop.f32.mrf.mxu0
        %v4446 = vadd.f32 %v4357, %v4445
        %v4447 = vpop.f32.mrf.mxu0
        %v4448 = vadd.f32 %v4359, %v4447
        %4449 = vmatmul.bf16.gmra.mxu0 %v4022
        %v4450 = vpop.f32.mrf.mxu0
        %v4451 = vadd.f32 %v4362, %v4450
        %v4452 = vpop.f32.mrf.mxu0
        %v4453 = vadd.f32 %v4364, %v4452
        %4454 = vmatmul.bf16.gmra.mxu0 %v4026
        %v4455 = vpop.f32.mrf.mxu0
        %v4456 = vadd.f32 %v4367, %v4455
        %v4457 = vpop.f32.mrf.mxu0
        %v4458 = vadd.f32 %v4369, %v4457
        %4459 = vmatmul.bf16.gmra.mxu0 %v4030
        %v4460 = vpop.f32.mrf.mxu0
        %v4461 = vadd.f32 %v4372, %v4460
        %v4462 = vpop.f32.mrf.mxu0
        %v4463 = vadd.f32 %v4374, %v4462
        %4464 = vmatmul.bf16.gmra.mxu0 %v4034
        %v4465 = vpop.f32.mrf.mxu0
        %v4466 = vadd.f32 %v4377, %v4465
        %v4467 = vpop.f32.mrf.mxu0
        %v4468 = vadd.f32 %v4379, %v4467
        %4469 = vmatmul.bf16.gmra.mxu0 %v4038
        %v4470 = vpop.f32.mrf.mxu0
        %v4471 = vadd.f32 %v4382, %v4470
        %v4472 = vpop.f32.mrf.mxu0
        %v4473 = vadd.f32 %v4384, %v4472
        %4474 = vdwg.mxu0
        %4475 = vmatpush.bf16.msra.mxu0 %v4256
        %4476 = vmatpush.bf16.msra.mxu0 %v4255
        %4477 = vmatpush.bf16.msra.mxu0 %v4254
        %4478 = vmatpush.bf16.msra.mxu0 %v4253
        %4479 = vmatpush.bf16.msra.mxu0 %v4252
        %4480 = vmatpush.bf16.msra.mxu0 %v4251
        %4481 = vmatpush.bf16.msra.mxu0 %v4250
        %4482 = vmatpush.bf16.msra.mxu0 %v4249
        %4483 = vmatmul.bf16.gmra.mxu0 %v3979
        %v4484 = vpop.f32.mrf.mxu0
        %v4485 = vadd.f32 %v4396, %v4484
        %v4486 = vpop.f32.mrf.mxu0
        %v4487 = vadd.f32 %v4398, %v4486
        %4488 = vmatmul.bf16.gmra.mxu0 %v3983
        %v4489 = vpop.f32.mrf.mxu0
        %v4490 = vadd.f32 %v4401, %v4489
        %v4491 = vpop.f32.mrf.mxu0
        %v4492 = vadd.f32 %v4403, %v4491
        %4493 = vmatmul.bf16.gmra.mxu0 %v3987
        %v4494 = vpop.f32.mrf.mxu0
        %v4495 = vadd.f32 %v4406, %v4494
        %v4496 = vpop.f32.mrf.mxu0
        %v4497 = vadd.f32 %v4408, %v4496
        %4498 = vmatmul.bf16.gmra.mxu0 %v3991
        %v4499 = vpop.f32.mrf.mxu0
        %v4500 = vadd.f32 %v4411, %v4499
        %v4501 = vpop.f32.mrf.mxu0
        %v4502 = vadd.f32 %v4413, %v4501
        %4503 = vmatmul.bf16.gmra.mxu0 %v3995
        %v4504 = vpop.f32.mrf.mxu0
        %v4505 = vadd.f32 %v4416, %v4504
        %v4506 = vpop.f32.mrf.mxu0
        %v4507 = vadd.f32 %v4418, %v4506
        %4508 = vmatmul.bf16.gmra.mxu0 %v3999
        %v4509 = vpop.f32.mrf.mxu0
        %v4510 = vadd.f32 %v4421, %v4509
        %v4511 = vpop.f32.mrf.mxu0
        %v4512 = vadd.f32 %v4423, %v4511
        %4513 = vmatmul.bf16.gmra.mxu0 %v4003
        %v4514 = vpop.f32.mrf.mxu0
        %v4515 = vadd.f32 %v4426, %v4514
        %v4516 = vpop.f32.mrf.mxu0
        %v4517 = vadd.f32 %v4428, %v4516
        %4518 = vmatmul.bf16.gmra.mxu0 %v4007
        %v4519 = vpop.f32.mrf.mxu0
        %v4520 = vadd.f32 %v4431, %v4519
        %v4521 = vpop.f32.mrf.mxu0
        %v4522 = vadd.f32 %v4433, %v4521
        %4523 = vmatmul.bf16.gmra.mxu0 %v4011
        %v4524 = vpop.f32.mrf.mxu0
        %v4525 = vadd.f32 %v4436, %v4524
        %v4526 = vpop.f32.mrf.mxu0
        %v4527 = vadd.f32 %v4438, %v4526
        %4528 = vmatmul.bf16.gmra.mxu0 %v4015
        %v4529 = vpop.f32.mrf.mxu0
        %v4530 = vadd.f32 %v4441, %v4529
        %v4531 = vpop.f32.mrf.mxu0
        %v4532 = vadd.f32 %v4443, %v4531
        %4533 = vmatmul.bf16.gmra.mxu0 %v4019
        %v4534 = vpop.f32.mrf.mxu0
        %v4535 = vadd.f32 %v4446, %v4534
        %v4536 = vpop.f32.mrf.mxu0
        %v4537 = vadd.f32 %v4448, %v4536
        %4538 = vmatmul.bf16.gmra.mxu0 %v4023
        %v4539 = vpop.f32.mrf.mxu0
        %v4540 = vadd.f32 %v4451, %v4539
        %v4541 = vpop.f32.mrf.mxu0
        %v4542 = vadd.f32 %v4453, %v4541
        %4543 = vmatmul.bf16.gmra.mxu0 %v4027
        %v4544 = vpop.f32.mrf.mxu0
        %v4545 = vadd.f32 %v4456, %v4544
        %v4546 = vpop.f32.mrf.mxu0
        %v4547 = vadd.f32 %v4458, %v4546
        %4548 = vmatmul.bf16.gmra.mxu0 %v4031
        %v4549 = vpop.f32.mrf.mxu0
        %v4550 = vadd.f32 %v4461, %v4549
        %v4551 = vpop.f32.mrf.mxu0
        %v4552 = vadd.f32 %v4463, %v4551
        %4553 = vmatmul.bf16.gmra.mxu0 %v4035
        %v4554 = vpop.f32.mrf.mxu0
        %v4555 = vadd.f32 %v4466, %v4554
        %v4556 = vpop.f32.mrf.mxu0
        %v4557 = vadd.f32 %v4468, %v4556
        %4558 = vmatmul.bf16.gmra.mxu0 %v4039
        %v4559 = vpop.f32.mrf.mxu0
        %v4560 = vadd.f32 %v4471, %v4559
        %v4561 = vpop.f32.mrf.mxu0
        %v4562 = vadd.f32 %v4473, %v4561
        %4563 = vdwg.mxu0
        %4564 = vmatpush.bf16.msra.mxu0 %v4264
        %4565 = vmatpush.bf16.msra.mxu0 %v4263
        %4566 = vmatpush.bf16.msra.mxu0 %v4262
        %4567 = vmatpush.bf16.msra.mxu0 %v4261
        %4568 = vmatpush.bf16.msra.mxu0 %v4260
        %4569 = vmatpush.bf16.msra.mxu0 %v4259
        %4570 = vmatpush.bf16.msra.mxu0 %v4258
        %4571 = vmatpush.bf16.msra.mxu0 %v4257
        %4572 = vmatmul.bf16.gmra.mxu0 %v3980
        %v4573 = vpop.f32.mrf.mxu0
        %v4574 = vadd.f32 %v4485, %v4573
        %v4575 = vpop.f32.mrf.mxu0
        %v4576 = vadd.f32 %v4487, %v4575
        %4577 = vmatmul.bf16.gmra.mxu0 %v3984
        %v4578 = vpop.f32.mrf.mxu0
        %v4579 = vadd.f32 %v4490, %v4578
        %v4580 = vpop.f32.mrf.mxu0
        %v4581 = vadd.f32 %v4492, %v4580
        %4582 = vmatmul.bf16.gmra.mxu0 %v3988
        %v4583 = vpop.f32.mrf.mxu0
        %v4584 = vadd.f32 %v4495, %v4583
        %v4585 = vpop.f32.mrf.mxu0
        %v4586 = vadd.f32 %v4497, %v4585
        %4587 = vmatmul.bf16.gmra.mxu0 %v3992
        %v4588 = vpop.f32.mrf.mxu0
        %v4589 = vadd.f32 %v4500, %v4588
        %v4590 = vpop.f32.mrf.mxu0
        %v4591 = vadd.f32 %v4502, %v4590
        %4592 = vmatmul.bf16.gmra.mxu0 %v3996
        %v4593 = vpop.f32.mrf.mxu0
        %v4594 = vadd.f32 %v4505, %v4593
        %v4595 = vpop.f32.mrf.mxu0
        %v4596 = vadd.f32 %v4507, %v4595
        %4597 = vmatmul.bf16.gmra.mxu0 %v4000
        %v4598 = vpop.f32.mrf.mxu0
        %v4599 = vadd.f32 %v4510, %v4598
        %v4600 = vpop.f32.mrf.mxu0
        %v4601 = vadd.f32 %v4512, %v4600
        %4602 = vmatmul.bf16.gmra.mxu0 %v4004
        %v4603 = vpop.f32.mrf.mxu0
        %v4604 = vadd.f32 %v4515, %v4603
        %v4605 = vpop.f32.mrf.mxu0
        %v4606 = vadd.f32 %v4517, %v4605
        %4607 = vmatmul.bf16.gmra.mxu0 %v4008
        %v4608 = vpop.f32.mrf.mxu0
        %v4609 = vadd.f32 %v4520, %v4608
        %v4610 = vpop.f32.mrf.mxu0
        %v4611 = vadd.f32 %v4522, %v4610
        %4612 = vmatmul.bf16.gmra.mxu0 %v4012
        %v4613 = vpop.f32.mrf.mxu0
        %v4614 = vadd.f32 %v4525, %v4613
        %v4615 = vpop.f32.mrf.mxu0
        %v4616 = vadd.f32 %v4527, %v4615
        %4617 = vmatmul.bf16.gmra.mxu0 %v4016
        %v4618 = vpop.f32.mrf.mxu0
        %v4619 = vadd.f32 %v4530, %v4618
        %v4620 = vpop.f32.mrf.mxu0
        %v4621 = vadd.f32 %v4532, %v4620
        %4622 = vmatmul.bf16.gmra.mxu0 %v4020
        %v4623 = vpop.f32.mrf.mxu0
        %v4624 = vadd.f32 %v4535, %v4623
        %v4625 = vpop.f32.mrf.mxu0
        %v4626 = vadd.f32 %v4537, %v4625
        %4627 = vmatmul.bf16.gmra.mxu0 %v4024
        %v4628 = vpop.f32.mrf.mxu0
        %v4629 = vadd.f32 %v4540, %v4628
        %v4630 = vpop.f32.mrf.mxu0
        %v4631 = vadd.f32 %v4542, %v4630
        %4632 = vmatmul.bf16.gmra.mxu0 %v4028
        %v4633 = vpop.f32.mrf.mxu0
        %v4634 = vadd.f32 %v4545, %v4633
        %v4635 = vpop.f32.mrf.mxu0
        %v4636 = vadd.f32 %v4547, %v4635
        %4637 = vmatmul.bf16.gmra.mxu0 %v4032
        %v4638 = vpop.f32.mrf.mxu0
        %v4639 = vadd.f32 %v4550, %v4638
        %v4640 = vpop.f32.mrf.mxu0
        %v4641 = vadd.f32 %v4552, %v4640
        %4642 = vmatmul.bf16.gmra.mxu0 %v4036
        %v4643 = vpop.f32.mrf.mxu0
        %v4644 = vadd.f32 %v4555, %v4643
        %v4645 = vpop.f32.mrf.mxu0
        %v4646 = vadd.f32 %v4557, %v4645
        %4647 = vmatmul.bf16.gmra.mxu0 %v4040
        %v4648 = vpop.f32.mrf.mxu0
        %v4649 = vadd.f32 %v4560, %v4648
        %v4650 = vpop.f32.mrf.mxu0
        %v4651 = vadd.f32 %v4562, %v4650
        %4652 = vdwg.mxu0
        %4653 = vst [vmem:[%s293] sm:$0xff] %v4574
        %4654 = vst [vmem:[%s293 + $0x8] sm:$0xff] %v4576
        %4655 = vst [vmem:[%s293 + $0x10] sm:$0xff] %v4579
        %4656 = vst [vmem:[%s293 + $0x18] sm:$0xff] %v4581
        %4657 = vst [vmem:[%s293 + $0x20] sm:$0xff] %v4584
        %4658 = vst [vmem:[%s293 + $0x28] sm:$0xff] %v4586
        %4659 = vst [vmem:[%s293 + $0x30] sm:$0xff] %v4589
        %4660 = vst [vmem:[%s293 + $0x38] sm:$0xff] %v4591
        %4661 = vst [vmem:[%s293 + $0x40] sm:$0xff] %v4594
        %4662 = vst [vmem:[%s293 + $0x48] sm:$0xff] %v4596
        %4663 = vst [vmem:[%s293 + $0x50] sm:$0xff] %v4599
        %4664 = vst [vmem:[%s293 + $0x58] sm:$0xff] %v4601
        %4665 = vst [vmem:[%s293 + $0x60] sm:$0xff] %v4604
        %4666 = vst [vmem:[%s293 + $0x68] sm:$0xff] %v4606
        %4667 = vst [vmem:[%s293 + $0x70] sm:$0xff] %v4609
        %4668 = vst [vmem:[%s293 + $0x78] sm:$0xff] %v4611
        %4669 = vst [vmem:[%s293 + $0x80] sm:$0xff] %v4614
        %4670 = vst [vmem:[%s293 + $0x88] sm:$0xff] %v4616
        %4671 = vst [vmem:[%s293 + $0x90] sm:$0xff] %v4619
        %4672 = vst [vmem:[%s293 + $0x98] sm:$0xff] %v4621
        %4673 = vst [vmem:[%s293 + $0xa0] sm:$0xff] %v4624
        %4674 = vst [vmem:[%s293 + $0xa8] sm:$0xff] %v4626
        %4675 = vst [vmem:[%s293 + $0xb0] sm:$0xff] %v4629
        %4676 = vst [vmem:[%s293 + $0xb8] sm:$0xff] %v4631
        %4677 = vst [vmem:[%s293 + $0xc0] sm:$0xff] %v4634
        %4678 = vst [vmem:[%s293 + $0xc8] sm:$0xff] %v4636
        %4679 = vst [vmem:[%s293 + $0xd0] sm:$0xff] %v4639
        %4680 = vst [vmem:[%s293 + $0xd8] sm:$0xff] %v4641
        %4681 = vst [vmem:[%s293 + $0xe0] sm:$0xff] %v4644
        %4682 = vst [vmem:[%s293 + $0xe8] sm:$0xff] %v4646
        %4683 = vst [vmem:[%s293 + $0xf0] sm:$0xff] %v4649
        %4684 = vst [vmem:[%s293 + $0xf8] sm:$0xff] %v4651
        %s4685 = sand.u32 %s142, 1
        %s4686 = scalar_lea.sflag [#allocation7], %s4685
        %s4687 = sand.u32 %s142, 1
        %s4688 = smul.addr %s4687, 256
        %s4689 = scalar_lea.vmem [#allocation13], %s4688
        // Predicated region
        $region57: #{tpu_custom_call.1} parent=39 // pred_check
          %p4690 = pneg %p152
        $region58: #{tpu_custom_call.1} parent=39 // pred_check_branch
          %4692 = sbr.rel (%p4690) target = $region60
        $region59: #{tpu_custom_call.1} parent=39 // pred_region
          %s4693 = smul.u32 32, %s24
          %4695 = vsyncadd %s4686, 0
          %s4696 = smul.addr %s4693, 8
          %s4697 = scalar_lea.hbm %s5, %s4696
          %s4698 = sshll.u32 %s4689, 4
          %s4699 = int_to_ptr.vmem [resolvable:$true] %s4698
          %s4700 = sshll.u32 %s4697, 4
          %s4701 = int_to_ptr.hbm [resolvable:$true] %s4700
          %4706 = dma.vmem_to_hbm [thread:$0]  %s4699, 4096, %s4701, %s4686, 128, 128, 8
        $region60: #{tpu_custom_call.1} parent=39 // pred_fallthru
          _
      $region40: #{tpu_custom_call.1} parent=5 // pred_fallthru
        _
      %p4707 = scmp.le.s32.totalorder 2, %s19
      // Predicated region
      $region61: #{tpu_custom_call.1} parent=5 // pred_check
        %p4708 = pneg %p4707
      $region62: #{tpu_custom_call.1} parent=5 // pred_check_branch
        %4710 = sbr.rel (%p4708) target = $region64
      $region63: #{tpu_custom_call.1} parent=5 // pred_region
        %s4711 = ssub.s32 %s19, 2
        // Predicated region
        $region65: #{tpu_custom_call.1} parent=63 // pred_check
          %p4712 = pneg %p158
        $region66: #{tpu_custom_call.1} parent=63 // pred_check_branch
          %4714 = sbr.rel (%p4712) target = $region68
        $region67: #{tpu_custom_call.1} parent=63 // pred_region
          %s4715 = sand.u32 %s143, 1
          %s4716 = scalar_lea.sflag [#allocation7], %s4715
          %s4717 = sand.u32 %s143, 1
          %s4718 = smul.addr %s4717, 256
          %s4719 = scalar_lea.vmem [#allocation13], %s4718
          %4721 = dma.done %s4716, 4096
        $region68: #{tpu_custom_call.1} parent=63 // pred_fallthru
          _
      $region64: #{tpu_custom_call.1} parent=5 // pred_fallthru
        _
    $region6: #{tpu_custom_call.1} parent=1 // loop_footer
      %s23 = sadd.s32 1, %s19
    $region7: #{tpu_custom_call.1} parent=1 // loop_footer_branch
      %18 = sbr.rel target = $region3
    $region8: #{tpu_custom_call.1} parent=1 // loop_exit
      _
    %4722 = vsyncpa [#allocation6], 1
    %s4723 = scalar_lea.sflag [#allocation6], 1
    %4724 = vsyncpa %s4723, 1
    %4725 = vsyncpa [#allocation9], 1
    %4726 = vsyncpa [#allocation12], 1
    %4727 = vsyncpa [#allocation7], 1
    %s4728 = scalar_lea.sflag [#allocation7], 1
    %4729 = vsyncpa %s4728, 1

</llo_original>
